<compile_context>
chip_gen: v7x
topology: tpu7x:2x2x1
jax: 0.10.0
libtpu: 0.0.40
codegen_flags: <defaults>
</compile_context>

<pallas_src>
import jax
import jax.numpy as jnp
from jax.experimental import pallas as pl
from jax.experimental.pallas import tpu as pltpu


# ---------------------------------------------------------------------------
# Fused forward kernel — B samples per grid step, one sample per sublane row
# ---------------------------------------------------------------------------

def _lenet_kernel(x_ref, t1_ref, s1_ref, t2_ref, s2_ref,
                  w1_ref, w2_ref, w3_ref, bias_ref, o_ref):
    f32, bf16 = jnp.float32, jnp.bfloat16

    x_bf = x_ref[...].astype(bf16)                 # (B, 784)  lane = i*28 + c
    biases = bias_ref[...]                         # (8, 144) f32 slab
    b1 = biases[0:1, 0:144]                        # conv1 bias, tiled over (row, col)
    b2 = biases[1:2, 0:128]                        # conv2 bias
    cb1 = biases[2:3, 0:120]
    cb2 = biases[3:4, 0:84]
    cb3 = biases[4:5, 0:10]

    t1 = t1_ref[...]                               # (224, 576) bf16 quad-Toeplitz
    s1 = s1_ref[...]                               # (282, 144) bf16 0/1 col-select
    t2 = t2_ref[...]                               # (576, 512) bf16 quad-Toeplitz
    s2 = s2_ref[...]                               # (240, 128) bf16 0/1 col-select

    def conv_pool(src_bf16, toeplitz, select, bias_row, half, chan):
        # conv producing 4 output rows in lanes (even rows first), then 2x2
        # maxpool: row-pair max = lane-slice max of the two halves, col-pair max
        # = lane-shifted max, even-column pick = tiny bf16 0/1 matmul; then
        # bias + ReLU (bias commutes with the max/selection since it is
        # per-channel and the selection picks single elements).
        y = jnp.dot(src_bf16, toeplitz, preferred_element_type=f32)
        rp = jnp.maximum(y[:, :half], y[:, half:])                 # row-pair max
        mj = jnp.maximum(rp[:, :half - chan], rp[:, chan:])        # col-pair max
        sel = jnp.dot(mj.astype(bf16), select, preferred_element_type=f32)
        return jnp.maximum(sel + bias_row, 0.0)

    # ---- conv1 (1->6, k=5) + maxpool(2,2) + relu -----------------------------
    # group g covers conv1 output rows 4g..4g+3 <- image rows 4g..4g+7, i.e. a
    # unit-stride 224-lane window of x.  Result p1[g]: pooled rows 2g, 2g+1,
    # lane = blk*72 + j1*6 + ci.
    p1 = [conv_pool(x_bf[:, 112 * g: 112 * g + 224], t1, s1, b1, 288, 6)
          for g in range(6)]                                       # 6 x (B, 144)

    # ---- conv2 (6->16, k=5) + maxpool(2,2) + relu ----------------------------
    # group h covers conv2 output rows 4h..4h+3 <- pool1 rows 4h..4h+7, i.e. the
    # lane-concat of p1 blocks 2h..2h+3.  Result p2[h]: pooled rows 2h, 2h+1,
    # lane = blk*64 + j3*16 + co.
    p2 = [conv_pool(jnp.concatenate(p1[2 * h: 2 * h + 4], axis=1).astype(bf16),
                    t2, s2, b2, 256, 16)
          for h in range(2)]                                       # 2 x (B, 128)

    # ---- flatten: lane = i3*64 + j3*16 + co (PyTorch C,H,W order folded in W1)
    feat = jnp.concatenate(p2, axis=1).astype(bf16)                # (B, 256)

    # ---- classifier: Linear/ReLU x2, Linear, Softmax(dim=1) ------------------
    h1 = jnp.maximum(jnp.dot(feat, w1_ref[...],
                             preferred_element_type=f32) + cb1, 0.0)   # (B, 120)
    h2 = jnp.maximum(jnp.dot(h1.astype(bf16), w2_ref[...],
                             preferred_element_type=f32) + cb2, 0.0)   # (B, 84)
    logits = jnp.dot(h2.astype(bf16), w3_ref[...],
                     preferred_element_type=f32) + cb3                 # (B, 10)

    z = logits - jnp.max(logits, axis=-1, keepdims=True)
    e = jnp.exp(z)
    o_ref[...] = e / jnp.sum(e, axis=-1, keepdims=True)            # exact softmax


# ---------------------------------------------------------------------------
# Weight-only preparation (done once, outside the hot path)
# ---------------------------------------------------------------------------

def prepare_params(p):
    """Turn PyTorch-shaped weights into kernel-ready constant matrices."""
    f32, bf16 = jnp.float32, jnp.bfloat16
    # local conv-row order inside a 4-row group: even rows first, so the pool's
    # row-pair max is max(lanes[:half], lanes[half:]).
    rc = jnp.array([0, 2, 1, 3], dtype=jnp.int32)

    # ---- conv1 quad-Toeplitz: (8*28, 4*24*6) = (224, 576) --------------------
    rloc = jnp.arange(8)
    c = jnp.arange(28)
    j = jnp.arange(24)
    di = rloc[:, None] - rc[None, :]                       # (8, 4)
    dj = c[:, None] - j[None, :]                           # (28, 24)
    vi = (di >= 0) & (di < 5)
    vj = (dj >= 0) & (dj < 5)
    w1p = jnp.transpose(p["c1w"][:, 0], (1, 2, 0))         # (5,5,6) [di,dj,co]
    t1 = w1p[jnp.clip(di, 0, 4)[:, None, :, None, None],
             jnp.clip(dj, 0, 4)[None, :, None, :, None],
             jnp.arange(6)[None, None, None, None, :]]     # (8,28,4,24,6)
    t1 = t1 * (vi[:, None, :, None, None] & vj[None, :, None, :, None]).astype(f32)
    T1 = t1.reshape(224, 576).astype(bf16)

    # ---- pool1 even-column selection (exact 0/1): (282, 144) -----------------
    lsrc = jnp.arange(282)
    m = jnp.arange(144)
    src = (m // 72) * 144 + 2 * ((m % 72) // 6) * 6 + (m % 6)
    S1 = (lsrc[:, None] == src[None, :]).astype(bf16)

    # ---- conv2 quad-Toeplitz: (8*12*6, 4*8*16) = (576, 512) ------------------
    rloc = jnp.arange(8)
    j1 = jnp.arange(12)
    j2 = jnp.arange(8)
    di = rloc[:, None] - rc[None, :]                       # (8, 4)
    dj = j1[:, None] - j2[None, :]                         # (12, 8)
    vi = (di >= 0) & (di < 5)
    vj = (dj >= 0) & (dj < 5)
    w2p = jnp.transpose(p["c2w"], (2, 3, 1, 0))            # (5,5,6,16) [di,dj,ci,co]
    t2 = w2p[jnp.clip(di, 0, 4)[:, None, None, :, None, None],
             jnp.clip(dj, 0, 4)[None, :, None, None, :, None],
             jnp.arange(6)[None, None, :, None, None, None],
             jnp.arange(16)[None, None, None, None, None, :]]   # (8,12,6,4,8,16)
    t2 = t2 * (vi[:, None, None, :, None, None]
               & vj[None, :, None, None, :, None]).astype(f32)
    T2 = t2.reshape(576, 512).astype(bf16)

    # ---- pool2 even-column selection: (240, 128) ------------------------------
    lsrc = jnp.arange(240)
    m = jnp.arange(128)
    src = (m // 64) * 128 + 2 * ((m % 64) // 16) * 16 + (m % 16)
    S2 = (lsrc[:, None] == src[None, :]).astype(bf16)

    # ---- classifier weights; fold the PyTorch (C,H,W) flatten order into fc1 -
    W1 = jnp.transpose(p["f1w"].reshape(120, 16, 4, 4),
                       (2, 3, 1, 0)).reshape(256, 120).astype(bf16)
    W2 = p["f2w"].T.astype(bf16)                           # (120, 84)
    W3 = p["f3w"].T.astype(bf16)                           # (84, 10)

    # ---- all biases packed into one (8, 144) f32 slab -------------------------
    bias = jnp.zeros((8, 144), f32)
    bias = bias.at[0, :144].set(jnp.tile(p["c1b"], 24))    # lane co = m % 6
    bias = bias.at[1, :128].set(jnp.tile(p["c2b"], 8))     # lane co = m % 16
    bias = bias.at[2, :120].set(p["f1b"])
    bias = bias.at[3, :84].set(p["f2b"])
    bias = bias.at[4, :10].set(p["f3b"])

    return (T1, S1, T2, S2, W1, W2, W3, bias)


# ---------------------------------------------------------------------------
# Forward wrapper — one fused pallas_call, batch-tiled grid
# ---------------------------------------------------------------------------

def _round_up(n, m):
    return (n + m - 1) // m * m


def _pick_block(n):
    if n >= 1024:
        return 256            # fills v6e/v7x 256 MXU rows, keeps >= 4 grid steps
    if n >= 256:
        return 128            # still >= 2 grid steps for v7x's two TensorCores
    return _round_up(n, 8)    # tiny batches: a single step


def _forward(x_nchw, kparams):
    assert x_nchw.shape[1:] == (1, 28, 28)
    N = x_nchw.shape[0]
    x = x_nchw.reshape(N, 28 * 28).astype(jnp.float32)     # contiguous -> free

    B = _pick_block(N)
    Np = _round_up(N, B)
    if Np != N:
        x = jnp.pad(x, ((0, Np - N), (0, 0)))

    in_specs = [pl.BlockSpec((B, 784), lambda n: (n, 0))]
    in_specs += [pl.BlockSpec(c.shape, lambda n: (0, 0)) for c in kparams]

    out = pl.pallas_call(
        _lenet_kernel,
        out_shape=jax.ShapeDtypeStruct((Np, 10), jnp.float32),
        grid=(Np // B,),
        in_specs=in_specs,
        out_specs=pl.BlockSpec((B, 10), lambda n: (n, 0)),
        compiler_params=pltpu.CompilerParams(
            dimension_semantics=("parallel",)),
    )(x, *kparams)
    return out[:N]


forward = jax.jit(_forward)


# ---------------------------------------------------------------------------
# Parameters (PyTorch-shaped) and a pure-JAX reference for validation
# ---------------------------------------------------------------------------

def init_params(key):
    ks = jax.random.split(key, 10)
    scale = 0.1
    return {
        "c1w": scale * jax.random.normal(ks[0], (6, 1, 5, 5), jnp.float32),
        "c1b": scale * jax.random.normal(ks[1], (6,), jnp.float32),
        "c2w": scale * jax.random.normal(ks[2], (16, 6, 5, 5), jnp.float32),
        "c2b": scale * jax.random.normal(ks[3], (16,), jnp.float32),
        "f1w": scale * jax.random.normal(ks[4], (120, 256), jnp.float32),
        "f1b": scale * jax.random.normal(ks[5], (120,), jnp.float32),
        "f2w": scale * jax.random.normal(ks[6], (84, 120), jnp.float32),
        "f2b": scale * jax.random.normal(ks[7], (84,), jnp.float32),
        "f3w": scale * jax.random.normal(ks[8], (10, 84), jnp.float32),
        "f3b": scale * jax.random.normal(ks[9], (10,), jnp.float32),
    }


def reference_forward(x_nchw, p):
    conv = lambda x, w: jax.lax.conv_general_dilated(
        x, w, (1, 1), "VALID", dimension_numbers=("NCHW", "OIHW", "NCHW"))
    pool = lambda x: jax.lax.reduce_window(
        x, -jnp.inf, jax.lax.max, (1, 1, 2, 2), (1, 1, 2, 2), "VALID")
    y = jnp.maximum(pool(conv(x_nchw, p["c1w"]) + p["c1b"][None, :, None, None]), 0.0)
    y = jnp.maximum(pool(conv(y, p["c2w"]) + p["c2b"][None, :, None, None]), 0.0)
    f = y.reshape(y.shape[0], -1)
    h1 = jnp.maximum(f @ p["f1w"].T + p["f1b"], 0.0)
    h2 = jnp.maximum(h1 @ p["f2w"].T + p["f2b"], 0.0)
    return jax.nn.softmax(h2 @ p["f3w"].T + p["f3b"], axis=1)


if __name__ == "__main__":
    key = jax.random.PRNGKey(0)
    k_x, k_p, k_x2 = jax.random.split(key, 3)
    params = init_params(k_p)
    kparams = prepare_params(params)

    # Small smoke test (batch = 2); 28x28 input so the encoder produces the
    # 16*4*4 features the classifier expects.
    x = jax.random.normal(k_x, (2, 1, 28, 28), jnp.float32)
    out = jax.block_until_ready(forward(x, kparams))
    assert out.shape == (2, 10)
    assert bool(jnp.all(jnp.abs(jnp.sum(out, axis=1) - 1.0) < 1e-3))
    ref = reference_forward(x, params)
    assert bool(jnp.max(jnp.abs(out - ref)) < 5e-2)

    # Batched path: multiple grid steps (B=128) + padding of the last tile.
    x2 = jax.random.normal(k_x2, (300, 1, 28, 28), jnp.float32)
    out2 = jax.block_until_ready(forward(x2, kparams))
    assert out2.shape == (300, 10)
    ref2 = reference_forward(x2, params)
    assert bool(jnp.max(jnp.abs(out2 - ref2)) < 5e-2)

    print("KERNEL_OK")
</pallas_src>

<mosaic_0001>
module attributes {stable_mosaic.version = 11 : i64} {
  func.func @_lenet_kernel(%arg0: i32, %arg1: memref<8x784xf32, #tpu.memory_space<vmem>>, %arg2: memref<224x576xbf16, #tpu.memory_space<vmem>>, %arg3: memref<282x144xbf16, #tpu.memory_space<vmem>>, %arg4: memref<576x512xbf16, #tpu.memory_space<vmem>>, %arg5: memref<240x128xbf16, #tpu.memory_space<vmem>>, %arg6: memref<256x120xbf16, #tpu.memory_space<vmem>>, %arg7: memref<120x84xbf16, #tpu.memory_space<vmem>>, %arg8: memref<84x10xbf16, #tpu.memory_space<vmem>>, %arg9: memref<8x144xf32, #tpu.memory_space<vmem>>, %arg10: memref<8x10xf32, #tpu.memory_space<vmem>>) attributes {dimension_semantics = [#tpu.dimension_semantics<parallel>], iteration_bounds = array<i64: 1>, scalar_prefetch = 0 : i64, scratch_operands = 0 : i64, tpu.core_type = #tpu.core_type<tc>, window_params = [{transform_indices = @transform_0, window_bounds = array<i64: 8, 784>}, {pipeline_mode = #tpu.pipeline_mode<synchronous>, transform_indices = @transform_1, window_bounds = array<i64: 224, 576>}, {pipeline_mode = #tpu.pipeline_mode<synchronous>, transform_indices = @transform_2, window_bounds = array<i64: 282, 144>}, {pipeline_mode = #tpu.pipeline_mode<synchronous>, transform_indices = @transform_3, window_bounds = array<i64: 576, 512>}, {pipeline_mode = #tpu.pipeline_mode<synchronous>, transform_indices = @transform_4, window_bounds = array<i64: 240, 128>}, {pipeline_mode = #tpu.pipeline_mode<synchronous>, transform_indices = @transform_5, window_bounds = array<i64: 256, 120>}, {pipeline_mode = #tpu.pipeline_mode<synchronous>, transform_indices = @transform_6, window_bounds = array<i64: 120, 84>}, {pipeline_mode = #tpu.pipeline_mode<synchronous>, transform_indices = @transform_7, window_bounds = array<i64: 84, 10>}, {pipeline_mode = #tpu.pipeline_mode<synchronous>, transform_indices = @transform_8, window_bounds = array<i64: 8, 144>}, {transform_indices = @transform_9, window_bounds = array<i64: 8, 10>}]} {
    %c0 = arith.constant 0 : index
    %c0_0 = arith.constant 0 : index
    %0 = vector.load %arg1[%c0, %c0_0] : memref<8x784xf32, #tpu.memory_space<vmem>>, vector<8x784xf32>
    %1 = arith.truncf %0 : vector<8x784xf32> to vector<8x784xbf16>
    %c0_1 = arith.constant 0 : index
    %c0_2 = arith.constant 0 : index
    %2 = vector.load %arg9[%c0_1, %c0_2] : memref<8x144xf32, #tpu.memory_space<vmem>>, vector<8x144xf32>
    %3 = vector.extract_strided_slice %2 {offsets = [0, 0], sizes = [1, 144], strides = [1, 1]} : vector<8x144xf32> to vector<1x144xf32>
    %4 = vector.extract_strided_slice %2 {offsets = [1, 0], sizes = [1, 128], strides = [1, 1]} : vector<8x144xf32> to vector<1x128xf32>
    %5 = vector.extract_strided_slice %2 {offsets = [2, 0], sizes = [1, 120], strides = [1, 1]} : vector<8x144xf32> to vector<1x120xf32>
    %6 = vector.extract_strided_slice %2 {offsets = [3, 0], sizes = [1, 84], strides = [1, 1]} : vector<8x144xf32> to vector<1x84xf32>
    %7 = vector.extract_strided_slice %2 {offsets = [4, 0], sizes = [1, 10], strides = [1, 1]} : vector<8x144xf32> to vector<1x10xf32>
    %c0_3 = arith.constant 0 : index
    %c0_4 = arith.constant 0 : index
    %8 = vector.load %arg2[%c0_3, %c0_4] : memref<224x576xbf16, #tpu.memory_space<vmem>>, vector<224x576xbf16>
    %c0_5 = arith.constant 0 : index
    %c0_6 = arith.constant 0 : index
    %9 = vector.load %arg3[%c0_5, %c0_6] : memref<282x144xbf16, #tpu.memory_space<vmem>>, vector<282x144xbf16>
    %c0_7 = arith.constant 0 : index
    %c0_8 = arith.constant 0 : index
    %10 = vector.load %arg4[%c0_7, %c0_8] : memref<576x512xbf16, #tpu.memory_space<vmem>>, vector<576x512xbf16>
    %c0_9 = arith.constant 0 : index
    %c0_10 = arith.constant 0 : index
    %11 = vector.load %arg5[%c0_9, %c0_10] : memref<240x128xbf16, #tpu.memory_space<vmem>>, vector<240x128xbf16>
    %12 = vector.extract_strided_slice %1 {offsets = [0, 0], sizes = [8, 224], strides = [1, 1]} : vector<8x784xbf16> to vector<8x224xbf16>
    %cst = arith.constant dense<0.000000e+00> : vector<8x576xf32>
    %13 = tpu.matmul %12, %8, %cst {dimension_numbers = #tpu.dot_dimension_numbers<[1], [0], [0], [1], [0, 0, 1, 1], [], []>} : vector<8x224xbf16>, vector<224x576xbf16>, vector<8x576xf32> -> vector<8x576xf32>
    %14 = vector.extract_strided_slice %13 {offsets = [0, 0], sizes = [8, 288], strides = [1, 1]} : vector<8x576xf32> to vector<8x288xf32>
    %15 = vector.extract_strided_slice %13 {offsets = [0, 288], sizes = [8, 288], strides = [1, 1]} : vector<8x576xf32> to vector<8x288xf32>
    %16 = arith.maximumf %14, %15 : vector<8x288xf32>
    %17 = vector.extract_strided_slice %16 {offsets = [0, 0], sizes = [8, 282], strides = [1, 1]} : vector<8x288xf32> to vector<8x282xf32>
    %18 = vector.extract_strided_slice %16 {offsets = [0, 6], sizes = [8, 282], strides = [1, 1]} : vector<8x288xf32> to vector<8x282xf32>
    %19 = arith.maximumf %17, %18 : vector<8x282xf32>
    %20 = arith.truncf %19 : vector<8x282xf32> to vector<8x282xbf16>
    %cst_11 = arith.constant dense<0.000000e+00> : vector<8x144xf32>
    %21 = tpu.matmul %20, %9, %cst_11 {dimension_numbers = #tpu.dot_dimension_numbers<[1], [0], [0], [1], [0, 0, 1, 1], [], []>} : vector<8x282xbf16>, vector<282x144xbf16>, vector<8x144xf32> -> vector<8x144xf32>
    %22 = vector.broadcast %3 : vector<1x144xf32> to vector<8x144xf32>
    %23 = arith.addf %21, %22 : vector<8x144xf32>
    %cst_12 = arith.constant 0.000000e+00 : f32
    %24 = vector.broadcast %cst_12 : f32 to vector<8x144xf32>
    %25 = arith.maximumf %23, %24 : vector<8x144xf32>
    %26 = vector.extract_strided_slice %1 {offsets = [0, 112], sizes = [8, 224], strides = [1, 1]} : vector<8x784xbf16> to vector<8x224xbf16>
    %cst_13 = arith.constant dense<0.000000e+00> : vector<8x576xf32>
    %27 = tpu.matmul %26, %8, %cst_13 {dimension_numbers = #tpu.dot_dimension_numbers<[1], [0], [0], [1], [0, 0, 1, 1], [], []>} : vector<8x224xbf16>, vector<224x576xbf16>, vector<8x576xf32> -> vector<8x576xf32>
    %28 = vector.extract_strided_slice %27 {offsets = [0, 0], sizes = [8, 288], strides = [1, 1]} : vector<8x576xf32> to vector<8x288xf32>
    %29 = vector.extract_strided_slice %27 {offsets = [0, 288], sizes = [8, 288], strides = [1, 1]} : vector<8x576xf32> to vector<8x288xf32>
    %30 = arith.maximumf %28, %29 : vector<8x288xf32>
    %31 = vector.extract_strided_slice %30 {offsets = [0, 0], sizes = [8, 282], strides = [1, 1]} : vector<8x288xf32> to vector<8x282xf32>
    %32 = vector.extract_strided_slice %30 {offsets = [0, 6], sizes = [8, 282], strides = [1, 1]} : vector<8x288xf32> to vector<8x282xf32>
    %33 = arith.maximumf %31, %32 : vector<8x282xf32>
    %34 = arith.truncf %33 : vector<8x282xf32> to vector<8x282xbf16>
    %cst_14 = arith.constant dense<0.000000e+00> : vector<8x144xf32>
    %35 = tpu.matmul %34, %9, %cst_14 {dimension_numbers = #tpu.dot_dimension_numbers<[1], [0], [0], [1], [0, 0, 1, 1], [], []>} : vector<8x282xbf16>, vector<282x144xbf16>, vector<8x144xf32> -> vector<8x144xf32>
    %36 = vector.broadcast %3 : vector<1x144xf32> to vector<8x144xf32>
    %37 = arith.addf %35, %36 : vector<8x144xf32>
    %cst_15 = arith.constant 0.000000e+00 : f32
    %38 = vector.broadcast %cst_15 : f32 to vector<8x144xf32>
    %39 = arith.maximumf %37, %38 : vector<8x144xf32>
    %40 = vector.extract_strided_slice %1 {offsets = [0, 224], sizes = [8, 224], strides = [1, 1]} : vector<8x784xbf16> to vector<8x224xbf16>
    %cst_16 = arith.constant dense<0.000000e+00> : vector<8x576xf32>
    %41 = tpu.matmul %40, %8, %cst_16 {dimension_numbers = #tpu.dot_dimension_numbers<[1], [0], [0], [1], [0, 0, 1, 1], [], []>} : vector<8x224xbf16>, vector<224x576xbf16>, vector<8x576xf32> -> vector<8x576xf32>
    %42 = vector.extract_strided_slice %41 {offsets = [0, 0], sizes = [8, 288], strides = [1, 1]} : vector<8x576xf32> to vector<8x288xf32>
    %43 = vector.extract_strided_slice %41 {offsets = [0, 288], sizes = [8, 288], strides = [1, 1]} : vector<8x576xf32> to vector<8x288xf32>
    %44 = arith.maximumf %42, %43 : vector<8x288xf32>
    %45 = vector.extract_strided_slice %44 {offsets = [0, 0], sizes = [8, 282], strides = [1, 1]} : vector<8x288xf32> to vector<8x282xf32>
    %46 = vector.extract_strided_slice %44 {offsets = [0, 6], sizes = [8, 282], strides = [1, 1]} : vector<8x288xf32> to vector<8x282xf32>
    %47 = arith.maximumf %45, %46 : vector<8x282xf32>
    %48 = arith.truncf %47 : vector<8x282xf32> to vector<8x282xbf16>
    %cst_17 = arith.constant dense<0.000000e+00> : vector<8x144xf32>
    %49 = tpu.matmul %48, %9, %cst_17 {dimension_numbers = #tpu.dot_dimension_numbers<[1], [0], [0], [1], [0, 0, 1, 1], [], []>} : vector<8x282xbf16>, vector<282x144xbf16>, vector<8x144xf32> -> vector<8x144xf32>
    %50 = vector.broadcast %3 : vector<1x144xf32> to vector<8x144xf32>
    %51 = arith.addf %49, %50 : vector<8x144xf32>
    %cst_18 = arith.constant 0.000000e+00 : f32
    %52 = vector.broadcast %cst_18 : f32 to vector<8x144xf32>
    %53 = arith.maximumf %51, %52 : vector<8x144xf32>
    %54 = vector.extract_strided_slice %1 {offsets = [0, 336], sizes = [8, 224], strides = [1, 1]} : vector<8x784xbf16> to vector<8x224xbf16>
    %cst_19 = arith.constant dense<0.000000e+00> : vector<8x576xf32>
    %55 = tpu.matmul %54, %8, %cst_19 {dimension_numbers = #tpu.dot_dimension_numbers<[1], [0], [0], [1], [0, 0, 1, 1], [], []>} : vector<8x224xbf16>, vector<224x576xbf16>, vector<8x576xf32> -> vector<8x576xf32>
    %56 = vector.extract_strided_slice %55 {offsets = [0, 0], sizes = [8, 288], strides = [1, 1]} : vector<8x576xf32> to vector<8x288xf32>
    %57 = vector.extract_strided_slice %55 {offsets = [0, 288], sizes = [8, 288], strides = [1, 1]} : vector<8x576xf32> to vector<8x288xf32>
    %58 = arith.maximumf %56, %57 : vector<8x288xf32>
    %59 = vector.extract_strided_slice %58 {offsets = [0, 0], sizes = [8, 282], strides = [1, 1]} : vector<8x288xf32> to vector<8x282xf32>
    %60 = vector.extract_strided_slice %58 {offsets = [0, 6], sizes = [8, 282], strides = [1, 1]} : vector<8x288xf32> to vector<8x282xf32>
    %61 = arith.maximumf %59, %60 : vector<8x282xf32>
    %62 = arith.truncf %61 : vector<8x282xf32> to vector<8x282xbf16>
    %cst_20 = arith.constant dense<0.000000e+00> : vector<8x144xf32>
    %63 = tpu.matmul %62, %9, %cst_20 {dimension_numbers = #tpu.dot_dimension_numbers<[1], [0], [0], [1], [0, 0, 1, 1], [], []>} : vector<8x282xbf16>, vector<282x144xbf16>, vector<8x144xf32> -> vector<8x144xf32>
    %64 = vector.broadcast %3 : vector<1x144xf32> to vector<8x144xf32>
    %65 = arith.addf %63, %64 : vector<8x144xf32>
    %cst_21 = arith.constant 0.000000e+00 : f32
    %66 = vector.broadcast %cst_21 : f32 to vector<8x144xf32>
    %67 = arith.maximumf %65, %66 : vector<8x144xf32>
    %68 = vector.extract_strided_slice %1 {offsets = [0, 448], sizes = [8, 224], strides = [1, 1]} : vector<8x784xbf16> to vector<8x224xbf16>
    %cst_22 = arith.constant dense<0.000000e+00> : vector<8x576xf32>
    %69 = tpu.matmul %68, %8, %cst_22 {dimension_numbers = #tpu.dot_dimension_numbers<[1], [0], [0], [1], [0, 0, 1, 1], [], []>} : vector<8x224xbf16>, vector<224x576xbf16>, vector<8x576xf32> -> vector<8x576xf32>
    %70 = vector.extract_strided_slice %69 {offsets = [0, 0], sizes = [8, 288], strides = [1, 1]} : vector<8x576xf32> to vector<8x288xf32>
    %71 = vector.extract_strided_slice %69 {offsets = [0, 288], sizes = [8, 288], strides = [1, 1]} : vector<8x576xf32> to vector<8x288xf32>
    %72 = arith.maximumf %70, %71 : vector<8x288xf32>
    %73 = vector.extract_strided_slice %72 {offsets = [0, 0], sizes = [8, 282], strides = [1, 1]} : vector<8x288xf32> to vector<8x282xf32>
    %74 = vector.extract_strided_slice %72 {offsets = [0, 6], sizes = [8, 282], strides = [1, 1]} : vector<8x288xf32> to vector<8x282xf32>
    %75 = arith.maximumf %73, %74 : vector<8x282xf32>
    %76 = arith.truncf %75 : vector<8x282xf32> to vector<8x282xbf16>
    %cst_23 = arith.constant dense<0.000000e+00> : vector<8x144xf32>
    %77 = tpu.matmul %76, %9, %cst_23 {dimension_numbers = #tpu.dot_dimension_numbers<[1], [0], [0], [1], [0, 0, 1, 1], [], []>} : vector<8x282xbf16>, vector<282x144xbf16>, vector<8x144xf32> -> vector<8x144xf32>
    %78 = vector.broadcast %3 : vector<1x144xf32> to vector<8x144xf32>
    %79 = arith.addf %77, %78 : vector<8x144xf32>
    %cst_24 = arith.constant 0.000000e+00 : f32
    %80 = vector.broadcast %cst_24 : f32 to vector<8x144xf32>
    %81 = arith.maximumf %79, %80 : vector<8x144xf32>
    %82 = vector.extract_strided_slice %1 {offsets = [0, 560], sizes = [8, 224], strides = [1, 1]} : vector<8x784xbf16> to vector<8x224xbf16>
    %cst_25 = arith.constant dense<0.000000e+00> : vector<8x576xf32>
    %83 = tpu.matmul %82, %8, %cst_25 {dimension_numbers = #tpu.dot_dimension_numbers<[1], [0], [0], [1], [0, 0, 1, 1], [], []>} : vector<8x224xbf16>, vector<224x576xbf16>, vector<8x576xf32> -> vector<8x576xf32>
    %84 = vector.extract_strided_slice %83 {offsets = [0, 0], sizes = [8, 288], strides = [1, 1]} : vector<8x576xf32> to vector<8x288xf32>
    %85 = vector.extract_strided_slice %83 {offsets = [0, 288], sizes = [8, 288], strides = [1, 1]} : vector<8x576xf32> to vector<8x288xf32>
    %86 = arith.maximumf %84, %85 : vector<8x288xf32>
    %87 = vector.extract_strided_slice %86 {offsets = [0, 0], sizes = [8, 282], strides = [1, 1]} : vector<8x288xf32> to vector<8x282xf32>
    %88 = vector.extract_strided_slice %86 {offsets = [0, 6], sizes = [8, 282], strides = [1, 1]} : vector<8x288xf32> to vector<8x282xf32>
    %89 = arith.maximumf %87, %88 : vector<8x282xf32>
    %90 = arith.truncf %89 : vector<8x282xf32> to vector<8x282xbf16>
    %cst_26 = arith.constant dense<0.000000e+00> : vector<8x144xf32>
    %91 = tpu.matmul %90, %9, %cst_26 {dimension_numbers = #tpu.dot_dimension_numbers<[1], [0], [0], [1], [0, 0, 1, 1], [], []>} : vector<8x282xbf16>, vector<282x144xbf16>, vector<8x144xf32> -> vector<8x144xf32>
    %92 = vector.broadcast %3 : vector<1x144xf32> to vector<8x144xf32>
    %93 = arith.addf %91, %92 : vector<8x144xf32>
    %cst_27 = arith.constant 0.000000e+00 : f32
    %94 = vector.broadcast %cst_27 : f32 to vector<8x144xf32>
    %95 = arith.maximumf %93, %94 : vector<8x144xf32>
    %96 = tpu.concatenate %25, %39, %53, %67 in 1 : vector<8x144xf32>, vector<8x144xf32>, vector<8x144xf32>, vector<8x144xf32> -> vector<8x576xf32>
    %97 = arith.truncf %96 : vector<8x576xf32> to vector<8x576xbf16>
    %cst_28 = arith.constant dense<0.000000e+00> : vector<8x512xf32>
    %98 = tpu.matmul %97, %10, %cst_28 {dimension_numbers = #tpu.dot_dimension_numbers<[1], [0], [0], [1], [0, 0, 1, 1], [], []>} : vector<8x576xbf16>, vector<576x512xbf16>, vector<8x512xf32> -> vector<8x512xf32>
    %99 = vector.extract_strided_slice %98 {offsets = [0, 0], sizes = [8, 256], strides = [1, 1]} : vector<8x512xf32> to vector<8x256xf32>
    %100 = vector.extract_strided_slice %98 {offsets = [0, 256], sizes = [8, 256], strides = [1, 1]} : vector<8x512xf32> to vector<8x256xf32>
    %101 = arith.maximumf %99, %100 : vector<8x256xf32>
    %102 = vector.extract_strided_slice %101 {offsets = [0, 0], sizes = [8, 240], strides = [1, 1]} : vector<8x256xf32> to vector<8x240xf32>
    %103 = vector.extract_strided_slice %101 {offsets = [0, 16], sizes = [8, 240], strides = [1, 1]} : vector<8x256xf32> to vector<8x240xf32>
    %104 = arith.maximumf %102, %103 : vector<8x240xf32>
    %105 = arith.truncf %104 : vector<8x240xf32> to vector<8x240xbf16>
    %cst_29 = arith.constant dense<0.000000e+00> : vector<8x128xf32>
    %106 = tpu.matmul %105, %11, %cst_29 {dimension_numbers = #tpu.dot_dimension_numbers<[1], [0], [0], [1], [0, 0, 1, 1], [], []>} : vector<8x240xbf16>, vector<240x128xbf16>, vector<8x128xf32> -> vector<8x128xf32>
    %107 = vector.broadcast %4 : vector<1x128xf32> to vector<8x128xf32>
    %108 = arith.addf %106, %107 : vector<8x128xf32>
    %cst_30 = arith.constant 0.000000e+00 : f32
    %109 = vector.broadcast %cst_30 : f32 to vector<8x128xf32>
    %110 = arith.maximumf %108, %109 : vector<8x128xf32>
    %111 = tpu.concatenate %53, %67, %81, %95 in 1 : vector<8x144xf32>, vector<8x144xf32>, vector<8x144xf32>, vector<8x144xf32> -> vector<8x576xf32>
    %112 = arith.truncf %111 : vector<8x576xf32> to vector<8x576xbf16>
    %cst_31 = arith.constant dense<0.000000e+00> : vector<8x512xf32>
    %113 = tpu.matmul %112, %10, %cst_31 {dimension_numbers = #tpu.dot_dimension_numbers<[1], [0], [0], [1], [0, 0, 1, 1], [], []>} : vector<8x576xbf16>, vector<576x512xbf16>, vector<8x512xf32> -> vector<8x512xf32>
    %114 = vector.extract_strided_slice %113 {offsets = [0, 0], sizes = [8, 256], strides = [1, 1]} : vector<8x512xf32> to vector<8x256xf32>
    %115 = vector.extract_strided_slice %113 {offsets = [0, 256], sizes = [8, 256], strides = [1, 1]} : vector<8x512xf32> to vector<8x256xf32>
    %116 = arith.maximumf %114, %115 : vector<8x256xf32>
    %117 = vector.extract_strided_slice %116 {offsets = [0, 0], sizes = [8, 240], strides = [1, 1]} : vector<8x256xf32> to vector<8x240xf32>
    %118 = vector.extract_strided_slice %116 {offsets = [0, 16], sizes = [8, 240], strides = [1, 1]} : vector<8x256xf32> to vector<8x240xf32>
    %119 = arith.maximumf %117, %118 : vector<8x240xf32>
    %120 = arith.truncf %119 : vector<8x240xf32> to vector<8x240xbf16>
    %cst_32 = arith.constant dense<0.000000e+00> : vector<8x128xf32>
    %121 = tpu.matmul %120, %11, %cst_32 {dimension_numbers = #tpu.dot_dimension_numbers<[1], [0], [0], [1], [0, 0, 1, 1], [], []>} : vector<8x240xbf16>, vector<240x128xbf16>, vector<8x128xf32> -> vector<8x128xf32>
    %122 = vector.broadcast %4 : vector<1x128xf32> to vector<8x128xf32>
    %123 = arith.addf %121, %122 : vector<8x128xf32>
    %cst_33 = arith.constant 0.000000e+00 : f32
    %124 = vector.broadcast %cst_33 : f32 to vector<8x128xf32>
    %125 = arith.maximumf %123, %124 : vector<8x128xf32>
    %126 = tpu.concatenate %110, %125 in 1 : vector<8x128xf32>, vector<8x128xf32> -> vector<8x256xf32>
    %127 = arith.truncf %126 : vector<8x256xf32> to vector<8x256xbf16>
    %c0_34 = arith.constant 0 : index
    %c0_35 = arith.constant 0 : index
    %128 = vector.load %arg6[%c0_34, %c0_35] : memref<256x120xbf16, #tpu.memory_space<vmem>>, vector<256x120xbf16>
    %cst_36 = arith.constant dense<0.000000e+00> : vector<8x120xf32>
    %129 = tpu.matmul %127, %128, %cst_36 {dimension_numbers = #tpu.dot_dimension_numbers<[1], [0], [0], [1], [0, 0, 1, 1], [], []>} : vector<8x256xbf16>, vector<256x120xbf16>, vector<8x120xf32> -> vector<8x120xf32>
    %130 = vector.broadcast %5 : vector<1x120xf32> to vector<8x120xf32>
    %131 = arith.addf %129, %130 : vector<8x120xf32>
    %cst_37 = arith.constant 0.000000e+00 : f32
    %132 = vector.broadcast %cst_37 : f32 to vector<8x120xf32>
    %133 = arith.maximumf %131, %132 : vector<8x120xf32>
    %134 = arith.truncf %133 : vector<8x120xf32> to vector<8x120xbf16>
    %c0_38 = arith.constant 0 : index
    %c0_39 = arith.constant 0 : index
    %135 = vector.load %arg7[%c0_38, %c0_39] : memref<120x84xbf16, #tpu.memory_space<vmem>>, vector<120x84xbf16>
    %cst_40 = arith.constant dense<0.000000e+00> : vector<8x84xf32>
    %136 = tpu.matmul %134, %135, %cst_40 {dimension_numbers = #tpu.dot_dimension_numbers<[1], [0], [0], [1], [0, 0, 1, 1], [], []>} : vector<8x120xbf16>, vector<120x84xbf16>, vector<8x84xf32> -> vector<8x84xf32>
    %137 = vector.broadcast %6 : vector<1x84xf32> to vector<8x84xf32>
    %138 = arith.addf %136, %137 : vector<8x84xf32>
    %cst_41 = arith.constant 0.000000e+00 : f32
    %139 = vector.broadcast %cst_41 : f32 to vector<8x84xf32>
    %140 = arith.maximumf %138, %139 : vector<8x84xf32>
    %141 = arith.truncf %140 : vector<8x84xf32> to vector<8x84xbf16>
    %c0_42 = arith.constant 0 : index
    %c0_43 = arith.constant 0 : index
    %142 = vector.load %arg8[%c0_42, %c0_43] : memref<84x10xbf16, #tpu.memory_space<vmem>>, vector<84x10xbf16>
    %cst_44 = arith.constant dense<0.000000e+00> : vector<8x10xf32>
    %143 = tpu.matmul %141, %142, %cst_44 {dimension_numbers = #tpu.dot_dimension_numbers<[1], [0], [0], [1], [0, 0, 1, 1], [], []>} : vector<8x84xbf16>, vector<84x10xbf16>, vector<8x10xf32> -> vector<8x10xf32>
    %144 = vector.broadcast %7 : vector<1x10xf32> to vector<8x10xf32>
    %145 = arith.addf %143, %144 : vector<8x10xf32>
    %cst_45 = arith.constant dense<0xFF800000> : vector<8xf32>
    %146 = vector.multi_reduction <maximumf>, %145, %cst_45 [1] : vector<8x10xf32> to vector<8xf32>
    %147 = vector.shape_cast %146 : vector<8xf32> to vector<8x1xf32>
    %148 = vector.broadcast %147 : vector<8x1xf32> to vector<8x10xf32>
    %149 = arith.subf %145, %148 : vector<8x10xf32>
    %150 = math.exp %149 : vector<8x10xf32>
    %cst_46 = arith.constant dense<0.000000e+00> : vector<8xf32>
    %151 = vector.multi_reduction <add>, %150, %cst_46 [1] : vector<8x10xf32> to vector<8xf32>
    %152 = vector.shape_cast %151 : vector<8xf32> to vector<8x1xf32>
    %153 = vector.broadcast %152 : vector<8x1xf32> to vector<8x10xf32>
    %154 = arith.divf %150, %153 : vector<8x10xf32>
    %c0_47 = arith.constant 0 : index
    %c0_48 = arith.constant 0 : index
    %155 = vector.load %arg10[%c0_47, %c0_48] : memref<8x10xf32, #tpu.memory_space<vmem>>, vector<8x10xf32>
    tpu.vector_store %arg10[%c0_47, %c0_48], %154 {strides = array<i32>} : memref<8x10xf32, #tpu.memory_space<vmem>>, vector<8x10xf32>,
    return
  }
  func.func @transform_0(%arg0: i32) -> (i32, i32) {
    %c0_i32 = arith.constant 0 : i32
    %c0_i32_0 = arith.constant 0 : i32
    return %arg0, %c0_i32 : i32, i32
  }
  func.func @transform_1(%arg0: i32) -> (i32, i32) {
    %c0_i32 = arith.constant 0 : i32
    %c0_i32_0 = arith.constant 0 : i32
    %c0_i32_1 = arith.constant 0 : i32
    return %c0_i32, %c0_i32_0 : i32, i32
  }
  func.func @transform_2(%arg0: i32) -> (i32, i32) {
    %c0_i32 = arith.constant 0 : i32
    %c0_i32_0 = arith.constant 0 : i32
    %c0_i32_1 = arith.constant 0 : i32
    return %c0_i32, %c0_i32_0 : i32, i32
  }
  func.func @transform_3(%arg0: i32) -> (i32, i32) {
    %c0_i32 = arith.constant 0 : i32
    %c0_i32_0 = arith.constant 0 : i32
    %c0_i32_1 = arith.constant 0 : i32
    return %c0_i32, %c0_i32_0 : i32, i32
  }
  func.func @transform_4(%arg0: i32) -> (i32, i32) {
    %c0_i32 = arith.constant 0 : i32
    %c0_i32_0 = arith.constant 0 : i32
    %c0_i32_1 = arith.constant 0 : i32
    return %c0_i32, %c0_i32_0 : i32, i32
  }
  func.func @transform_5(%arg0: i32) -> (i32, i32) {
    %c0_i32 = arith.constant 0 : i32
    %c0_i32_0 = arith.constant 0 : i32
    %c0_i32_1 = arith.constant 0 : i32
    return %c0_i32, %c0_i32_0 : i32, i32
  }
  func.func @transform_6(%arg0: i32) -> (i32, i32) {
    %c0_i32 = arith.constant 0 : i32
    %c0_i32_0 = arith.constant 0 : i32
    %c0_i32_1 = arith.constant 0 : i32
    return %c0_i32, %c0_i32_0 : i32, i32
  }
  func.func @transform_7(%arg0: i32) -> (i32, i32) {
    %c0_i32 = arith.constant 0 : i32
    %c0_i32_0 = arith.constant 0 : i32
    %c0_i32_1 = arith.constant 0 : i32
    return %c0_i32, %c0_i32_0 : i32, i32
  }
  func.func @transform_8(%arg0: i32) -> (i32, i32) {
    %c0_i32 = arith.constant 0 : i32
    %c0_i32_0 = arith.constant 0 : i32
    %c0_i32_1 = arith.constant 0 : i32
    return %c0_i32, %c0_i32_0 : i32, i32
  }
  func.func @transform_9(%arg0: i32) -> (i32, i32) {
    %c0_i32 = arith.constant 0 : i32
    %c0_i32_0 = arith.constant 0 : i32
    return %arg0, %c0_i32 : i32, i32
  }
}

</mosaic_0001>

<llo_original>
// kernel: _forward.1
$region0: #{_forward.1}
  #allocation0 [shape = 'u32[]', space=smem, size = 0x4, offset = 0x4, fixed_abs, tag = 'smem constant byte address 0x4 - core index']
  #allocation1 [shape = 'u32[144,128]{1,0:T(1,128)}', space=vmem, size = 0x12000, scoped, tag = 'internal scratch']
  %s0 = inlined_call_operand.vmem [shape: f32[8,784], index: 0, kind: input, shape index: {}]
  %s1 = inlined_call_operand.hbm [shape: bf16[224,576], index: 1, kind: input, shape index: {}]
  %s2 = inlined_call_operand.vmem [shape: bf16[282,144], index: 2, kind: input, shape index: {}]
  %s3 = inlined_call_operand.vmem [shape: bf16[576,512], index: 3, kind: input, shape index: {}]
  %s4 = inlined_call_operand.hbm [shape: bf16[240,128], index: 4, kind: input, shape index: {}]
  %s5 = inlined_call_operand.vmem [shape: bf16[256,120], index: 5, kind: input, shape index: {}]
  %s6 = inlined_call_operand.vmem [shape: bf16[120,84], index: 6, kind: input, shape index: {}]
  %s7 = inlined_call_operand.vmem [shape: bf16[84,10], index: 7, kind: input, shape index: {}]
  %s8 = inlined_call_operand.hbm [shape: f32[8,144], index: 8, kind: input, shape index: {}]
  %s9 = inlined_call_operand.vmem [shape: f32[8,10], index: 9, kind: output, shape index: {}]
  %s10 = sld [smem:[#allocation0]]
  $region58: #{_forward.1} parent=0
    _
  %s12 = ssub.s32 1, %s10
  %s13 = scalar_select 0, %s12, %s10
  $region1: #{_forward.1} parent=0
    #allocation2 [shape = 'u8[286720]{0}', space=vmem, size = 0x46000, scoped, tag = 'input window, operand 1, single buffered']
    #allocation3 [shape = 's32[1]{0}', space=sflag, size = 0x4, scoped, tag = 'scoped memory for _forward.1']
    #allocation4 [shape = 'u8[61440]{0}', space=vmem, size = 0xf000, scoped, tag = 'input window, operand 4, single buffered']
    #allocation5 [shape = 's32[1]{0}', space=sflag, size = 0x4, scoped, tag = 'scoped memory for _forward.1']
    #allocation6 [shape = 'u8[8192]{0}', space=vmem, size = 0x2000, scoped, tag = 'input window, operand 8, single buffered']
    %14 = vsyncpa [#allocation3], 0
    %15 = vsyncpa [#allocation5], 0
    // Predicated region
    $region2: #{_forward.1} parent=1 // pred_check
      _
    $region3: #{_forward.1} parent=1 // pred_check_branch
      %17 = sbr.rel (0) target = $region5
    $region4: #{_forward.1} parent=1 // pred_region
      _
    $region5: #{_forward.1} parent=1 // pred_fallthru
      _
    // Predicated region
    $region6: #{_forward.1} parent=1 // pred_check
      _
    $region7: #{_forward.1} parent=1 // pred_check_branch
      %19 = sbr.rel (0) target = $region9
    $region8: #{_forward.1} parent=1 // pred_region
      %s21 = ssub.s32 8960, 8960
      %22 = vsyncadd [#allocation3], %s21
      %s23 = sshll.u32 [#allocation2], 4
      %s24 = int_to_ptr.vmem [resolvable:$true] %s23
      %29 = dma.hbm_to_vmem [thread:$0]  %s1, 8960, %s24, [#allocation3], 320, 320, 20
    $region9: #{_forward.1} parent=1 // pred_fallthru
      _
    // Predicated region
    $region10: #{_forward.1} parent=1 // pred_check
      _
    $region11: #{_forward.1} parent=1 // pred_check_branch
      %31 = sbr.rel (0) target = $region13
    $region12: #{_forward.1} parent=1 // pred_region
      _
    $region13: #{_forward.1} parent=1 // pred_fallthru
      _
    // Predicated region
    $region14: #{_forward.1} parent=1 // pred_check
      _
    $region15: #{_forward.1} parent=1 // pred_check_branch
      %33 = sbr.rel (0) target = $region17
    $region16: #{_forward.1} parent=1 // pred_region
      _
    $region17: #{_forward.1} parent=1 // pred_fallthru
      _
    // Predicated region
    $region18: #{_forward.1} parent=1 // pred_check
      _
    $region19: #{_forward.1} parent=1 // pred_check_branch
      %35 = sbr.rel (0) target = $region21
    $region20: #{_forward.1} parent=1 // pred_region
      %s37 = ssub.s32 1920, 1920
      %38 = vsyncadd [#allocation5], %s37
      %s39 = sshll.u32 [#allocation4], 4
      %s40 = int_to_ptr.vmem [resolvable:$true] %s39
      %45 = dma.hbm_to_vmem [thread:$0]  %s4, 1920, %s40, [#allocation5], 64, 64, 4
    $region21: #{_forward.1} parent=1 // pred_fallthru
      _
    // Predicated region
    $region22: #{_forward.1} parent=1 // pred_check
      _
    $region23: #{_forward.1} parent=1 // pred_check_branch
      %47 = sbr.rel (0) target = $region25
    $region24: #{_forward.1} parent=1 // pred_region
      _
    $region25: #{_forward.1} parent=1 // pred_fallthru
      _
    // Predicated region
    $region26: #{_forward.1} parent=1 // pred_check
      _
    $region27: #{_forward.1} parent=1 // pred_check_branch
      %49 = sbr.rel (0) target = $region29
    $region28: #{_forward.1} parent=1 // pred_region
      _
    $region29: #{_forward.1} parent=1 // pred_fallthru
      _
    // Predicated region
    $region30: #{_forward.1} parent=1 // pred_check
      _
    $region31: #{_forward.1} parent=1 // pred_check_branch
      %51 = sbr.rel (0) target = $region33
    $region32: #{_forward.1} parent=1 // pred_region
      _
    $region33: #{_forward.1} parent=1 // pred_fallthru
      _
    // Predicated region
    $region34: #{_forward.1} parent=1 // pred_check
      _
    $region35: #{_forward.1} parent=1 // pred_check_branch
      %53 = sbr.rel (0) target = $region37
    $region36: #{_forward.1} parent=1 // pred_region
      %s55 = ssub.s32 256, 256
      %56 = vsyncadd [#allocation5], %s55
      %s58 = sshll.u32 [#allocation6], 4
      %s59 = int_to_ptr.vmem [resolvable:$true] %s58
      %61 = dma.hbm_to_vmem [thread:$0]  %s8, 256, %s59, [#allocation5]
    $region37: #{_forward.1} parent=1 // pred_fallthru
      _
    // Predicated region
    $region38: #{_forward.1} parent=1 // pred_check
      _
    $region39: #{_forward.1} parent=1 // pred_check_branch
      %63 = sbr.rel (0) target = $region41
    $region40: #{_forward.1} parent=1 // pred_region
      %64 = dma.done [#allocation3], 8960
    $region41: #{_forward.1} parent=1 // pred_fallthru
      _
    // Predicated region
    $region42: #{_forward.1} parent=1 // pred_check
      _
    $region43: #{_forward.1} parent=1 // pred_check_branch
      %66 = sbr.rel (0) target = $region45
    $region44: #{_forward.1} parent=1 // pred_region
      %67 = dma.done [#allocation5], 1920
    $region45: #{_forward.1} parent=1 // pred_fallthru
      _
    // Predicated region
    $region46: #{_forward.1} parent=1 // pred_check
      _
    $region47: #{_forward.1} parent=1 // pred_check_branch
      %69 = sbr.rel (0) target = $region49
    $region48: #{_forward.1} parent=1 // pred_region
      %70 = dma.done [#allocation5], 256
    $region49: #{_forward.1} parent=1 // pred_fallthru
      _
    %v72 = vld [vmem:[%s0] sm:$0xff]
    %v73 = vld [vmem:[%s0 + $0x8] sm:$0xff]
    %v74 = vld [vmem:[%s0 + $0x10] sm:$0xff]
    %v75 = vld [vmem:[%s0 + $0x18] sm:$0xff]
    %v76 = vld [vmem:[%s0 + $0x20] sm:$0xff]
    %v77 = vld [vmem:[%s0 + $0x28] sm:$0xff]
    %v78 = vld [vmem:[%s0 + $0x30] sm:$0xff]
    %v79 = vpack.c.bf16 %v72, %v72
    %v80 = vpack.c.bf16 %v73, %v73
    %v81 = vpack.c.bf16 %v74, %v74
    %v82 = vpack.c.bf16 %v75, %v75
    %v83 = vpack.c.bf16 %v76, %v76
    %v84 = vpack.c.bf16 %v77, %v77
    %v85 = vpack.c.bf16 %v78, %v78
    %v86 = vld [vmem:[#allocation6] sm:$0xff]
    %v87 = vld [vmem:[#allocation6 + $0x8] sm:$0xff]
    %v88 = vld [vmem:[#allocation2] sm:$0xff]
    %v89 = vld [vmem:[#allocation2 + $0x8] sm:$0xff]
    %v90 = vld [vmem:[#allocation2 + $0x10] sm:$0xf]
    %v91 = vld [vmem:[#allocation2 + $0x14] sm:$0xff]
    %v92 = vld [vmem:[#allocation2 + $0x1c] sm:$0xff]
    %v93 = vld [vmem:[#allocation2 + $0x24] sm:$0xf]
    %v94 = vld [vmem:[#allocation2 + $0x28] sm:$0xff]
    %v95 = vld [vmem:[#allocation2 + $0x30] sm:$0xff]
    %v96 = vld [vmem:[#allocation2 + $0x38] sm:$0xf]
    %v97 = vld [vmem:[#allocation2 + $0x3c] sm:$0xff]
    %v98 = vld [vmem:[#allocation2 + $0x44] sm:$0xff]
    %v99 = vld [vmem:[#allocation2 + $0x4c] sm:$0xf]
    %v100 = vld [vmem:[#allocation2 + $0x50] sm:$0xff]
    %v101 = vld [vmem:[#allocation2 + $0x58] sm:$0xff]
    %v102 = vld [vmem:[#allocation2 + $0x60] sm:$0xf]
    %v103 = vld [vmem:[#allocation2 + $0x64] sm:$0xff]
    %v104 = vld [vmem:[#allocation2 + $0x6c] sm:$0xff]
    %v105 = vld [vmem:[#allocation2 + $0x74] sm:$0xf]
    %v106 = vld [vmem:[#allocation2 + $0x78] sm:$0xff]
    %v107 = vld [vmem:[#allocation2 + $0x80] sm:$0xff]
    %v108 = vld [vmem:[#allocation2 + $0x88] sm:$0xf]
    %v109 = vld [vmem:[#allocation2 + $0x8c] sm:$0xff]
    %v110 = vld [vmem:[#allocation2 + $0x94] sm:$0xff]
    %v111 = vld [vmem:[#allocation2 + $0x9c] sm:$0xf]
    %v112 = vld [vmem:[#allocation2 + $0xa0] sm:$0xff]
    %v113 = vld [vmem:[#allocation2 + $0xa8] sm:$0xff]
    %v114 = vld [vmem:[#allocation2 + $0xb0] sm:$0xf]
    %v115 = vld [vmem:[#allocation2 + $0xb4] sm:$0xff]
    %v116 = vld [vmem:[#allocation2 + $0xbc] sm:$0xff]
    %v117 = vld [vmem:[#allocation2 + $0xc4] sm:$0xf]
    %v118 = vld [vmem:[#allocation2 + $0xc8] sm:$0xff]
    %v119 = vld [vmem:[#allocation2 + $0xd0] sm:$0xff]
    %v120 = vld [vmem:[#allocation2 + $0xd8] sm:$0xf]
    %v121 = vld [vmem:[#allocation2 + $0xdc] sm:$0xff]
    %v122 = vld [vmem:[#allocation2 + $0xe4] sm:$0xff]
    %v123 = vld [vmem:[#allocation2 + $0xec] sm:$0xf]
    %v124 = vld [vmem:[#allocation2 + $0xf0] sm:$0xff]
    %v125 = vld [vmem:[#allocation2 + $0xf8] sm:$0xff]
    %v126 = vld [vmem:[#allocation2 + $0x100] sm:$0xf]
    %v127 = vld [vmem:[#allocation2 + $0x104] sm:$0xff]
    %v128 = vld [vmem:[#allocation2 + $0x10c] sm:$0xff]
    %v129 = vld [vmem:[#allocation2 + $0x114] sm:$0xf]
    %v130 = vld [vmem:[#allocation2 + $0x118] sm:$0xff]
    %v131 = vld [vmem:[#allocation2 + $0x120] sm:$0xff]
    %v132 = vld [vmem:[#allocation2 + $0x128] sm:$0xf]
    %v133 = vld [vmem:[#allocation2 + $0x12c] sm:$0xff]
    %v134 = vld [vmem:[#allocation2 + $0x134] sm:$0xff]
    %v135 = vld [vmem:[#allocation2 + $0x13c] sm:$0xf]
    %v136 = vld [vmem:[#allocation2 + $0x140] sm:$0xff]
    %v137 = vld [vmem:[#allocation2 + $0x148] sm:$0xff]
    %v138 = vld [vmem:[#allocation2 + $0x150] sm:$0xf]
    %v139 = vld [vmem:[#allocation2 + $0x154] sm:$0xff]
    %v140 = vld [vmem:[#allocation2 + $0x15c] sm:$0xff]
    %v141 = vld [vmem:[#allocation2 + $0x164] sm:$0xf]
    %v142 = vld [vmem:[#allocation2 + $0x168] sm:$0xff]
    %v143 = vld [vmem:[#allocation2 + $0x170] sm:$0xff]
    %v144 = vld [vmem:[#allocation2 + $0x178] sm:$0xf]
    %v145 = vld [vmem:[#allocation2 + $0x17c] sm:$0xff]
    %v146 = vld [vmem:[#allocation2 + $0x184] sm:$0xff]
    %v147 = vld [vmem:[#allocation2 + $0x18c] sm:$0xf]
    %v148 = vld [vmem:[#allocation2 + $0x190] sm:$0xff]
    %v149 = vld [vmem:[#allocation2 + $0x198] sm:$0xff]
    %v150 = vld [vmem:[#allocation2 + $0x1a0] sm:$0xf]
    %v151 = vld [vmem:[#allocation2 + $0x1a4] sm:$0xff]
    %v152 = vld [vmem:[#allocation2 + $0x1ac] sm:$0xff]
    %v153 = vld [vmem:[#allocation2 + $0x1b4] sm:$0xf]
    %v154 = vld [vmem:[#allocation2 + $0x1b8] sm:$0xff]
    %v155 = vld [vmem:[#allocation2 + $0x1c0] sm:$0xff]
    %v156 = vld [vmem:[#allocation2 + $0x1c8] sm:$0xf]
    %v157 = vld [vmem:[#allocation2 + $0x1cc] sm:$0xff]
    %v158 = vld [vmem:[#allocation2 + $0x1d4] sm:$0xff]
    %v159 = vld [vmem:[#allocation2 + $0x1dc] sm:$0xf]
    %v160 = vld [vmem:[#allocation2 + $0x1e0] sm:$0xff]
    %v161 = vld [vmem:[#allocation2 + $0x1e8] sm:$0xff]
    %v162 = vld [vmem:[#allocation2 + $0x1f0] sm:$0xf]
    %v163 = vld [vmem:[#allocation2 + $0x1f4] sm:$0xff]
    %v164 = vld [vmem:[#allocation2 + $0x1fc] sm:$0xff]
    %v165 = vld [vmem:[#allocation2 + $0x204] sm:$0xf]
    %v166 = vld [vmem:[#allocation2 + $0x208] sm:$0xff]
    %v167 = vld [vmem:[#allocation2 + $0x210] sm:$0xff]
    %v168 = vld [vmem:[#allocation2 + $0x218] sm:$0xf]
    %v169 = vld [vmem:[#allocation2 + $0x21c] sm:$0xff]
    %v170 = vld [vmem:[#allocation2 + $0x224] sm:$0xff]
    %v171 = vld [vmem:[#allocation2 + $0x22c] sm:$0xf]
    %v172 = vld [vmem:[%s2] sm:$0xff]
    %v173 = vld [vmem:[%s2 + $0x8] sm:$0xff]
    %v174 = vld [vmem:[%s2 + $0x10] sm:$0xff]
    %v175 = vld [vmem:[%s2 + $0x18] sm:$0xff]
    %v176 = vld [vmem:[%s2 + $0x20] sm:$0xff]
    %v177 = vld [vmem:[%s2 + $0x28] sm:$0xff]
    %v178 = vld [vmem:[%s2 + $0x30] sm:$0xff]
    %v179 = vld [vmem:[%s2 + $0x38] sm:$0xff]
    %v180 = vld [vmem:[%s2 + $0x40] sm:$0xff]
    %v181 = vld [vmem:[%s2 + $0x48] sm:$0xff]
    %v182 = vld [vmem:[%s2 + $0x50] sm:$0xff]
    %v183 = vld [vmem:[%s2 + $0x58] sm:$0xff]
    %v184 = vld [vmem:[%s2 + $0x60] sm:$0xff]
    %v185 = vld [vmem:[%s2 + $0x68] sm:$0xff]
    %v186 = vld [vmem:[%s2 + $0x70] sm:$0xff]
    %v187 = vld [vmem:[%s2 + $0x78] sm:$0xff]
    %v188 = vld [vmem:[%s2 + $0x80] sm:$0xff]
    %v189 = vld [vmem:[%s2 + $0x88] sm:$0xff]
    %v190 = vld [vmem:[%s2 + $0x90] sm:$0xff]
    %v191 = vld [vmem:[%s2 + $0x98] sm:$0xff]
    %v192 = vld [vmem:[%s2 + $0xa0] sm:$0xff]
    %v193 = vld [vmem:[%s2 + $0xa8] sm:$0xff]
    %v194 = vld [vmem:[%s2 + $0xb0] sm:$0xff]
    %v195 = vld [vmem:[%s2 + $0xb8] sm:$0xff]
    %v196 = vld [vmem:[%s2 + $0xc0] sm:$0xff]
    %v197 = vld [vmem:[%s2 + $0xc8] sm:$0xff]
    %v198 = vld [vmem:[%s2 + $0xd0] sm:$0xff]
    %v199 = vld [vmem:[%s2 + $0xd8] sm:$0xff]
    %v200 = vld [vmem:[%s2 + $0xe0] sm:$0xff]
    %v201 = vld [vmem:[%s2 + $0xe8] sm:$0xff]
    %v202 = vld [vmem:[%s2 + $0xf0] sm:$0xff]
    %v203 = vld [vmem:[%s2 + $0xf8] sm:$0xff]
    %v204 = vld [vmem:[%s2 + $0x100] sm:$0xff]
    %v205 = vld [vmem:[%s2 + $0x108] sm:$0xff]
    %v206 = vld [vmem:[%s2 + $0x110] sm:$0xff]
    %v207 = vld [vmem:[%s2 + $0x118] sm:$0x11]
    %v208 = vld [vmem:[%s3] sm:$0xff]
    %v209 = vld [vmem:[%s3 + $0x8] sm:$0xff]
    %v210 = vld [vmem:[%s3 + $0x10] sm:$0xff]
    %v211 = vld [vmem:[%s3 + $0x18] sm:$0xff]
    %v212 = vld [vmem:[%s3 + $0x20] sm:$0xff]
    %v213 = vld [vmem:[%s3 + $0x28] sm:$0xff]
    %v214 = vld [vmem:[%s3 + $0x30] sm:$0xff]
    %v215 = vld [vmem:[%s3 + $0x38] sm:$0xff]
    %v216 = vld [vmem:[%s3 + $0x40] sm:$0xff]
    %v217 = vld [vmem:[%s3 + $0x48] sm:$0xff]
    %v218 = vld [vmem:[%s3 + $0x50] sm:$0xff]
    %v219 = vld [vmem:[%s3 + $0x58] sm:$0xff]
    %v220 = vld [vmem:[%s3 + $0x60] sm:$0xff]
    %v221 = vld [vmem:[%s3 + $0x68] sm:$0xff]
    %v222 = vld [vmem:[%s3 + $0x70] sm:$0xff]
    %v223 = vld [vmem:[%s3 + $0x78] sm:$0xff]
    %v224 = vld [vmem:[%s3 + $0x80] sm:$0xff]
    %v225 = vld [vmem:[%s3 + $0x88] sm:$0xff]
    %v226 = vld [vmem:[%s3 + $0x90] sm:$0xff]
    %v227 = vld [vmem:[%s3 + $0x98] sm:$0xff]
    %v228 = vld [vmem:[%s3 + $0xa0] sm:$0xff]
    %v229 = vld [vmem:[%s3 + $0xa8] sm:$0xff]
    %v230 = vld [vmem:[%s3 + $0xb0] sm:$0xff]
    %v231 = vld [vmem:[%s3 + $0xb8] sm:$0xff]
    %v232 = vld [vmem:[%s3 + $0xc0] sm:$0xff]
    %v233 = vld [vmem:[%s3 + $0xc8] sm:$0xff]
    %v234 = vld [vmem:[%s3 + $0xd0] sm:$0xff]
    %v235 = vld [vmem:[%s3 + $0xd8] sm:$0xff]
    %v236 = vld [vmem:[%s3 + $0xe0] sm:$0xff]
    %v237 = vld [vmem:[%s3 + $0xe8] sm:$0xff]
    %v238 = vld [vmem:[%s3 + $0xf0] sm:$0xff]
    %v239 = vld [vmem:[%s3 + $0xf8] sm:$0xff]
    %v240 = vld [vmem:[%s3 + $0x100] sm:$0xff]
    %v241 = vld [vmem:[%s3 + $0x108] sm:$0xff]
    %v242 = vld [vmem:[%s3 + $0x110] sm:$0xff]
    %v243 = vld [vmem:[%s3 + $0x118] sm:$0xff]
    %v244 = vld [vmem:[%s3 + $0x120] sm:$0xff]
    %v245 = vld [vmem:[%s3 + $0x128] sm:$0xff]
    %v246 = vld [vmem:[%s3 + $0x130] sm:$0xff]
    %v247 = vld [vmem:[%s3 + $0x138] sm:$0xff]
    %v248 = vld [vmem:[%s3 + $0x140] sm:$0xff]
    %v249 = vld [vmem:[%s3 + $0x148] sm:$0xff]
    %v250 = vld [vmem:[%s3 + $0x150] sm:$0xff]
    %v251 = vld [vmem:[%s3 + $0x158] sm:$0xff]
    %v252 = vld [vmem:[%s3 + $0x160] sm:$0xff]
    %v253 = vld [vmem:[%s3 + $0x168] sm:$0xff]
    %v254 = vld [vmem:[%s3 + $0x170] sm:$0xff]
    %v255 = vld [vmem:[%s3 + $0x178] sm:$0xff]
    %v256 = vld [vmem:[%s3 + $0x180] sm:$0xff]
    %v257 = vld [vmem:[%s3 + $0x188] sm:$0xff]
    %v258 = vld [vmem:[%s3 + $0x190] sm:$0xff]
    %v259 = vld [vmem:[%s3 + $0x198] sm:$0xff]
    %v260 = vld [vmem:[%s3 + $0x1a0] sm:$0xff]
    %v261 = vld [vmem:[%s3 + $0x1a8] sm:$0xff]
    %v262 = vld [vmem:[%s3 + $0x1b0] sm:$0xff]
    %v263 = vld [vmem:[%s3 + $0x1b8] sm:$0xff]
    %v264 = vld [vmem:[%s3 + $0x1c0] sm:$0xff]
    %v265 = vld [vmem:[%s3 + $0x1c8] sm:$0xff]
    %v266 = vld [vmem:[%s3 + $0x1d0] sm:$0xff]
    %v267 = vld [vmem:[%s3 + $0x1d8] sm:$0xff]
    %v268 = vld [vmem:[%s3 + $0x1e0] sm:$0xff]
    %v269 = vld [vmem:[%s3 + $0x1e8] sm:$0xff]
    %v270 = vld [vmem:[%s3 + $0x1f0] sm:$0xff]
    %v271 = vld [vmem:[%s3 + $0x1f8] sm:$0xff]
    %v272 = vld [vmem:[%s3 + $0x200] sm:$0xff]
    %v273 = vld [vmem:[%s3 + $0x208] sm:$0xff]
    %v274 = vld [vmem:[%s3 + $0x210] sm:$0xff]
    %v275 = vld [vmem:[%s3 + $0x218] sm:$0xff]
    %v276 = vld [vmem:[%s3 + $0x220] sm:$0xff]
    %v277 = vld [vmem:[%s3 + $0x228] sm:$0xff]
    %v278 = vld [vmem:[%s3 + $0x230] sm:$0xff]
    %v279 = vld [vmem:[%s3 + $0x238] sm:$0xff]
    %v280 = vld [vmem:[%s3 + $0x240] sm:$0xff]
    %v281 = vld [vmem:[%s3 + $0x248] sm:$0xff]
    %v282 = vld [vmem:[%s3 + $0x250] sm:$0xff]
    %v283 = vld [vmem:[%s3 + $0x258] sm:$0xff]
    %v284 = vld [vmem:[%s3 + $0x260] sm:$0xff]
    %v285 = vld [vmem:[%s3 + $0x268] sm:$0xff]
    %v286 = vld [vmem:[%s3 + $0x270] sm:$0xff]
    %v287 = vld [vmem:[%s3 + $0x278] sm:$0xff]
    %v288 = vld [vmem:[%s3 + $0x280] sm:$0xff]
    %v289 = vld [vmem:[%s3 + $0x288] sm:$0xff]
    %v290 = vld [vmem:[%s3 + $0x290] sm:$0xff]
    %v291 = vld [vmem:[%s3 + $0x298] sm:$0xff]
    %v292 = vld [vmem:[%s3 + $0x2a0] sm:$0xff]
    %v293 = vld [vmem:[%s3 + $0x2a8] sm:$0xff]
    %v294 = vld [vmem:[%s3 + $0x2b0] sm:$0xff]
    %v295 = vld [vmem:[%s3 + $0x2b8] sm:$0xff]
    %v296 = vld [vmem:[%s3 + $0x2c0] sm:$0xff]
    %v297 = vld [vmem:[%s3 + $0x2c8] sm:$0xff]
    %v298 = vld [vmem:[%s3 + $0x2d0] sm:$0xff]
    %v299 = vld [vmem:[%s3 + $0x2d8] sm:$0xff]
    %v300 = vld [vmem:[%s3 + $0x2e0] sm:$0xff]
    %v301 = vld [vmem:[%s3 + $0x2e8] sm:$0xff]
    %v302 = vld [vmem:[%s3 + $0x2f0] sm:$0xff]
    %v303 = vld [vmem:[%s3 + $0x2f8] sm:$0xff]
    %v304 = vld [vmem:[%s3 + $0x300] sm:$0xff]
    %v305 = vld [vmem:[%s3 + $0x308] sm:$0xff]
    %v306 = vld [vmem:[%s3 + $0x310] sm:$0xff]
    %v307 = vld [vmem:[%s3 + $0x318] sm:$0xff]
    %v308 = vld [vmem:[%s3 + $0x320] sm:$0xff]
    %v309 = vld [vmem:[%s3 + $0x328] sm:$0xff]
    %v310 = vld [vmem:[%s3 + $0x330] sm:$0xff]
    %v311 = vld [vmem:[%s3 + $0x338] sm:$0xff]
    %v312 = vld [vmem:[%s3 + $0x340] sm:$0xff]
    %v313 = vld [vmem:[%s3 + $0x348] sm:$0xff]
    %v314 = vld [vmem:[%s3 + $0x350] sm:$0xff]
    %v315 = vld [vmem:[%s3 + $0x358] sm:$0xff]
    %v316 = vld [vmem:[%s3 + $0x360] sm:$0xff]
    %v317 = vld [vmem:[%s3 + $0x368] sm:$0xff]
    %v318 = vld [vmem:[%s3 + $0x370] sm:$0xff]
    %v319 = vld [vmem:[%s3 + $0x378] sm:$0xff]
    %v320 = vld [vmem:[%s3 + $0x380] sm:$0xff]
    %v321 = vld [vmem:[%s3 + $0x388] sm:$0xff]
    %v322 = vld [vmem:[%s3 + $0x390] sm:$0xff]
    %v323 = vld [vmem:[%s3 + $0x398] sm:$0xff]
    %v324 = vld [vmem:[%s3 + $0x3a0] sm:$0xff]
    %v325 = vld [vmem:[%s3 + $0x3a8] sm:$0xff]
    %v326 = vld [vmem:[%s3 + $0x3b0] sm:$0xff]
    %v327 = vld [vmem:[%s3 + $0x3b8] sm:$0xff]
    %v328 = vld [vmem:[%s3 + $0x3c0] sm:$0xff]
    %v329 = vld [vmem:[%s3 + $0x3c8] sm:$0xff]
    %v330 = vld [vmem:[%s3 + $0x3d0] sm:$0xff]
    %v331 = vld [vmem:[%s3 + $0x3d8] sm:$0xff]
    %v332 = vld [vmem:[%s3 + $0x3e0] sm:$0xff]
    %v333 = vld [vmem:[%s3 + $0x3e8] sm:$0xff]
    %v334 = vld [vmem:[%s3 + $0x3f0] sm:$0xff]
    %v335 = vld [vmem:[%s3 + $0x3f8] sm:$0xff]
    %v336 = vld [vmem:[%s3 + $0x400] sm:$0xff]
    %v337 = vld [vmem:[%s3 + $0x408] sm:$0xff]
    %v338 = vld [vmem:[%s3 + $0x410] sm:$0xff]
    %v339 = vld [vmem:[%s3 + $0x418] sm:$0xff]
    %v340 = vld [vmem:[%s3 + $0x420] sm:$0xff]
    %v341 = vld [vmem:[%s3 + $0x428] sm:$0xff]
    %v342 = vld [vmem:[%s3 + $0x430] sm:$0xff]
    %v343 = vld [vmem:[%s3 + $0x438] sm:$0xff]
    %v344 = vld [vmem:[%s3 + $0x440] sm:$0xff]
    %v345 = vld [vmem:[%s3 + $0x448] sm:$0xff]
    %v346 = vld [vmem:[%s3 + $0x450] sm:$0xff]
    %v347 = vld [vmem:[%s3 + $0x458] sm:$0xff]
    %v348 = vld [vmem:[%s3 + $0x460] sm:$0xff]
    %v349 = vld [vmem:[%s3 + $0x468] sm:$0xff]
    %v350 = vld [vmem:[%s3 + $0x470] sm:$0xff]
    %v351 = vld [vmem:[%s3 + $0x478] sm:$0xff]
    %v352 = vld [vmem:[#allocation4] sm:$0xf]
    %v353 = vld [vmem:[#allocation4 + $0x4] sm:$0xf]
    %v354 = vld [vmem:[#allocation4 + $0x8] sm:$0xf]
    %v355 = vld [vmem:[#allocation4 + $0xc] sm:$0xf]
    %v356 = vld [vmem:[#allocation4 + $0x10] sm:$0xf]
    %v357 = vld [vmem:[#allocation4 + $0x14] sm:$0xf]
    %v358 = vld [vmem:[#allocation4 + $0x18] sm:$0xf]
    %v359 = vld [vmem:[#allocation4 + $0x1c] sm:$0xf]
    %v360 = vld [vmem:[#allocation4 + $0x20] sm:$0xf]
    %v361 = vld [vmem:[#allocation4 + $0x24] sm:$0xf]
    %v362 = vld [vmem:[#allocation4 + $0x28] sm:$0xf]
    %v363 = vld [vmem:[#allocation4 + $0x2c] sm:$0xf]
    %v364 = vld [vmem:[#allocation4 + $0x30] sm:$0xf]
    %v365 = vld [vmem:[#allocation4 + $0x34] sm:$0xf]
    %v366 = vld [vmem:[#allocation4 + $0x38] sm:$0xf]
    %v367 = vld [vmem:[#allocation4 + $0x3c] sm:$0xf]
    %v368 = vld [vmem:[#allocation4 + $0x40] sm:$0xf]
    %v369 = vld [vmem:[#allocation4 + $0x44] sm:$0xf]
    %v370 = vld [vmem:[#allocation4 + $0x48] sm:$0xf]
    %v371 = vld [vmem:[#allocation4 + $0x4c] sm:$0xf]
    %v372 = vld [vmem:[#allocation4 + $0x50] sm:$0xf]
    %v373 = vld [vmem:[#allocation4 + $0x54] sm:$0xf]
    %v374 = vld [vmem:[#allocation4 + $0x58] sm:$0xf]
    %v375 = vld [vmem:[#allocation4 + $0x5c] sm:$0xf]
    %v376 = vld [vmem:[#allocation4 + $0x60] sm:$0xf]
    %v377 = vld [vmem:[#allocation4 + $0x64] sm:$0xf]
    %v378 = vld [vmem:[#allocation4 + $0x68] sm:$0xf]
    %v379 = vld [vmem:[#allocation4 + $0x6c] sm:$0xf]
    %v380 = vld [vmem:[#allocation4 + $0x70] sm:$0xf]
    %v381 = vld [vmem:[#allocation4 + $0x74] sm:$0xf]
    %v466 = vunpack.c.l.b16 %v88
    %v467 = vunpack.c.h.b16 %v88
    %v468 = vunpack.c.l.b16 %v89
    %v469 = vunpack.c.h.b16 %v89
    %v470 = vunpack.c.l.b16 %v90
    %v471 = vunpack.c.l.b16 %v91
    %v472 = vunpack.c.h.b16 %v91
    %v473 = vunpack.c.l.b16 %v92
    %v474 = vunpack.c.h.b16 %v92
    %v475 = vunpack.c.l.b16 %v93
    %v476 = vunpack.c.l.b16 %v94
    %v477 = vunpack.c.h.b16 %v94
    %v478 = vunpack.c.l.b16 %v95
    %v479 = vunpack.c.h.b16 %v95
    %v480 = vunpack.c.l.b16 %v96
    %v481 = vunpack.c.l.b16 %v97
    %v482 = vunpack.c.h.b16 %v97
    %v483 = vunpack.c.l.b16 %v98
    %v484 = vunpack.c.h.b16 %v98
    %v485 = vunpack.c.l.b16 %v99
    %v486 = vunpack.c.l.b16 %v100
    %v487 = vunpack.c.h.b16 %v100
    %v488 = vunpack.c.l.b16 %v101
    %v489 = vunpack.c.h.b16 %v101
    %v490 = vunpack.c.l.b16 %v102
    %v491 = vunpack.c.l.b16 %v103
    %v492 = vunpack.c.h.b16 %v103
    %v493 = vunpack.c.l.b16 %v104
    %v494 = vunpack.c.h.b16 %v104
    %v495 = vunpack.c.l.b16 %v105
    %v496 = vunpack.c.l.b16 %v106
    %v497 = vunpack.c.h.b16 %v106
    %v498 = vunpack.c.l.b16 %v107
    %v499 = vunpack.c.h.b16 %v107
    %v500 = vunpack.c.l.b16 %v108
    %v501 = vunpack.c.l.b16 %v109
    %v502 = vunpack.c.h.b16 %v109
    %v503 = vunpack.c.l.b16 %v110
    %v504 = vunpack.c.h.b16 %v110
    %v505 = vunpack.c.l.b16 %v111
    %v506 = vunpack.c.l.b16 %v112
    %v507 = vunpack.c.h.b16 %v112
    %v508 = vunpack.c.l.b16 %v113
    %v509 = vunpack.c.h.b16 %v113
    %v510 = vunpack.c.l.b16 %v114
    %v511 = vunpack.c.l.b16 %v115
    %v512 = vunpack.c.h.b16 %v115
    %v513 = vunpack.c.l.b16 %v116
    %v514 = vunpack.c.h.b16 %v116
    %v515 = vunpack.c.l.b16 %v117
    %v516 = vunpack.c.l.b16 %v118
    %v517 = vunpack.c.h.b16 %v118
    %v518 = vunpack.c.l.b16 %v119
    %v519 = vunpack.c.h.b16 %v119
    %v520 = vunpack.c.l.b16 %v120
    %v521 = vunpack.c.l.b16 %v121
    %v522 = vunpack.c.h.b16 %v121
    %v523 = vunpack.c.l.b16 %v122
    %v524 = vunpack.c.h.b16 %v122
    %v525 = vunpack.c.l.b16 %v123
    %v526 = vunpack.c.l.b16 %v124
    %v527 = vunpack.c.h.b16 %v124
    %v528 = vunpack.c.l.b16 %v125
    %v529 = vunpack.c.h.b16 %v125
    %v530 = vunpack.c.l.b16 %v126
    %v531 = vunpack.c.l.b16 %v127
    %v532 = vunpack.c.h.b16 %v127
    %v533 = vunpack.c.l.b16 %v128
    %v534 = vunpack.c.h.b16 %v128
    %v535 = vunpack.c.l.b16 %v129
    %v536 = vunpack.c.l.b16 %v130
    %v537 = vunpack.c.h.b16 %v130
    %v538 = vunpack.c.l.b16 %v131
    %v539 = vunpack.c.h.b16 %v131
    %v540 = vunpack.c.l.b16 %v132
    %v541 = vunpack.c.l.b16 %v133
    %v542 = vunpack.c.h.b16 %v133
    %v543 = vunpack.c.l.b16 %v134
    %v544 = vunpack.c.h.b16 %v134
    %v545 = vunpack.c.l.b16 %v135
    %v546 = vunpack.c.l.b16 %v136
    %v547 = vunpack.c.h.b16 %v136
    %v548 = vunpack.c.l.b16 %v137
    %v549 = vunpack.c.h.b16 %v137
    %v550 = vunpack.c.l.b16 %v138
    %v551 = vunpack.c.l.b16 %v139
    %v552 = vunpack.c.h.b16 %v139
    %v553 = vunpack.c.l.b16 %v140
    %v554 = vunpack.c.h.b16 %v140
    %v555 = vunpack.c.l.b16 %v141
    %v556 = vunpack.c.l.b16 %v142
    %v557 = vunpack.c.h.b16 %v142
    %v558 = vunpack.c.l.b16 %v143
    %v559 = vunpack.c.h.b16 %v143
    %v560 = vunpack.c.l.b16 %v144
    %v561 = vunpack.c.l.b16 %v145
    %v562 = vunpack.c.h.b16 %v145
    %v563 = vunpack.c.l.b16 %v146
    %v564 = vunpack.c.h.b16 %v146
    %v565 = vunpack.c.l.b16 %v147
    %v566 = vunpack.c.l.b16 %v148
    %v567 = vunpack.c.h.b16 %v148
    %v568 = vunpack.c.l.b16 %v149
    %v569 = vunpack.c.h.b16 %v149
    %v570 = vunpack.c.l.b16 %v150
    %v571 = vunpack.c.l.b16 %v151
    %v572 = vunpack.c.h.b16 %v151
    %v573 = vunpack.c.l.b16 %v152
    %v574 = vunpack.c.h.b16 %v152
    %v575 = vunpack.c.l.b16 %v153
    %v576 = vunpack.c.l.b16 %v154
    %v577 = vunpack.c.h.b16 %v154
    %v578 = vunpack.c.l.b16 %v155
    %v579 = vunpack.c.h.b16 %v155
    %v580 = vunpack.c.l.b16 %v156
    %v581 = vunpack.c.l.b16 %v157
    %v582 = vunpack.c.h.b16 %v157
    %v583 = vunpack.c.l.b16 %v158
    %v584 = vunpack.c.h.b16 %v158
    %v585 = vunpack.c.l.b16 %v159
    %v586 = vunpack.c.l.b16 %v160
    %v587 = vunpack.c.h.b16 %v160
    %v588 = vunpack.c.l.b16 %v161
    %v589 = vunpack.c.h.b16 %v161
    %v590 = vunpack.c.l.b16 %v162
    %v591 = vunpack.c.l.b16 %v163
    %v592 = vunpack.c.h.b16 %v163
    %v593 = vunpack.c.l.b16 %v164
    %v594 = vunpack.c.h.b16 %v164
    %v595 = vunpack.c.l.b16 %v165
    %v596 = vunpack.c.l.b16 %v166
    %v597 = vunpack.c.h.b16 %v166
    %v598 = vunpack.c.l.b16 %v167
    %v599 = vunpack.c.h.b16 %v167
    %v600 = vunpack.c.l.b16 %v168
    %v601 = vunpack.c.l.b16 %v169
    %v602 = vunpack.c.h.b16 %v169
    %v603 = vunpack.c.l.b16 %v170
    %v604 = vunpack.c.h.b16 %v170
    %v605 = vunpack.c.l.b16 %v171
    %v606 = vpack.c.b16 %v471, %v466
    %v607 = vpack.c.b16 %v472, %v467
    %v608 = vpack.c.b16 %v473, %v468
    %v609 = vpack.c.b16 %v474, %v469
    %v610 = vpack.c.b16 %v475, %v470
    %v611 = vpack.c.b16 %v481, %v476
    %v612 = vpack.c.b16 %v482, %v477
    %v613 = vpack.c.b16 %v483, %v478
    %v614 = vpack.c.b16 %v484, %v479
    %v615 = vpack.c.b16 %v485, %v480
    %v616 = vpack.c.b16 %v491, %v486
    %v617 = vpack.c.b16 %v492, %v487
    %v618 = vpack.c.b16 %v493, %v488
    %v619 = vpack.c.b16 %v494, %v489
    %v620 = vpack.c.b16 %v495, %v490
    %v621 = vpack.c.b16 %v501, %v496
    %v622 = vpack.c.b16 %v502, %v497
    %v623 = vpack.c.b16 %v503, %v498
    %v624 = vpack.c.b16 %v504, %v499
    %v625 = vpack.c.b16 %v505, %v500
    %v626 = vpack.c.b16 %v511, %v506
    %v627 = vpack.c.b16 %v512, %v507
    %v628 = vpack.c.b16 %v513, %v508
    %v629 = vpack.c.b16 %v514, %v509
    %v630 = vpack.c.b16 %v515, %v510
    %v631 = vpack.c.b16 %v521, %v516
    %v632 = vpack.c.b16 %v522, %v517
    %v633 = vpack.c.b16 %v523, %v518
    %v634 = vpack.c.b16 %v524, %v519
    %v635 = vpack.c.b16 %v525, %v520
    %v636 = vpack.c.b16 %v531, %v526
    %v637 = vpack.c.b16 %v532, %v527
    %v638 = vpack.c.b16 %v533, %v528
    %v639 = vpack.c.b16 %v534, %v529
    %v640 = vpack.c.b16 %v535, %v530
    %v641 = vpack.c.b16 %v541, %v536
    %v642 = vpack.c.b16 %v542, %v537
    %v643 = vpack.c.b16 %v543, %v538
    %v644 = vpack.c.b16 %v544, %v539
    %v645 = vpack.c.b16 %v545, %v540
    %v646 = vpack.c.b16 %v551, %v546
    %v647 = vpack.c.b16 %v552, %v547
    %v648 = vpack.c.b16 %v553, %v548
    %v649 = vpack.c.b16 %v554, %v549
    %v650 = vpack.c.b16 %v555, %v550
    %v651 = vpack.c.b16 %v561, %v556
    %v652 = vpack.c.b16 %v562, %v557
    %v653 = vpack.c.b16 %v563, %v558
    %v654 = vpack.c.b16 %v564, %v559
    %v655 = vpack.c.b16 %v565, %v560
    %v656 = vpack.c.b16 %v571, %v566
    %v657 = vpack.c.b16 %v572, %v567
    %v658 = vpack.c.b16 %v573, %v568
    %v659 = vpack.c.b16 %v574, %v569
    %v660 = vpack.c.b16 %v575, %v570
    %v661 = vpack.c.b16 %v581, %v576
    %v662 = vpack.c.b16 %v582, %v577
    %v663 = vpack.c.b16 %v583, %v578
    %v664 = vpack.c.b16 %v584, %v579
    %v665 = vpack.c.b16 %v585, %v580
    %v666 = vpack.c.b16 %v591, %v586
    %v667 = vpack.c.b16 %v592, %v587
    %v668 = vpack.c.b16 %v593, %v588
    %v669 = vpack.c.b16 %v594, %v589
    %v670 = vpack.c.b16 %v595, %v590
    %v671 = vpack.c.b16 %v601, %v596
    %v672 = vpack.c.b16 %v602, %v597
    %v673 = vpack.c.b16 %v603, %v598
    %v674 = vpack.c.b16 %v604, %v599
    %v675 = vpack.c.b16 %v605, %v600
    %vm746 = vcmask 785408
    %v748 = vsel %vm746, %v80, 0
    %750 = vmatprep.subr.bf16.mxu0 %v607
    %751 = vmatpush1.bf16.msra.mxu0 %v606
    %752 = vmatprep.subr.bf16.mxu0 %v612
    %753 = vmatpush1.bf16.msra.mxu0 %v611
    %754 = vmatprep.subr.bf16.mxu0 %v617
    %755 = vmatpush1.bf16.msra.mxu0 %v616
    %756 = vmatprep.subr.bf16.mxu0 %v622
    %757 = vmatpush1.bf16.msra.mxu0 %v621
    %758 = vmatprep.subr.bf16.mxu0 %v627
    %759 = vmatpush1.bf16.msra.mxu0 %v626
    %760 = vmatprep.subr.bf16.mxu0 %v632
    %761 = vmatpush1.bf16.msra.mxu0 %v631
    %762 = vmatprep.subr.bf16.mxu0 %v637
    %763 = vmatpush1.bf16.msra.mxu0 %v636
    %764 = vmatprep.subr.bf16.mxu0 %v642
    %765 = vmatpush1.bf16.msra.mxu0 %v641
    %766 = vmatprep.subr.bf16.mxu0 %v647
    %767 = vmatpush1.bf16.msra.mxu0 %v646
    %768 = vmatprep.subr.bf16.mxu0 %v652
    %769 = vmatpush1.bf16.msra.mxu0 %v651
    %770 = vmatprep.subr.bf16.mxu0 %v657
    %771 = vmatpush1.bf16.msra.mxu0 %v656
    %772 = vmatprep.subr.bf16.mxu0 %v662
    %773 = vmatpush1.bf16.msra.mxu0 %v661
    %774 = vmatprep.subr.bf16.mxu0 %v667
    %775 = vmatpush1.bf16.msra.mxu0 %v666
    %776 = vmatprep.subr.bf16.mxu0 %v672
    %777 = vmatpush1.bf16.msra.mxu0 %v671
    %778 = vmatprep.subr.bf16.mxu0 0
    %779 = vmatpush1.bf16.msra.mxu0 0
    %780 = vmatprep.subr.bf16.mxu0 0
    %781 = vmatpush1.bf16.msra.mxu0 0
    %782 = vmatprep.mubr.bf16.mxu0 %v748
    %783 = vmatmul.mubr.bf16.gmra.mrb[0].mxu0 %v79
    %v784 = vpop.f32.mrb[0].mxu0
    %v785 = vadd.f32 0.0, %v784
    %v786 = vpop.f32.mrb[0].mxu0
    %v787 = vadd.f32 0.0, %v786
    %v788 = vpop.f32.mrb[0].mxu0
    %v789 = vpop.f32.mrb[0].mxu0
    %790 = vdwg.mxu0
    %791 = vmatprep.subr.bf16.mxu0 %v609
    %792 = vmatpush1.bf16.msra.mxu0 %v608
    %793 = vmatprep.subr.bf16.mxu0 %v614
    %794 = vmatpush1.bf16.msra.mxu0 %v613
    %795 = vmatprep.subr.bf16.mxu0 %v619
    %796 = vmatpush1.bf16.msra.mxu0 %v618
    %797 = vmatprep.subr.bf16.mxu0 %v624
    %798 = vmatpush1.bf16.msra.mxu0 %v623
    %799 = vmatprep.subr.bf16.mxu0 %v629
    %800 = vmatpush1.bf16.msra.mxu0 %v628
    %801 = vmatprep.subr.bf16.mxu0 %v634
    %802 = vmatpush1.bf16.msra.mxu0 %v633
    %803 = vmatprep.subr.bf16.mxu0 %v639
    %804 = vmatpush1.bf16.msra.mxu0 %v638
    %805 = vmatprep.subr.bf16.mxu0 %v644
    %806 = vmatpush1.bf16.msra.mxu0 %v643
    %807 = vmatprep.subr.bf16.mxu0 %v649
    %808 = vmatpush1.bf16.msra.mxu0 %v648
    %809 = vmatprep.subr.bf16.mxu0 %v654
    %810 = vmatpush1.bf16.msra.mxu0 %v653
    %811 = vmatprep.subr.bf16.mxu0 %v659
    %812 = vmatpush1.bf16.msra.mxu0 %v658
    %813 = vmatprep.subr.bf16.mxu0 %v664
    %814 = vmatpush1.bf16.msra.mxu0 %v663
    %815 = vmatprep.subr.bf16.mxu0 %v669
    %816 = vmatpush1.bf16.msra.mxu0 %v668
    %817 = vmatprep.subr.bf16.mxu0 %v674
    %818 = vmatpush1.bf16.msra.mxu0 %v673
    %819 = vmatprep.subr.bf16.mxu0 0
    %820 = vmatpush1.bf16.msra.mxu0 0
    %821 = vmatprep.subr.bf16.mxu0 0
    %822 = vmatpush1.bf16.msra.mxu0 0
    %823 = vmatprep.mubr.bf16.mxu0 %v748
    %824 = vmatmul.mubr.bf16.gmra.mrb[0].mxu0 %v79
    %v825 = vpop.f32.mrb[0].mxu0
    %v826 = vadd.f32 0.0, %v825
    %v827 = vpop.f32.mrb[0].mxu0
    %v828 = vadd.f32 0.0, %v827
    %v829 = vpop.f32.mrb[0].mxu0
    %v830 = vpop.f32.mrb[0].mxu0
    %831 = vdwg.mxu0
    %832 = vmatprep.subr.bf16.mxu0 0
    %833 = vmatpush1.bf16.msra.mxu0 %v610
    %834 = vmatprep.subr.bf16.mxu0 0
    %835 = vmatpush1.bf16.msra.mxu0 %v615
    %836 = vmatprep.subr.bf16.mxu0 0
    %837 = vmatpush1.bf16.msra.mxu0 %v620
    %838 = vmatprep.subr.bf16.mxu0 0
    %839 = vmatpush1.bf16.msra.mxu0 %v625
    %840 = vmatprep.subr.bf16.mxu0 0
    %841 = vmatpush1.bf16.msra.mxu0 %v630
    %842 = vmatprep.subr.bf16.mxu0 0
    %843 = vmatpush1.bf16.msra.mxu0 %v635
    %844 = vmatprep.subr.bf16.mxu0 0
    %845 = vmatpush1.bf16.msra.mxu0 %v640
    %846 = vmatprep.subr.bf16.mxu0 0
    %847 = vmatpush1.bf16.msra.mxu0 %v645
    %848 = vmatprep.subr.bf16.mxu0 0
    %849 = vmatpush1.bf16.msra.mxu0 %v650
    %850 = vmatprep.subr.bf16.mxu0 0
    %851 = vmatpush1.bf16.msra.mxu0 %v655
    %852 = vmatprep.subr.bf16.mxu0 0
    %853 = vmatpush1.bf16.msra.mxu0 %v660
    %854 = vmatprep.subr.bf16.mxu0 0
    %855 = vmatpush1.bf16.msra.mxu0 %v665
    %856 = vmatprep.subr.bf16.mxu0 0
    %857 = vmatpush1.bf16.msra.mxu0 %v670
    %858 = vmatprep.subr.bf16.mxu0 0
    %859 = vmatpush1.bf16.msra.mxu0 %v675
    %860 = vmatprep.subr.bf16.mxu0 0
    %861 = vmatpush1.bf16.msra.mxu0 0
    %862 = vmatprep.subr.bf16.mxu0 0
    %863 = vmatpush1.bf16.msra.mxu0 0
    %864 = vmatprep.mubr.bf16.mxu0 %v748
    %865 = vmatmul.mubr.bf16.gmra.mrb[0].mxu0 %v79
    %v866 = vpop.f32.mrb[0].mxu0
    %v867 = vadd.f32 0.0, %v866
    %v868 = vpop.f32.mrb[0].mxu0
    %v869 = vpop.f32.mrb[0].mxu0
    %v870 = vpop.f32.mrb[0].mxu0
    %871 = vdwg.mxu0
    %875 = vrot.lane.b32.xlu0 %v826, 96
    %v876 = vpop.permute.xlu0 %875
    %877 = vrot.lane.b32.xlu0 %v828, 96
    %v878 = vpop.permute.xlu0 %877
    %879 = vrot.lane.b32.xlu0 %v867, 96
    %v880 = vpop.permute.xlu0 %879
    %v881 = vsel %vm746, %v876, %v878
    %v882 = vsel %vm746, %v878, %v880
    %v886 = vmax.f32 %v785, %v881
    %v887 = vmax.f32 %v787, %v882
    %v888 = vmax.f32 %v826, %v880
    %892 = vrot.lane.b32.xlu0 %v886, 122
    %v893 = vpop.permute.xlu0 %892
    %894 = vrot.lane.b32.xlu0 %v887, 122
    %v895 = vpop.permute.xlu0 %894
    %896 = vrot.lane.b32.xlu0 %v888, 122
    %v897 = vpop.permute.xlu0 %896
    %vm898 = vcmask 998400
    %v899 = vsel %vm898, %v893, %v895
    %v900 = vsel %vm898, %v895, %v897
    %v904 = vmax.f32 %v886, %v899
    %v905 = vmax.f32 %v887, %v900
    %v906 = vmax.f32 %v888, %v897
    %v907 = vpack.c.bf16 %v904, %v904
    %v908 = vpack.c.bf16 %v905, %v905
    %v909 = vpack.c.bf16 %v906, %v906
    %v910 = vlaneseq
    %v911 = vshrl.u32 %v910, 7
    %v912 = vsub.s32 0, %v911
    %v913 = vrot.slane %v86, %v912
    %v914 = vlaneseq
    %v915 = vshrl.u32 %v914, 7
    %v916 = vsub.s32 0, %v915
    %v917 = vrot.slane %v87, %v916
    %v954 = vunpack.c.l.b16 %v172
    %v955 = vunpack.c.h.b16 %v172
    %v956 = vunpack.c.l.b16 %v173
    %v957 = vunpack.c.h.b16 %v173
    %v958 = vunpack.c.l.b16 %v174
    %v959 = vunpack.c.h.b16 %v174
    %v960 = vunpack.c.l.b16 %v175
    %v961 = vunpack.c.h.b16 %v175
    %v962 = vunpack.c.l.b16 %v176
    %v963 = vunpack.c.h.b16 %v176
    %v964 = vunpack.c.l.b16 %v177
    %v965 = vunpack.c.h.b16 %v177
    %v966 = vunpack.c.l.b16 %v178
    %v967 = vunpack.c.h.b16 %v178
    %v968 = vunpack.c.l.b16 %v179
    %v969 = vunpack.c.h.b16 %v179
    %v970 = vunpack.c.l.b16 %v180
    %v971 = vunpack.c.h.b16 %v180
    %v972 = vunpack.c.l.b16 %v181
    %v973 = vunpack.c.h.b16 %v181
    %v974 = vunpack.c.l.b16 %v182
    %v975 = vunpack.c.h.b16 %v182
    %v976 = vunpack.c.l.b16 %v183
    %v977 = vunpack.c.h.b16 %v183
    %v978 = vunpack.c.l.b16 %v184
    %v979 = vunpack.c.h.b16 %v184
    %v980 = vunpack.c.l.b16 %v185
    %v981 = vunpack.c.h.b16 %v185
    %v982 = vunpack.c.l.b16 %v186
    %v983 = vunpack.c.h.b16 %v186
    %v984 = vunpack.c.l.b16 %v187
    %v985 = vunpack.c.h.b16 %v187
    %v986 = vunpack.c.l.b16 %v188
    %v987 = vunpack.c.h.b16 %v188
    %v988 = vunpack.c.l.b16 %v189
    %v989 = vunpack.c.h.b16 %v189
    %v990 = vunpack.c.l.b16 %v190
    %v991 = vunpack.c.h.b16 %v190
    %v992 = vunpack.c.l.b16 %v191
    %v993 = vunpack.c.h.b16 %v191
    %v994 = vunpack.c.l.b16 %v192
    %v995 = vunpack.c.h.b16 %v192
    %v996 = vunpack.c.l.b16 %v193
    %v997 = vunpack.c.h.b16 %v193
    %v998 = vunpack.c.l.b16 %v194
    %v999 = vunpack.c.h.b16 %v194
    %v1000 = vunpack.c.l.b16 %v195
    %v1001 = vunpack.c.h.b16 %v195
    %v1002 = vunpack.c.l.b16 %v196
    %v1003 = vunpack.c.h.b16 %v196
    %v1004 = vunpack.c.l.b16 %v197
    %v1005 = vunpack.c.h.b16 %v197
    %v1006 = vunpack.c.l.b16 %v198
    %v1007 = vunpack.c.h.b16 %v198
    %v1008 = vunpack.c.l.b16 %v199
    %v1009 = vunpack.c.h.b16 %v199
    %v1010 = vunpack.c.l.b16 %v200
    %v1011 = vunpack.c.h.b16 %v200
    %v1012 = vunpack.c.l.b16 %v201
    %v1013 = vunpack.c.h.b16 %v201
    %v1014 = vunpack.c.l.b16 %v202
    %v1015 = vunpack.c.h.b16 %v202
    %v1016 = vunpack.c.l.b16 %v203
    %v1017 = vunpack.c.h.b16 %v203
    %v1018 = vunpack.c.l.b16 %v204
    %v1019 = vunpack.c.h.b16 %v204
    %v1020 = vunpack.c.l.b16 %v205
    %v1021 = vunpack.c.h.b16 %v205
    %v1022 = vunpack.c.l.b16 %v206
    %v1023 = vunpack.c.h.b16 %v206
    %v1024 = vunpack.c.l.b16 %v207
    %v1025 = vunpack.c.h.b16 %v207
    %v1026 = vpack.c.b16 %v956, %v954
    %v1027 = vpack.c.b16 %v957, %v955
    %v1028 = vpack.c.b16 %v960, %v958
    %v1029 = vpack.c.b16 %v961, %v959
    %v1030 = vpack.c.b16 %v964, %v962
    %v1031 = vpack.c.b16 %v965, %v963
    %v1032 = vpack.c.b16 %v968, %v966
    %v1033 = vpack.c.b16 %v969, %v967
    %v1034 = vpack.c.b16 %v972, %v970
    %v1035 = vpack.c.b16 %v973, %v971
    %v1036 = vpack.c.b16 %v976, %v974
    %v1037 = vpack.c.b16 %v977, %v975
    %v1038 = vpack.c.b16 %v980, %v978
    %v1039 = vpack.c.b16 %v981, %v979
    %v1040 = vpack.c.b16 %v984, %v982
    %v1041 = vpack.c.b16 %v985, %v983
    %v1042 = vpack.c.b16 %v988, %v986
    %v1043 = vpack.c.b16 %v989, %v987
    %v1044 = vpack.c.b16 %v992, %v990
    %v1045 = vpack.c.b16 %v993, %v991
    %v1046 = vpack.c.b16 %v996, %v994
    %v1047 = vpack.c.b16 %v997, %v995
    %v1048 = vpack.c.b16 %v1000, %v998
    %v1049 = vpack.c.b16 %v1001, %v999
    %v1050 = vpack.c.b16 %v1004, %v1002
    %v1051 = vpack.c.b16 %v1005, %v1003
    %v1052 = vpack.c.b16 %v1008, %v1006
    %v1053 = vpack.c.b16 %v1009, %v1007
    %v1054 = vpack.c.b16 %v1012, %v1010
    %v1055 = vpack.c.b16 %v1013, %v1011
    %v1056 = vpack.c.b16 %v1016, %v1014
    %v1057 = vpack.c.b16 %v1017, %v1015
    %v1058 = vpack.c.b16 %v1020, %v1018
    %v1059 = vpack.c.b16 %v1021, %v1019
    %v1060 = vpack.c.b16 %v1024, %v1022
    %v1061 = vpack.c.b16 %v1025, %v1023
    %vm1096 = vcmask 211968
    %v1098 = vsel %vm1096, %v909, 0
    %vm1100 = vcmask 1044480
    %v1102 = vsel %vm1100, %v1060, 0
    %v1105 = vsel %vm1100, %v1061, 0
    %1107 = vmatprep.subr.bf16.mxu0 %v1027
    %1108 = vmatpush1.bf16.msra.mxu0 %v1026
    %1109 = vmatprep.subr.bf16.mxu0 %v1029
    %1110 = vmatpush1.bf16.msra.mxu0 %v1028
    %1111 = vmatprep.subr.bf16.mxu0 %v1031
    %1112 = vmatpush1.bf16.msra.mxu0 %v1030
    %1113 = vmatprep.subr.bf16.mxu0 %v1033
    %1114 = vmatpush1.bf16.msra.mxu0 %v1032
    %1115 = vmatprep.subr.bf16.mxu0 %v1035
    %1116 = vmatpush1.bf16.msra.mxu0 %v1034
    %1117 = vmatprep.subr.bf16.mxu0 %v1037
    %1118 = vmatpush1.bf16.msra.mxu0 %v1036
    %1119 = vmatprep.subr.bf16.mxu0 %v1039
    %1120 = vmatpush1.bf16.msra.mxu0 %v1038
    %1121 = vmatprep.subr.bf16.mxu0 %v1041
    %1122 = vmatpush1.bf16.msra.mxu0 %v1040
    %1123 = vmatprep.subr.bf16.mxu0 %v1043
    %1124 = vmatpush1.bf16.msra.mxu0 %v1042
    %1125 = vmatprep.subr.bf16.mxu0 %v1045
    %1126 = vmatpush1.bf16.msra.mxu0 %v1044
    %1127 = vmatprep.subr.bf16.mxu0 %v1047
    %1128 = vmatpush1.bf16.msra.mxu0 %v1046
    %1129 = vmatprep.subr.bf16.mxu0 %v1049
    %1130 = vmatpush1.bf16.msra.mxu0 %v1048
    %1131 = vmatprep.subr.bf16.mxu0 %v1051
    %1132 = vmatpush1.bf16.msra.mxu0 %v1050
    %1133 = vmatprep.subr.bf16.mxu0 %v1053
    %1134 = vmatpush1.bf16.msra.mxu0 %v1052
    %1135 = vmatprep.subr.bf16.mxu0 %v1055
    %1136 = vmatpush1.bf16.msra.mxu0 %v1054
    %1137 = vmatprep.subr.bf16.mxu0 %v1057
    %1138 = vmatpush1.bf16.msra.mxu0 %v1056
    %1139 = vmatprep.mubr.bf16.mxu0 %v908
    %1140 = vmatmul.mubr.bf16.gmra.mrb[0].mxu0 %v907
    %v1141 = vpop.f32.mrb[0].mxu0
    %v1142 = vadd.f32 %v913, %v1141
    %v1143 = vpop.f32.mrb[0].mxu0
    %v1144 = vadd.f32 %v917, %v1143
    %v1145 = vpop.f32.mrb[0].mxu0
    %v1146 = vpop.f32.mrb[0].mxu0
    %1147 = vdwg.mxu0
    %1148 = vmatprep.subr.bf16.mxu0 %v1059
    %1149 = vmatpush1.bf16.msra.mxu0 %v1058
    %1150 = vmatprep.subr.bf16.mxu0 %v1105
    %1151 = vmatpush1.bf16.msra.mxu0 %v1102
    %1152 = vmatprep.subr.bf16.mxu0 0
    %1153 = vmatpush1.bf16.msra.mxu0 0
    %1154 = vmatprep.subr.bf16.mxu0 0
    %1155 = vmatpush1.bf16.msra.mxu0 0
    %1156 = vmatprep.subr.bf16.mxu0 0
    %1157 = vmatpush1.bf16.msra.mxu0 0
    %1158 = vmatprep.subr.bf16.mxu0 0
    %1159 = vmatpush1.bf16.msra.mxu0 0
    %1160 = vmatprep.subr.bf16.mxu0 0
    %1161 = vmatpush1.bf16.msra.mxu0 0
    %1162 = vmatprep.subr.bf16.mxu0 0
    %1163 = vmatpush1.bf16.msra.mxu0 0
    %1164 = vmatprep.subr.bf16.mxu0 0
    %1165 = vmatpush1.bf16.msra.mxu0 0
    %1166 = vmatprep.subr.bf16.mxu0 0
    %1167 = vmatpush1.bf16.msra.mxu0 0
    %1168 = vmatprep.subr.bf16.mxu0 0
    %1169 = vmatpush1.bf16.msra.mxu0 0
    %1170 = vmatprep.subr.bf16.mxu0 0
    %1171 = vmatpush1.bf16.msra.mxu0 0
    %1172 = vmatprep.subr.bf16.mxu0 0
    %1173 = vmatpush1.bf16.msra.mxu0 0
    %1174 = vmatprep.subr.bf16.mxu0 0
    %1175 = vmatpush1.bf16.msra.mxu0 0
    %1176 = vmatprep.subr.bf16.mxu0 0
    %1177 = vmatpush1.bf16.msra.mxu0 0
    %1178 = vmatprep.subr.bf16.mxu0 0
    %1179 = vmatpush1.bf16.msra.mxu0 0
    %1180 = vmatprep.mubr.bf16.mxu0 0
    %1181 = vmatmul.mubr.bf16.gmra.mrb[0].mxu0 %v1098
    %v1182 = vpop.f32.mrb[0].mxu0
    %v1183 = vadd.f32 %v1142, %v1182
    %v1184 = vpop.f32.mrb[0].mxu0
    %v1185 = vadd.f32 %v1144, %v1184
    %v1186 = vpop.f32.mrb[0].mxu0
    %v1187 = vpop.f32.mrb[0].mxu0
    %1188 = vdwg.mxu0
    %v1189 = vmax.f32 %v1183, 0.0
    %v1190 = vmax.f32 %v1185, 0.0
    %1194 = vrot.lane.b32.xlu0 %v79, 16
    %v1195 = vpop.permute.xlu0 %1194
    %1196 = vrot.lane.b32.xlu0 %v80, 16
    %v1197 = vpop.permute.xlu0 %1196
    %1198 = vrot.lane.b32.xlu0 %v81, 16
    %v1199 = vpop.permute.xlu0 %1198
    %vm1200 = vcmask 130048
    %v1201 = vsel %vm1200, %v1195, %v1197
    %v1202 = vsel %vm1200, %v1197, %v1199
    %v1205 = vsel %vm746, %v1202, 0
    %1207 = vmatprep.subr.bf16.mxu0 %v607
    %1208 = vmatpush1.bf16.msra.mxu0 %v606
    %1209 = vmatprep.subr.bf16.mxu0 %v612
    %1210 = vmatpush1.bf16.msra.mxu0 %v611
    %1211 = vmatprep.subr.bf16.mxu0 %v617
    %1212 = vmatpush1.bf16.msra.mxu0 %v616
    %1213 = vmatprep.subr.bf16.mxu0 %v622
    %1214 = vmatpush1.bf16.msra.mxu0 %v621
    %1215 = vmatprep.subr.bf16.mxu0 %v627
    %1216 = vmatpush1.bf16.msra.mxu0 %v626
    %1217 = vmatprep.subr.bf16.mxu0 %v632
    %1218 = vmatpush1.bf16.msra.mxu0 %v631
    %1219 = vmatprep.subr.bf16.mxu0 %v637
    %1220 = vmatpush1.bf16.msra.mxu0 %v636
    %1221 = vmatprep.subr.bf16.mxu0 %v642
    %1222 = vmatpush1.bf16.msra.mxu0 %v641
    %1223 = vmatprep.subr.bf16.mxu0 %v647
    %1224 = vmatpush1.bf16.msra.mxu0 %v646
    %1225 = vmatprep.subr.bf16.mxu0 %v652
    %1226 = vmatpush1.bf16.msra.mxu0 %v651
    %1227 = vmatprep.subr.bf16.mxu0 %v657
    %1228 = vmatpush1.bf16.msra.mxu0 %v656
    %1229 = vmatprep.subr.bf16.mxu0 %v662
    %1230 = vmatpush1.bf16.msra.mxu0 %v661
    %1231 = vmatprep.subr.bf16.mxu0 %v667
    %1232 = vmatpush1.bf16.msra.mxu0 %v666
    %1233 = vmatprep.subr.bf16.mxu0 %v672
    %1234 = vmatpush1.bf16.msra.mxu0 %v671
    %1235 = vmatprep.subr.bf16.mxu0 0
    %1236 = vmatpush1.bf16.msra.mxu0 0
    %1237 = vmatprep.subr.bf16.mxu0 0
    %1238 = vmatpush1.bf16.msra.mxu0 0
    %1239 = vmatprep.mubr.bf16.mxu0 %v1205
    %1240 = vmatmul.mubr.bf16.gmra.mrb[0].mxu0 %v1201
    %v1241 = vpop.f32.mrb[0].mxu0
    %v1242 = vadd.f32 0.0, %v1241
    %v1243 = vpop.f32.mrb[0].mxu0
    %v1244 = vadd.f32 0.0, %v1243
    %v1245 = vpop.f32.mrb[0].mxu0
    %v1246 = vpop.f32.mrb[0].mxu0
    %1247 = vdwg.mxu0
    %1248 = vmatprep.subr.bf16.mxu0 %v609
    %1249 = vmatpush1.bf16.msra.mxu0 %v608
    %1250 = vmatprep.subr.bf16.mxu0 %v614
    %1251 = vmatpush1.bf16.msra.mxu0 %v613
    %1252 = vmatprep.subr.bf16.mxu0 %v619
    %1253 = vmatpush1.bf16.msra.mxu0 %v618
    %1254 = vmatprep.subr.bf16.mxu0 %v624
    %1255 = vmatpush1.bf16.msra.mxu0 %v623
    %1256 = vmatprep.subr.bf16.mxu0 %v629
    %1257 = vmatpush1.bf16.msra.mxu0 %v628
    %1258 = vmatprep.subr.bf16.mxu0 %v634
    %1259 = vmatpush1.bf16.msra.mxu0 %v633
    %1260 = vmatprep.subr.bf16.mxu0 %v639
    %1261 = vmatpush1.bf16.msra.mxu0 %v638
    %1262 = vmatprep.subr.bf16.mxu0 %v644
    %1263 = vmatpush1.bf16.msra.mxu0 %v643
    %1264 = vmatprep.subr.bf16.mxu0 %v649
    %1265 = vmatpush1.bf16.msra.mxu0 %v648
    %1266 = vmatprep.subr.bf16.mxu0 %v654
    %1267 = vmatpush1.bf16.msra.mxu0 %v653
    %1268 = vmatprep.subr.bf16.mxu0 %v659
    %1269 = vmatpush1.bf16.msra.mxu0 %v658
    %1270 = vmatprep.subr.bf16.mxu0 %v664
    %1271 = vmatpush1.bf16.msra.mxu0 %v663
    %1272 = vmatprep.subr.bf16.mxu0 %v669
    %1273 = vmatpush1.bf16.msra.mxu0 %v668
    %1274 = vmatprep.subr.bf16.mxu0 %v674
    %1275 = vmatpush1.bf16.msra.mxu0 %v673
    %1276 = vmatprep.subr.bf16.mxu0 0
    %1277 = vmatpush1.bf16.msra.mxu0 0
    %1278 = vmatprep.subr.bf16.mxu0 0
    %1279 = vmatpush1.bf16.msra.mxu0 0
    %1280 = vmatprep.mubr.bf16.mxu0 %v1205
    %1281 = vmatmul.mubr.bf16.gmra.mrb[0].mxu0 %v1201
    %v1282 = vpop.f32.mrb[0].mxu0
    %v1283 = vadd.f32 0.0, %v1282
    %v1284 = vpop.f32.mrb[0].mxu0
    %v1285 = vadd.f32 0.0, %v1284
    %v1286 = vpop.f32.mrb[0].mxu0
    %v1287 = vpop.f32.mrb[0].mxu0
    %1288 = vdwg.mxu0
    %1289 = vmatprep.subr.bf16.mxu0 0
    %1290 = vmatpush1.bf16.msra.mxu0 %v610
    %1291 = vmatprep.subr.bf16.mxu0 0
    %1292 = vmatpush1.bf16.msra.mxu0 %v615
    %1293 = vmatprep.subr.bf16.mxu0 0
    %1294 = vmatpush1.bf16.msra.mxu0 %v620
    %1295 = vmatprep.subr.bf16.mxu0 0
    %1296 = vmatpush1.bf16.msra.mxu0 %v625
    %1297 = vmatprep.subr.bf16.mxu0 0
    %1298 = vmatpush1.bf16.msra.mxu0 %v630
    %1299 = vmatprep.subr.bf16.mxu0 0
    %1300 = vmatpush1.bf16.msra.mxu0 %v635
    %1301 = vmatprep.subr.bf16.mxu0 0
    %1302 = vmatpush1.bf16.msra.mxu0 %v640
    %1303 = vmatprep.subr.bf16.mxu0 0
    %1304 = vmatpush1.bf16.msra.mxu0 %v645
    %1305 = vmatprep.subr.bf16.mxu0 0
    %1306 = vmatpush1.bf16.msra.mxu0 %v650
    %1307 = vmatprep.subr.bf16.mxu0 0
    %1308 = vmatpush1.bf16.msra.mxu0 %v655
    %1309 = vmatprep.subr.bf16.mxu0 0
    %1310 = vmatpush1.bf16.msra.mxu0 %v660
    %1311 = vmatprep.subr.bf16.mxu0 0
    %1312 = vmatpush1.bf16.msra.mxu0 %v665
    %1313 = vmatprep.subr.bf16.mxu0 0
    %1314 = vmatpush1.bf16.msra.mxu0 %v670
    %1315 = vmatprep.subr.bf16.mxu0 0
    %1316 = vmatpush1.bf16.msra.mxu0 %v675
    %1317 = vmatprep.subr.bf16.mxu0 0
    %1318 = vmatpush1.bf16.msra.mxu0 0
    %1319 = vmatprep.subr.bf16.mxu0 0
    %1320 = vmatpush1.bf16.msra.mxu0 0
    %1321 = vmatprep.mubr.bf16.mxu0 %v1205
    %1322 = vmatmul.mubr.bf16.gmra.mrb[0].mxu0 %v1201
    %v1323 = vpop.f32.mrb[0].mxu0
    %v1324 = vadd.f32 0.0, %v1323
    %v1325 = vpop.f32.mrb[0].mxu0
    %v1326 = vpop.f32.mrb[0].mxu0
    %v1327 = vpop.f32.mrb[0].mxu0
    %1328 = vdwg.mxu0
    %1332 = vrot.lane.b32.xlu0 %v1283, 96
    %v1333 = vpop.permute.xlu0 %1332
    %1334 = vrot.lane.b32.xlu0 %v1285, 96
    %v1335 = vpop.permute.xlu0 %1334
    %1336 = vrot.lane.b32.xlu0 %v1324, 96
    %v1337 = vpop.permute.xlu0 %1336
    %v1338 = vsel %vm746, %v1333, %v1335
    %v1339 = vsel %vm746, %v1335, %v1337
    %v1343 = vmax.f32 %v1242, %v1338
    %v1344 = vmax.f32 %v1244, %v1339
    %v1345 = vmax.f32 %v1283, %v1337
    %1349 = vrot.lane.b32.xlu0 %v1343, 122
    %v1350 = vpop.permute.xlu0 %1349
    %1351 = vrot.lane.b32.xlu0 %v1344, 122
    %v1352 = vpop.permute.xlu0 %1351
    %1353 = vrot.lane.b32.xlu0 %v1345, 122
    %v1354 = vpop.permute.xlu0 %1353
    %v1355 = vsel %vm898, %v1350, %v1352
    %v1356 = vsel %vm898, %v1352, %v1354
    %v1360 = vmax.f32 %v1343, %v1355
    %v1361 = vmax.f32 %v1344, %v1356
    %v1362 = vmax.f32 %v1345, %v1354
    %v1363 = vpack.c.bf16 %v1360, %v1360
    %v1364 = vpack.c.bf16 %v1361, %v1361
    %v1365 = vpack.c.bf16 %v1362, %v1362
    %v1367 = vsel %vm1096, %v1365, 0
    %1369 = vmatprep.subr.bf16.mxu0 %v1027
    %1370 = vmatpush1.bf16.msra.mxu0 %v1026
    %1371 = vmatprep.subr.bf16.mxu0 %v1029
    %1372 = vmatpush1.bf16.msra.mxu0 %v1028
    %1373 = vmatprep.subr.bf16.mxu0 %v1031
    %1374 = vmatpush1.bf16.msra.mxu0 %v1030
    %1375 = vmatprep.subr.bf16.mxu0 %v1033
    %1376 = vmatpush1.bf16.msra.mxu0 %v1032
    %1377 = vmatprep.subr.bf16.mxu0 %v1035
    %1378 = vmatpush1.bf16.msra.mxu0 %v1034
    %1379 = vmatprep.subr.bf16.mxu0 %v1037
    %1380 = vmatpush1.bf16.msra.mxu0 %v1036
    %1381 = vmatprep.subr.bf16.mxu0 %v1039
    %1382 = vmatpush1.bf16.msra.mxu0 %v1038
    %1383 = vmatprep.subr.bf16.mxu0 %v1041
    %1384 = vmatpush1.bf16.msra.mxu0 %v1040
    %1385 = vmatprep.subr.bf16.mxu0 %v1043
    %1386 = vmatpush1.bf16.msra.mxu0 %v1042
    %1387 = vmatprep.subr.bf16.mxu0 %v1045
    %1388 = vmatpush1.bf16.msra.mxu0 %v1044
    %1389 = vmatprep.subr.bf16.mxu0 %v1047
    %1390 = vmatpush1.bf16.msra.mxu0 %v1046
    %1391 = vmatprep.subr.bf16.mxu0 %v1049
    %1392 = vmatpush1.bf16.msra.mxu0 %v1048
    %1393 = vmatprep.subr.bf16.mxu0 %v1051
    %1394 = vmatpush1.bf16.msra.mxu0 %v1050
    %1395 = vmatprep.subr.bf16.mxu0 %v1053
    %1396 = vmatpush1.bf16.msra.mxu0 %v1052
    %1397 = vmatprep.subr.bf16.mxu0 %v1055
    %1398 = vmatpush1.bf16.msra.mxu0 %v1054
    %1399 = vmatprep.subr.bf16.mxu0 %v1057
    %1400 = vmatpush1.bf16.msra.mxu0 %v1056
    %1401 = vmatprep.mubr.bf16.mxu0 %v1364
    %1402 = vmatmul.mubr.bf16.gmra.mrb[0].mxu0 %v1363
    %v1403 = vpop.f32.mrb[0].mxu0
    %v1404 = vadd.f32 %v913, %v1403
    %v1405 = vpop.f32.mrb[0].mxu0
    %v1406 = vadd.f32 %v917, %v1405
    %v1407 = vpop.f32.mrb[0].mxu0
    %v1408 = vpop.f32.mrb[0].mxu0
    %1409 = vdwg.mxu0
    %1410 = vmatprep.subr.bf16.mxu0 %v1059
    %1411 = vmatpush1.bf16.msra.mxu0 %v1058
    %1412 = vmatprep.subr.bf16.mxu0 %v1105
    %1413 = vmatpush1.bf16.msra.mxu0 %v1102
    %1414 = vmatprep.subr.bf16.mxu0 0
    %1415 = vmatpush1.bf16.msra.mxu0 0
    %1416 = vmatprep.subr.bf16.mxu0 0
    %1417 = vmatpush1.bf16.msra.mxu0 0
    %1418 = vmatprep.subr.bf16.mxu0 0
    %1419 = vmatpush1.bf16.msra.mxu0 0
    %1420 = vmatprep.subr.bf16.mxu0 0
    %1421 = vmatpush1.bf16.msra.mxu0 0
    %1422 = vmatprep.subr.bf16.mxu0 0
    %1423 = vmatpush1.bf16.msra.mxu0 0
    %1424 = vmatprep.subr.bf16.mxu0 0
    %1425 = vmatpush1.bf16.msra.mxu0 0
    %1426 = vmatprep.subr.bf16.mxu0 0
    %1427 = vmatpush1.bf16.msra.mxu0 0
    %1428 = vmatprep.subr.bf16.mxu0 0
    %1429 = vmatpush1.bf16.msra.mxu0 0
    %1430 = vmatprep.subr.bf16.mxu0 0
    %1431 = vmatpush1.bf16.msra.mxu0 0
    %1432 = vmatprep.subr.bf16.mxu0 0
    %1433 = vmatpush1.bf16.msra.mxu0 0
    %1434 = vmatprep.subr.bf16.mxu0 0
    %1435 = vmatpush1.bf16.msra.mxu0 0
    %1436 = vmatprep.subr.bf16.mxu0 0
    %1437 = vmatpush1.bf16.msra.mxu0 0
    %1438 = vmatprep.subr.bf16.mxu0 0
    %1439 = vmatpush1.bf16.msra.mxu0 0
    %1440 = vmatprep.subr.bf16.mxu0 0
    %1441 = vmatpush1.bf16.msra.mxu0 0
    %1442 = vmatprep.mubr.bf16.mxu0 0
    %1443 = vmatmul.mubr.bf16.gmra.mrb[0].mxu0 %v1367
    %v1444 = vpop.f32.mrb[0].mxu0
    %v1445 = vadd.f32 %v1404, %v1444
    %v1446 = vpop.f32.mrb[0].mxu0
    %v1447 = vadd.f32 %v1406, %v1446
    %v1448 = vpop.f32.mrb[0].mxu0
    %v1449 = vpop.f32.mrb[0].mxu0
    %1450 = vdwg.mxu0
    %v1451 = vmax.f32 %v1445, 0.0
    %v1452 = vmax.f32 %v1447, 0.0
    %1454 = vrot.lane.b32.xlu0 %v80, 32
    %v1455 = vpop.permute.xlu0 %1454
    %1456 = vrot.lane.b32.xlu0 %v81, 32
    %v1457 = vpop.permute.xlu0 %1456
    %1458 = vrot.lane.b32.xlu0 %v82, 32
    %v1459 = vpop.permute.xlu0 %1458
    %vm1460 = vcmask 261120
    %v1461 = vsel %vm1460, %v1455, %v1457
    %v1462 = vsel %vm1460, %v1457, %v1459
    %v1465 = vsel %vm746, %v1462, 0
    %1467 = vmatprep.subr.bf16.mxu0 %v607
    %1468 = vmatpush1.bf16.msra.mxu0 %v606
    %1469 = vmatprep.subr.bf16.mxu0 %v612
    %1470 = vmatpush1.bf16.msra.mxu0 %v611
    %1471 = vmatprep.subr.bf16.mxu0 %v617
    %1472 = vmatpush1.bf16.msra.mxu0 %v616
    %1473 = vmatprep.subr.bf16.mxu0 %v622
    %1474 = vmatpush1.bf16.msra.mxu0 %v621
    %1475 = vmatprep.subr.bf16.mxu0 %v627
    %1476 = vmatpush1.bf16.msra.mxu0 %v626
    %1477 = vmatprep.subr.bf16.mxu0 %v632
    %1478 = vmatpush1.bf16.msra.mxu0 %v631
    %1479 = vmatprep.subr.bf16.mxu0 %v637
    %1480 = vmatpush1.bf16.msra.mxu0 %v636
    %1481 = vmatprep.subr.bf16.mxu0 %v642
    %1482 = vmatpush1.bf16.msra.mxu0 %v641
    %1483 = vmatprep.subr.bf16.mxu0 %v647
    %1484 = vmatpush1.bf16.msra.mxu0 %v646
    %1485 = vmatprep.subr.bf16.mxu0 %v652
    %1486 = vmatpush1.bf16.msra.mxu0 %v651
    %1487 = vmatprep.subr.bf16.mxu0 %v657
    %1488 = vmatpush1.bf16.msra.mxu0 %v656
    %1489 = vmatprep.subr.bf16.mxu0 %v662
    %1490 = vmatpush1.bf16.msra.mxu0 %v661
    %1491 = vmatprep.subr.bf16.mxu0 %v667
    %1492 = vmatpush1.bf16.msra.mxu0 %v666
    %1493 = vmatprep.subr.bf16.mxu0 %v672
    %1494 = vmatpush1.bf16.msra.mxu0 %v671
    %1495 = vmatprep.subr.bf16.mxu0 0
    %1496 = vmatpush1.bf16.msra.mxu0 0
    %1497 = vmatprep.subr.bf16.mxu0 0
    %1498 = vmatpush1.bf16.msra.mxu0 0
    %1499 = vmatprep.mubr.bf16.mxu0 %v1465
    %1500 = vmatmul.mubr.bf16.gmra.mrb[0].mxu0 %v1461
    %v1501 = vpop.f32.mrb[0].mxu0
    %v1502 = vadd.f32 0.0, %v1501
    %v1503 = vpop.f32.mrb[0].mxu0
    %v1504 = vadd.f32 0.0, %v1503
    %v1505 = vpop.f32.mrb[0].mxu0
    %v1506 = vpop.f32.mrb[0].mxu0
    %1507 = vdwg.mxu0
    %1508 = vmatprep.subr.bf16.mxu0 %v609
    %1509 = vmatpush1.bf16.msra.mxu0 %v608
    %1510 = vmatprep.subr.bf16.mxu0 %v614
    %1511 = vmatpush1.bf16.msra.mxu0 %v613
    %1512 = vmatprep.subr.bf16.mxu0 %v619
    %1513 = vmatpush1.bf16.msra.mxu0 %v618
    %1514 = vmatprep.subr.bf16.mxu0 %v624
    %1515 = vmatpush1.bf16.msra.mxu0 %v623
    %1516 = vmatprep.subr.bf16.mxu0 %v629
    %1517 = vmatpush1.bf16.msra.mxu0 %v628
    %1518 = vmatprep.subr.bf16.mxu0 %v634
    %1519 = vmatpush1.bf16.msra.mxu0 %v633
    %1520 = vmatprep.subr.bf16.mxu0 %v639
    %1521 = vmatpush1.bf16.msra.mxu0 %v638
    %1522 = vmatprep.subr.bf16.mxu0 %v644
    %1523 = vmatpush1.bf16.msra.mxu0 %v643
    %1524 = vmatprep.subr.bf16.mxu0 %v649
    %1525 = vmatpush1.bf16.msra.mxu0 %v648
    %1526 = vmatprep.subr.bf16.mxu0 %v654
    %1527 = vmatpush1.bf16.msra.mxu0 %v653
    %1528 = vmatprep.subr.bf16.mxu0 %v659
    %1529 = vmatpush1.bf16.msra.mxu0 %v658
    %1530 = vmatprep.subr.bf16.mxu0 %v664
    %1531 = vmatpush1.bf16.msra.mxu0 %v663
    %1532 = vmatprep.subr.bf16.mxu0 %v669
    %1533 = vmatpush1.bf16.msra.mxu0 %v668
    %1534 = vmatprep.subr.bf16.mxu0 %v674
    %1535 = vmatpush1.bf16.msra.mxu0 %v673
    %1536 = vmatprep.subr.bf16.mxu0 0
    %1537 = vmatpush1.bf16.msra.mxu0 0
    %1538 = vmatprep.subr.bf16.mxu0 0
    %1539 = vmatpush1.bf16.msra.mxu0 0
    %1540 = vmatprep.mubr.bf16.mxu0 %v1465
    %1541 = vmatmul.mubr.bf16.gmra.mrb[0].mxu0 %v1461
    %v1542 = vpop.f32.mrb[0].mxu0
    %v1543 = vadd.f32 0.0, %v1542
    %v1544 = vpop.f32.mrb[0].mxu0
    %v1545 = vadd.f32 0.0, %v1544
    %v1546 = vpop.f32.mrb[0].mxu0
    %v1547 = vpop.f32.mrb[0].mxu0
    %1548 = vdwg.mxu0
    %1549 = vmatprep.subr.bf16.mxu0 0
    %1550 = vmatpush1.bf16.msra.mxu0 %v610
    %1551 = vmatprep.subr.bf16.mxu0 0
    %1552 = vmatpush1.bf16.msra.mxu0 %v615
    %1553 = vmatprep.subr.bf16.mxu0 0
    %1554 = vmatpush1.bf16.msra.mxu0 %v620
    %1555 = vmatprep.subr.bf16.mxu0 0
    %1556 = vmatpush1.bf16.msra.mxu0 %v625
    %1557 = vmatprep.subr.bf16.mxu0 0
    %1558 = vmatpush1.bf16.msra.mxu0 %v630
    %1559 = vmatprep.subr.bf16.mxu0 0
    %1560 = vmatpush1.bf16.msra.mxu0 %v635
    %1561 = vmatprep.subr.bf16.mxu0 0
    %1562 = vmatpush1.bf16.msra.mxu0 %v640
    %1563 = vmatprep.subr.bf16.mxu0 0
    %1564 = vmatpush1.bf16.msra.mxu0 %v645
    %1565 = vmatprep.subr.bf16.mxu0 0
    %1566 = vmatpush1.bf16.msra.mxu0 %v650
    %1567 = vmatprep.subr.bf16.mxu0 0
    %1568 = vmatpush1.bf16.msra.mxu0 %v655
    %1569 = vmatprep.subr.bf16.mxu0 0
    %1570 = vmatpush1.bf16.msra.mxu0 %v660
    %1571 = vmatprep.subr.bf16.mxu0 0
    %1572 = vmatpush1.bf16.msra.mxu0 %v665
    %1573 = vmatprep.subr.bf16.mxu0 0
    %1574 = vmatpush1.bf16.msra.mxu0 %v670
    %1575 = vmatprep.subr.bf16.mxu0 0
    %1576 = vmatpush1.bf16.msra.mxu0 %v675
    %1577 = vmatprep.subr.bf16.mxu0 0
    %1578 = vmatpush1.bf16.msra.mxu0 0
    %1579 = vmatprep.subr.bf16.mxu0 0
    %1580 = vmatpush1.bf16.msra.mxu0 0
    %1581 = vmatprep.mubr.bf16.mxu0 %v1465
    %1582 = vmatmul.mubr.bf16.gmra.mrb[0].mxu0 %v1461
    %v1583 = vpop.f32.mrb[0].mxu0
    %v1584 = vadd.f32 0.0, %v1583
    %v1585 = vpop.f32.mrb[0].mxu0
    %v1586 = vpop.f32.mrb[0].mxu0
    %v1587 = vpop.f32.mrb[0].mxu0
    %1588 = vdwg.mxu0
    %1592 = vrot.lane.b32.xlu0 %v1543, 96
    %v1593 = vpop.permute.xlu0 %1592
    %1594 = vrot.lane.b32.xlu0 %v1545, 96
    %v1595 = vpop.permute.xlu0 %1594
    %1596 = vrot.lane.b32.xlu0 %v1584, 96
    %v1597 = vpop.permute.xlu0 %1596
    %v1598 = vsel %vm746, %v1593, %v1595
    %v1599 = vsel %vm746, %v1595, %v1597
    %v1603 = vmax.f32 %v1502, %v1598
    %v1604 = vmax.f32 %v1504, %v1599
    %v1605 = vmax.f32 %v1543, %v1597
    %1609 = vrot.lane.b32.xlu0 %v1603, 122
    %v1610 = vpop.permute.xlu0 %1609
    %1611 = vrot.lane.b32.xlu0 %v1604, 122
    %v1612 = vpop.permute.xlu0 %1611
    %1613 = vrot.lane.b32.xlu0 %v1605, 122
    %v1614 = vpop.permute.xlu0 %1613
    %v1615 = vsel %vm898, %v1610, %v1612
    %v1616 = vsel %vm898, %v1612, %v1614
    %v1620 = vmax.f32 %v1603, %v1615
    %v1621 = vmax.f32 %v1604, %v1616
    %v1622 = vmax.f32 %v1605, %v1614
    %v1623 = vpack.c.bf16 %v1620, %v1620
    %v1624 = vpack.c.bf16 %v1621, %v1621
    %v1625 = vpack.c.bf16 %v1622, %v1622
    %v1627 = vsel %vm1096, %v1625, 0
    %1629 = vmatprep.subr.bf16.mxu0 %v1027
    %1630 = vmatpush1.bf16.msra.mxu0 %v1026
    %1631 = vmatprep.subr.bf16.mxu0 %v1029
    %1632 = vmatpush1.bf16.msra.mxu0 %v1028
    %1633 = vmatprep.subr.bf16.mxu0 %v1031
    %1634 = vmatpush1.bf16.msra.mxu0 %v1030
    %1635 = vmatprep.subr.bf16.mxu0 %v1033
    %1636 = vmatpush1.bf16.msra.mxu0 %v1032
    %1637 = vmatprep.subr.bf16.mxu0 %v1035
    %1638 = vmatpush1.bf16.msra.mxu0 %v1034
    %1639 = vmatprep.subr.bf16.mxu0 %v1037
    %1640 = vmatpush1.bf16.msra.mxu0 %v1036
    %1641 = vmatprep.subr.bf16.mxu0 %v1039
    %1642 = vmatpush1.bf16.msra.mxu0 %v1038
    %1643 = vmatprep.subr.bf16.mxu0 %v1041
    %1644 = vmatpush1.bf16.msra.mxu0 %v1040
    %1645 = vmatprep.subr.bf16.mxu0 %v1043
    %1646 = vmatpush1.bf16.msra.mxu0 %v1042
    %1647 = vmatprep.subr.bf16.mxu0 %v1045
    %1648 = vmatpush1.bf16.msra.mxu0 %v1044
    %1649 = vmatprep.subr.bf16.mxu0 %v1047
    %1650 = vmatpush1.bf16.msra.mxu0 %v1046
    %1651 = vmatprep.subr.bf16.mxu0 %v1049
    %1652 = vmatpush1.bf16.msra.mxu0 %v1048
    %1653 = vmatprep.subr.bf16.mxu0 %v1051
    %1654 = vmatpush1.bf16.msra.mxu0 %v1050
    %1655 = vmatprep.subr.bf16.mxu0 %v1053
    %1656 = vmatpush1.bf16.msra.mxu0 %v1052
    %1657 = vmatprep.subr.bf16.mxu0 %v1055
    %1658 = vmatpush1.bf16.msra.mxu0 %v1054
    %1659 = vmatprep.subr.bf16.mxu0 %v1057
    %1660 = vmatpush1.bf16.msra.mxu0 %v1056
    %1661 = vmatprep.mubr.bf16.mxu0 %v1624
    %1662 = vmatmul.mubr.bf16.gmra.mrb[0].mxu0 %v1623
    %v1663 = vpop.f32.mrb[0].mxu0
    %v1664 = vadd.f32 %v913, %v1663
    %v1665 = vpop.f32.mrb[0].mxu0
    %v1666 = vadd.f32 %v917, %v1665
    %v1667 = vpop.f32.mrb[0].mxu0
    %v1668 = vpop.f32.mrb[0].mxu0
    %1669 = vdwg.mxu0
    %1670 = vmatprep.subr.bf16.mxu0 %v1059
    %1671 = vmatpush1.bf16.msra.mxu0 %v1058
    %1672 = vmatprep.subr.bf16.mxu0 %v1105
    %1673 = vmatpush1.bf16.msra.mxu0 %v1102
    %1674 = vmatprep.subr.bf16.mxu0 0
    %1675 = vmatpush1.bf16.msra.mxu0 0
    %1676 = vmatprep.subr.bf16.mxu0 0
    %1677 = vmatpush1.bf16.msra.mxu0 0
    %1678 = vmatprep.subr.bf16.mxu0 0
    %1679 = vmatpush1.bf16.msra.mxu0 0
    %1680 = vmatprep.subr.bf16.mxu0 0
    %1681 = vmatpush1.bf16.msra.mxu0 0
    %1682 = vmatprep.subr.bf16.mxu0 0
    %1683 = vmatpush1.bf16.msra.mxu0 0
    %1684 = vmatprep.subr.bf16.mxu0 0
    %1685 = vmatpush1.bf16.msra.mxu0 0
    %1686 = vmatprep.subr.bf16.mxu0 0
    %1687 = vmatpush1.bf16.msra.mxu0 0
    %1688 = vmatprep.subr.bf16.mxu0 0
    %1689 = vmatpush1.bf16.msra.mxu0 0
    %1690 = vmatprep.subr.bf16.mxu0 0
    %1691 = vmatpush1.bf16.msra.mxu0 0
    %1692 = vmatprep.subr.bf16.mxu0 0
    %1693 = vmatpush1.bf16.msra.mxu0 0
    %1694 = vmatprep.subr.bf16.mxu0 0
    %1695 = vmatpush1.bf16.msra.mxu0 0
    %1696 = vmatprep.subr.bf16.mxu0 0
    %1697 = vmatpush1.bf16.msra.mxu0 0
    %1698 = vmatprep.subr.bf16.mxu0 0
    %1699 = vmatpush1.bf16.msra.mxu0 0
    %1700 = vmatprep.subr.bf16.mxu0 0
    %1701 = vmatpush1.bf16.msra.mxu0 0
    %1702 = vmatprep.mubr.bf16.mxu0 0
    %1703 = vmatmul.mubr.bf16.gmra.mrb[0].mxu0 %v1627
    %v1704 = vpop.f32.mrb[0].mxu0
    %v1705 = vadd.f32 %v1664, %v1704
    %v1706 = vpop.f32.mrb[0].mxu0
    %v1707 = vadd.f32 %v1666, %v1706
    %v1708 = vpop.f32.mrb[0].mxu0
    %v1709 = vpop.f32.mrb[0].mxu0
    %1710 = vdwg.mxu0
    %v1711 = vmax.f32 %v1705, 0.0
    %v1712 = vmax.f32 %v1707, 0.0
    %1714 = vrot.lane.b32.xlu0 %v81, 48
    %v1715 = vpop.permute.xlu0 %1714
    %1716 = vrot.lane.b32.xlu0 %v82, 48
    %v1717 = vpop.permute.xlu0 %1716
    %1718 = vrot.lane.b32.xlu0 %v83, 48
    %v1719 = vpop.permute.xlu0 %1718
    %vm1720 = vcmask 392192
    %v1721 = vsel %vm1720, %v1715, %v1717
    %v1722 = vsel %vm1720, %v1717, %v1719
    %v1725 = vsel %vm746, %v1722, 0
    %1727 = vmatprep.subr.bf16.mxu0 %v607
    %1728 = vmatpush1.bf16.msra.mxu0 %v606
    %1729 = vmatprep.subr.bf16.mxu0 %v612
    %1730 = vmatpush1.bf16.msra.mxu0 %v611
    %1731 = vmatprep.subr.bf16.mxu0 %v617
    %1732 = vmatpush1.bf16.msra.mxu0 %v616
    %1733 = vmatprep.subr.bf16.mxu0 %v622
    %1734 = vmatpush1.bf16.msra.mxu0 %v621
    %1735 = vmatprep.subr.bf16.mxu0 %v627
    %1736 = vmatpush1.bf16.msra.mxu0 %v626
    %1737 = vmatprep.subr.bf16.mxu0 %v632
    %1738 = vmatpush1.bf16.msra.mxu0 %v631
    %1739 = vmatprep.subr.bf16.mxu0 %v637
    %1740 = vmatpush1.bf16.msra.mxu0 %v636
    %1741 = vmatprep.subr.bf16.mxu0 %v642
    %1742 = vmatpush1.bf16.msra.mxu0 %v641
    %1743 = vmatprep.subr.bf16.mxu0 %v647
    %1744 = vmatpush1.bf16.msra.mxu0 %v646
    %1745 = vmatprep.subr.bf16.mxu0 %v652
    %1746 = vmatpush1.bf16.msra.mxu0 %v651
    %1747 = vmatprep.subr.bf16.mxu0 %v657
    %1748 = vmatpush1.bf16.msra.mxu0 %v656
    %1749 = vmatprep.subr.bf16.mxu0 %v662
    %1750 = vmatpush1.bf16.msra.mxu0 %v661
    %1751 = vmatprep.subr.bf16.mxu0 %v667
    %1752 = vmatpush1.bf16.msra.mxu0 %v666
    %1753 = vmatprep.subr.bf16.mxu0 %v672
    %1754 = vmatpush1.bf16.msra.mxu0 %v671
    %1755 = vmatprep.subr.bf16.mxu0 0
    %1756 = vmatpush1.bf16.msra.mxu0 0
    %1757 = vmatprep.subr.bf16.mxu0 0
    %1758 = vmatpush1.bf16.msra.mxu0 0
    %1759 = vmatprep.mubr.bf16.mxu0 %v1725
    %1760 = vmatmul.mubr.bf16.gmra.mrb[0].mxu0 %v1721
    %v1761 = vpop.f32.mrb[0].mxu0
    %v1762 = vadd.f32 0.0, %v1761
    %v1763 = vpop.f32.mrb[0].mxu0
    %v1764 = vadd.f32 0.0, %v1763
    %v1765 = vpop.f32.mrb[0].mxu0
    %v1766 = vpop.f32.mrb[0].mxu0
    %1767 = vdwg.mxu0
    %1768 = vmatprep.subr.bf16.mxu0 %v609
    %1769 = vmatpush1.bf16.msra.mxu0 %v608
    %1770 = vmatprep.subr.bf16.mxu0 %v614
    %1771 = vmatpush1.bf16.msra.mxu0 %v613
    %1772 = vmatprep.subr.bf16.mxu0 %v619
    %1773 = vmatpush1.bf16.msra.mxu0 %v618
    %1774 = vmatprep.subr.bf16.mxu0 %v624
    %1775 = vmatpush1.bf16.msra.mxu0 %v623
    %1776 = vmatprep.subr.bf16.mxu0 %v629
    %1777 = vmatpush1.bf16.msra.mxu0 %v628
    %1778 = vmatprep.subr.bf16.mxu0 %v634
    %1779 = vmatpush1.bf16.msra.mxu0 %v633
    %1780 = vmatprep.subr.bf16.mxu0 %v639
    %1781 = vmatpush1.bf16.msra.mxu0 %v638
    %1782 = vmatprep.subr.bf16.mxu0 %v644
    %1783 = vmatpush1.bf16.msra.mxu0 %v643
    %1784 = vmatprep.subr.bf16.mxu0 %v649
    %1785 = vmatpush1.bf16.msra.mxu0 %v648
    %1786 = vmatprep.subr.bf16.mxu0 %v654
    %1787 = vmatpush1.bf16.msra.mxu0 %v653
    %1788 = vmatprep.subr.bf16.mxu0 %v659
    %1789 = vmatpush1.bf16.msra.mxu0 %v658
    %1790 = vmatprep.subr.bf16.mxu0 %v664
    %1791 = vmatpush1.bf16.msra.mxu0 %v663
    %1792 = vmatprep.subr.bf16.mxu0 %v669
    %1793 = vmatpush1.bf16.msra.mxu0 %v668
    %1794 = vmatprep.subr.bf16.mxu0 %v674
    %1795 = vmatpush1.bf16.msra.mxu0 %v673
    %1796 = vmatprep.subr.bf16.mxu0 0
    %1797 = vmatpush1.bf16.msra.mxu0 0
    %1798 = vmatprep.subr.bf16.mxu0 0
    %1799 = vmatpush1.bf16.msra.mxu0 0
    %1800 = vmatprep.mubr.bf16.mxu0 %v1725
    %1801 = vmatmul.mubr.bf16.gmra.mrb[0].mxu0 %v1721
    %v1802 = vpop.f32.mrb[0].mxu0
    %v1803 = vadd.f32 0.0, %v1802
    %v1804 = vpop.f32.mrb[0].mxu0
    %v1805 = vadd.f32 0.0, %v1804
    %v1806 = vpop.f32.mrb[0].mxu0
    %v1807 = vpop.f32.mrb[0].mxu0
    %1808 = vdwg.mxu0
    %1809 = vmatprep.subr.bf16.mxu0 0
    %1810 = vmatpush1.bf16.msra.mxu0 %v610
    %1811 = vmatprep.subr.bf16.mxu0 0
    %1812 = vmatpush1.bf16.msra.mxu0 %v615
    %1813 = vmatprep.subr.bf16.mxu0 0
    %1814 = vmatpush1.bf16.msra.mxu0 %v620
    %1815 = vmatprep.subr.bf16.mxu0 0
    %1816 = vmatpush1.bf16.msra.mxu0 %v625
    %1817 = vmatprep.subr.bf16.mxu0 0
    %1818 = vmatpush1.bf16.msra.mxu0 %v630
    %1819 = vmatprep.subr.bf16.mxu0 0
    %1820 = vmatpush1.bf16.msra.mxu0 %v635
    %1821 = vmatprep.subr.bf16.mxu0 0
    %1822 = vmatpush1.bf16.msra.mxu0 %v640
    %1823 = vmatprep.subr.bf16.mxu0 0
    %1824 = vmatpush1.bf16.msra.mxu0 %v645
    %1825 = vmatprep.subr.bf16.mxu0 0
    %1826 = vmatpush1.bf16.msra.mxu0 %v650
    %1827 = vmatprep.subr.bf16.mxu0 0
    %1828 = vmatpush1.bf16.msra.mxu0 %v655
    %1829 = vmatprep.subr.bf16.mxu0 0
    %1830 = vmatpush1.bf16.msra.mxu0 %v660
    %1831 = vmatprep.subr.bf16.mxu0 0
    %1832 = vmatpush1.bf16.msra.mxu0 %v665
    %1833 = vmatprep.subr.bf16.mxu0 0
    %1834 = vmatpush1.bf16.msra.mxu0 %v670
    %1835 = vmatprep.subr.bf16.mxu0 0
    %1836 = vmatpush1.bf16.msra.mxu0 %v675
    %1837 = vmatprep.subr.bf16.mxu0 0
    %1838 = vmatpush1.bf16.msra.mxu0 0
    %1839 = vmatprep.subr.bf16.mxu0 0
    %1840 = vmatpush1.bf16.msra.mxu0 0
    %1841 = vmatprep.mubr.bf16.mxu0 %v1725
    %1842 = vmatmul.mubr.bf16.gmra.mrb[0].mxu0 %v1721
    %v1843 = vpop.f32.mrb[0].mxu0
    %v1844 = vadd.f32 0.0, %v1843
    %v1845 = vpop.f32.mrb[0].mxu0
    %v1846 = vpop.f32.mrb[0].mxu0
    %v1847 = vpop.f32.mrb[0].mxu0
    %1848 = vdwg.mxu0
    %1852 = vrot.lane.b32.xlu0 %v1803, 96
    %v1853 = vpop.permute.xlu0 %1852
    %1854 = vrot.lane.b32.xlu0 %v1805, 96
    %v1855 = vpop.permute.xlu0 %1854
    %1856 = vrot.lane.b32.xlu0 %v1844, 96
    %v1857 = vpop.permute.xlu0 %1856
    %v1858 = vsel %vm746, %v1853, %v1855
    %v1859 = vsel %vm746, %v1855, %v1857
    %v1863 = vmax.f32 %v1762, %v1858
    %v1864 = vmax.f32 %v1764, %v1859
    %v1865 = vmax.f32 %v1803, %v1857
    %1869 = vrot.lane.b32.xlu0 %v1863, 122
    %v1870 = vpop.permute.xlu0 %1869
    %1871 = vrot.lane.b32.xlu0 %v1864, 122
    %v1872 = vpop.permute.xlu0 %1871
    %1873 = vrot.lane.b32.xlu0 %v1865, 122
    %v1874 = vpop.permute.xlu0 %1873
    %v1875 = vsel %vm898, %v1870, %v1872
    %v1876 = vsel %vm898, %v1872, %v1874
    %v1880 = vmax.f32 %v1863, %v1875
    %v1881 = vmax.f32 %v1864, %v1876
    %v1882 = vmax.f32 %v1865, %v1874
    %v1883 = vpack.c.bf16 %v1880, %v1880
    %v1884 = vpack.c.bf16 %v1881, %v1881
    %v1885 = vpack.c.bf16 %v1882, %v1882
    %v1887 = vsel %vm1096, %v1885, 0
    %1889 = vmatprep.subr.bf16.mxu0 %v1027
    %1890 = vmatpush1.bf16.msra.mxu0 %v1026
    %1891 = vmatprep.subr.bf16.mxu0 %v1029
    %1892 = vmatpush1.bf16.msra.mxu0 %v1028
    %1893 = vmatprep.subr.bf16.mxu0 %v1031
    %1894 = vmatpush1.bf16.msra.mxu0 %v1030
    %1895 = vmatprep.subr.bf16.mxu0 %v1033
    %1896 = vmatpush1.bf16.msra.mxu0 %v1032
    %1897 = vmatprep.subr.bf16.mxu0 %v1035
    %1898 = vmatpush1.bf16.msra.mxu0 %v1034
    %1899 = vmatprep.subr.bf16.mxu0 %v1037
    %1900 = vmatpush1.bf16.msra.mxu0 %v1036
    %1901 = vmatprep.subr.bf16.mxu0 %v1039
    %1902 = vmatpush1.bf16.msra.mxu0 %v1038
    %1903 = vmatprep.subr.bf16.mxu0 %v1041
    %1904 = vmatpush1.bf16.msra.mxu0 %v1040
    %1905 = vmatprep.subr.bf16.mxu0 %v1043
    %1906 = vmatpush1.bf16.msra.mxu0 %v1042
    %1907 = vmatprep.subr.bf16.mxu0 %v1045
    %1908 = vmatpush1.bf16.msra.mxu0 %v1044
    %1909 = vmatprep.subr.bf16.mxu0 %v1047
    %1910 = vmatpush1.bf16.msra.mxu0 %v1046
    %1911 = vmatprep.subr.bf16.mxu0 %v1049
    %1912 = vmatpush1.bf16.msra.mxu0 %v1048
    %1913 = vmatprep.subr.bf16.mxu0 %v1051
    %1914 = vmatpush1.bf16.msra.mxu0 %v1050
    %1915 = vmatprep.subr.bf16.mxu0 %v1053
    %1916 = vmatpush1.bf16.msra.mxu0 %v1052
    %1917 = vmatprep.subr.bf16.mxu0 %v1055
    %1918 = vmatpush1.bf16.msra.mxu0 %v1054
    %1919 = vmatprep.subr.bf16.mxu0 %v1057
    %1920 = vmatpush1.bf16.msra.mxu0 %v1056
    %1921 = vmatprep.mubr.bf16.mxu0 %v1884
    %1922 = vmatmul.mubr.bf16.gmra.mrb[0].mxu0 %v1883
    %v1923 = vpop.f32.mrb[0].mxu0
    %v1924 = vadd.f32 %v913, %v1923
    %v1925 = vpop.f32.mrb[0].mxu0
    %v1926 = vadd.f32 %v917, %v1925
    %v1927 = vpop.f32.mrb[0].mxu0
    %v1928 = vpop.f32.mrb[0].mxu0
    %1929 = vdwg.mxu0
    %1930 = vmatprep.subr.bf16.mxu0 %v1059
    %1931 = vmatpush1.bf16.msra.mxu0 %v1058
    %1932 = vmatprep.subr.bf16.mxu0 %v1105
    %1933 = vmatpush1.bf16.msra.mxu0 %v1102
    %1934 = vmatprep.subr.bf16.mxu0 0
    %1935 = vmatpush1.bf16.msra.mxu0 0
    %1936 = vmatprep.subr.bf16.mxu0 0
    %1937 = vmatpush1.bf16.msra.mxu0 0
    %1938 = vmatprep.subr.bf16.mxu0 0
    %1939 = vmatpush1.bf16.msra.mxu0 0
    %1940 = vmatprep.subr.bf16.mxu0 0
    %1941 = vmatpush1.bf16.msra.mxu0 0
    %1942 = vmatprep.subr.bf16.mxu0 0
    %1943 = vmatpush1.bf16.msra.mxu0 0
    %1944 = vmatprep.subr.bf16.mxu0 0
    %1945 = vmatpush1.bf16.msra.mxu0 0
    %1946 = vmatprep.subr.bf16.mxu0 0
    %1947 = vmatpush1.bf16.msra.mxu0 0
    %1948 = vmatprep.subr.bf16.mxu0 0
    %1949 = vmatpush1.bf16.msra.mxu0 0
    %1950 = vmatprep.subr.bf16.mxu0 0
    %1951 = vmatpush1.bf16.msra.mxu0 0
    %1952 = vmatprep.subr.bf16.mxu0 0
    %1953 = vmatpush1.bf16.msra.mxu0 0
    %1954 = vmatprep.subr.bf16.mxu0 0
    %1955 = vmatpush1.bf16.msra.mxu0 0
    %1956 = vmatprep.subr.bf16.mxu0 0
    %1957 = vmatpush1.bf16.msra.mxu0 0
    %1958 = vmatprep.subr.bf16.mxu0 0
    %1959 = vmatpush1.bf16.msra.mxu0 0
    %1960 = vmatprep.subr.bf16.mxu0 0
    %1961 = vmatpush1.bf16.msra.mxu0 0
    %1962 = vmatprep.mubr.bf16.mxu0 0
    %1963 = vmatmul.mubr.bf16.gmra.mrb[0].mxu0 %v1887
    %v1964 = vpop.f32.mrb[0].mxu0
    %v1965 = vadd.f32 %v1924, %v1964
    %v1966 = vpop.f32.mrb[0].mxu0
    %v1967 = vadd.f32 %v1926, %v1966
    %v1968 = vpop.f32.mrb[0].mxu0
    %v1969 = vpop.f32.mrb[0].mxu0
    %1970 = vdwg.mxu0
    %v1971 = vmax.f32 %v1965, 0.0
    %v1972 = vmax.f32 %v1967, 0.0
    %1974 = vrot.lane.b32.xlu0 %v82, 64
    %v1975 = vpop.permute.xlu0 %1974
    %1976 = vrot.lane.b32.xlu0 %v83, 64
    %v1977 = vpop.permute.xlu0 %1976
    %1978 = vrot.lane.b32.xlu0 %v84, 64
    %v1979 = vpop.permute.xlu0 %1978
    %vm1980 = vcmask 523264
    %v1981 = vsel %vm1980, %v1975, %v1977
    %v1982 = vsel %vm1980, %v1977, %v1979
    %v1985 = vsel %vm746, %v1982, 0
    %1987 = vmatprep.subr.bf16.mxu0 %v607
    %1988 = vmatpush1.bf16.msra.mxu0 %v606
    %1989 = vmatprep.subr.bf16.mxu0 %v612
    %1990 = vmatpush1.bf16.msra.mxu0 %v611
    %1991 = vmatprep.subr.bf16.mxu0 %v617
    %1992 = vmatpush1.bf16.msra.mxu0 %v616
    %1993 = vmatprep.subr.bf16.mxu0 %v622
    %1994 = vmatpush1.bf16.msra.mxu0 %v621
    %1995 = vmatprep.subr.bf16.mxu0 %v627
    %1996 = vmatpush1.bf16.msra.mxu0 %v626
    %1997 = vmatprep.subr.bf16.mxu0 %v632
    %1998 = vmatpush1.bf16.msra.mxu0 %v631
    %1999 = vmatprep.subr.bf16.mxu0 %v637
    %2000 = vmatpush1.bf16.msra.mxu0 %v636
    %2001 = vmatprep.subr.bf16.mxu0 %v642
    %2002 = vmatpush1.bf16.msra.mxu0 %v641
    %2003 = vmatprep.subr.bf16.mxu0 %v647
    %2004 = vmatpush1.bf16.msra.mxu0 %v646
    %2005 = vmatprep.subr.bf16.mxu0 %v652
    %2006 = vmatpush1.bf16.msra.mxu0 %v651
    %2007 = vmatprep.subr.bf16.mxu0 %v657
    %2008 = vmatpush1.bf16.msra.mxu0 %v656
    %2009 = vmatprep.subr.bf16.mxu0 %v662
    %2010 = vmatpush1.bf16.msra.mxu0 %v661
    %2011 = vmatprep.subr.bf16.mxu0 %v667
    %2012 = vmatpush1.bf16.msra.mxu0 %v666
    %2013 = vmatprep.subr.bf16.mxu0 %v672
    %2014 = vmatpush1.bf16.msra.mxu0 %v671
    %2015 = vmatprep.subr.bf16.mxu0 0
    %2016 = vmatpush1.bf16.msra.mxu0 0
    %2017 = vmatprep.subr.bf16.mxu0 0
    %2018 = vmatpush1.bf16.msra.mxu0 0
    %2019 = vmatprep.mubr.bf16.mxu0 %v1985
    %2020 = vmatmul.mubr.bf16.gmra.mrb[0].mxu0 %v1981
    %v2021 = vpop.f32.mrb[0].mxu0
    %v2022 = vadd.f32 0.0, %v2021
    %v2023 = vpop.f32.mrb[0].mxu0
    %v2024 = vadd.f32 0.0, %v2023
    %v2025 = vpop.f32.mrb[0].mxu0
    %v2026 = vpop.f32.mrb[0].mxu0
    %2027 = vdwg.mxu0
    %2028 = vmatprep.subr.bf16.mxu0 %v609
    %2029 = vmatpush1.bf16.msra.mxu0 %v608
    %2030 = vmatprep.subr.bf16.mxu0 %v614
    %2031 = vmatpush1.bf16.msra.mxu0 %v613
    %2032 = vmatprep.subr.bf16.mxu0 %v619
    %2033 = vmatpush1.bf16.msra.mxu0 %v618
    %2034 = vmatprep.subr.bf16.mxu0 %v624
    %2035 = vmatpush1.bf16.msra.mxu0 %v623
    %2036 = vmatprep.subr.bf16.mxu0 %v629
    %2037 = vmatpush1.bf16.msra.mxu0 %v628
    %2038 = vmatprep.subr.bf16.mxu0 %v634
    %2039 = vmatpush1.bf16.msra.mxu0 %v633
    %2040 = vmatprep.subr.bf16.mxu0 %v639
    %2041 = vmatpush1.bf16.msra.mxu0 %v638
    %2042 = vmatprep.subr.bf16.mxu0 %v644
    %2043 = vmatpush1.bf16.msra.mxu0 %v643
    %2044 = vmatprep.subr.bf16.mxu0 %v649
    %2045 = vmatpush1.bf16.msra.mxu0 %v648
    %2046 = vmatprep.subr.bf16.mxu0 %v654
    %2047 = vmatpush1.bf16.msra.mxu0 %v653
    %2048 = vmatprep.subr.bf16.mxu0 %v659
    %2049 = vmatpush1.bf16.msra.mxu0 %v658
    %2050 = vmatprep.subr.bf16.mxu0 %v664
    %2051 = vmatpush1.bf16.msra.mxu0 %v663
    %2052 = vmatprep.subr.bf16.mxu0 %v669
    %2053 = vmatpush1.bf16.msra.mxu0 %v668
    %2054 = vmatprep.subr.bf16.mxu0 %v674
    %2055 = vmatpush1.bf16.msra.mxu0 %v673
    %2056 = vmatprep.subr.bf16.mxu0 0
    %2057 = vmatpush1.bf16.msra.mxu0 0
    %2058 = vmatprep.subr.bf16.mxu0 0
    %2059 = vmatpush1.bf16.msra.mxu0 0
    %2060 = vmatprep.mubr.bf16.mxu0 %v1985
    %2061 = vmatmul.mubr.bf16.gmra.mrb[0].mxu0 %v1981
    %v2062 = vpop.f32.mrb[0].mxu0
    %v2063 = vadd.f32 0.0, %v2062
    %v2064 = vpop.f32.mrb[0].mxu0
    %v2065 = vadd.f32 0.0, %v2064
    %v2066 = vpop.f32.mrb[0].mxu0
    %v2067 = vpop.f32.mrb[0].mxu0
    %2068 = vdwg.mxu0
    %2069 = vmatprep.subr.bf16.mxu0 0
    %2070 = vmatpush1.bf16.msra.mxu0 %v610
    %2071 = vmatprep.subr.bf16.mxu0 0
    %2072 = vmatpush1.bf16.msra.mxu0 %v615
    %2073 = vmatprep.subr.bf16.mxu0 0
    %2074 = vmatpush1.bf16.msra.mxu0 %v620
    %2075 = vmatprep.subr.bf16.mxu0 0
    %2076 = vmatpush1.bf16.msra.mxu0 %v625
    %2077 = vmatprep.subr.bf16.mxu0 0
    %2078 = vmatpush1.bf16.msra.mxu0 %v630
    %2079 = vmatprep.subr.bf16.mxu0 0
    %2080 = vmatpush1.bf16.msra.mxu0 %v635
    %2081 = vmatprep.subr.bf16.mxu0 0
    %2082 = vmatpush1.bf16.msra.mxu0 %v640
    %2083 = vmatprep.subr.bf16.mxu0 0
    %2084 = vmatpush1.bf16.msra.mxu0 %v645
    %2085 = vmatprep.subr.bf16.mxu0 0
    %2086 = vmatpush1.bf16.msra.mxu0 %v650
    %2087 = vmatprep.subr.bf16.mxu0 0
    %2088 = vmatpush1.bf16.msra.mxu0 %v655
    %2089 = vmatprep.subr.bf16.mxu0 0
    %2090 = vmatpush1.bf16.msra.mxu0 %v660
    %2091 = vmatprep.subr.bf16.mxu0 0
    %2092 = vmatpush1.bf16.msra.mxu0 %v665
    %2093 = vmatprep.subr.bf16.mxu0 0
    %2094 = vmatpush1.bf16.msra.mxu0 %v670
    %2095 = vmatprep.subr.bf16.mxu0 0
    %2096 = vmatpush1.bf16.msra.mxu0 %v675
    %2097 = vmatprep.subr.bf16.mxu0 0
    %2098 = vmatpush1.bf16.msra.mxu0 0
    %2099 = vmatprep.subr.bf16.mxu0 0
    %2100 = vmatpush1.bf16.msra.mxu0 0
    %2101 = vmatprep.mubr.bf16.mxu0 %v1985
    %2102 = vmatmul.mubr.bf16.gmra.mrb[0].mxu0 %v1981
    %v2103 = vpop.f32.mrb[0].mxu0
    %v2104 = vadd.f32 0.0, %v2103
    %v2105 = vpop.f32.mrb[0].mxu0
    %v2106 = vpop.f32.mrb[0].mxu0
    %v2107 = vpop.f32.mrb[0].mxu0
    %2108 = vdwg.mxu0
    %2112 = vrot.lane.b32.xlu0 %v2063, 96
    %v2113 = vpop.permute.xlu0 %2112
    %2114 = vrot.lane.b32.xlu0 %v2065, 96
    %v2115 = vpop.permute.xlu0 %2114
    %2116 = vrot.lane.b32.xlu0 %v2104, 96
    %v2117 = vpop.permute.xlu0 %2116
    %v2118 = vsel %vm746, %v2113, %v2115
    %v2119 = vsel %vm746, %v2115, %v2117
    %v2123 = vmax.f32 %v2022, %v2118
    %v2124 = vmax.f32 %v2024, %v2119
    %v2125 = vmax.f32 %v2063, %v2117
    %2129 = vrot.lane.b32.xlu0 %v2123, 122
    %v2130 = vpop.permute.xlu0 %2129
    %2131 = vrot.lane.b32.xlu0 %v2124, 122
    %v2132 = vpop.permute.xlu0 %2131
    %2133 = vrot.lane.b32.xlu0 %v2125, 122
    %v2134 = vpop.permute.xlu0 %2133
    %v2135 = vsel %vm898, %v2130, %v2132
    %v2136 = vsel %vm898, %v2132, %v2134
    %v2140 = vmax.f32 %v2123, %v2135
    %v2141 = vmax.f32 %v2124, %v2136
    %v2142 = vmax.f32 %v2125, %v2134
    %v2143 = vpack.c.bf16 %v2140, %v2140
    %v2144 = vpack.c.bf16 %v2141, %v2141
    %v2145 = vpack.c.bf16 %v2142, %v2142
    %v2147 = vsel %vm1096, %v2145, 0
    %2149 = vmatprep.subr.bf16.mxu0 %v1027
    %2150 = vmatpush1.bf16.msra.mxu0 %v1026
    %2151 = vmatprep.subr.bf16.mxu0 %v1029
    %2152 = vmatpush1.bf16.msra.mxu0 %v1028
    %2153 = vmatprep.subr.bf16.mxu0 %v1031
    %2154 = vmatpush1.bf16.msra.mxu0 %v1030
    %2155 = vmatprep.subr.bf16.mxu0 %v1033
    %2156 = vmatpush1.bf16.msra.mxu0 %v1032
    %2157 = vmatprep.subr.bf16.mxu0 %v1035
    %2158 = vmatpush1.bf16.msra.mxu0 %v1034
    %2159 = vmatprep.subr.bf16.mxu0 %v1037
    %2160 = vmatpush1.bf16.msra.mxu0 %v1036
    %2161 = vmatprep.subr.bf16.mxu0 %v1039
    %2162 = vmatpush1.bf16.msra.mxu0 %v1038
    %2163 = vmatprep.subr.bf16.mxu0 %v1041
    %2164 = vmatpush1.bf16.msra.mxu0 %v1040
    %2165 = vmatprep.subr.bf16.mxu0 %v1043
    %2166 = vmatpush1.bf16.msra.mxu0 %v1042
    %2167 = vmatprep.subr.bf16.mxu0 %v1045
    %2168 = vmatpush1.bf16.msra.mxu0 %v1044
    %2169 = vmatprep.subr.bf16.mxu0 %v1047
    %2170 = vmatpush1.bf16.msra.mxu0 %v1046
    %2171 = vmatprep.subr.bf16.mxu0 %v1049
    %2172 = vmatpush1.bf16.msra.mxu0 %v1048
    %2173 = vmatprep.subr.bf16.mxu0 %v1051
    %2174 = vmatpush1.bf16.msra.mxu0 %v1050
    %2175 = vmatprep.subr.bf16.mxu0 %v1053
    %2176 = vmatpush1.bf16.msra.mxu0 %v1052
    %2177 = vmatprep.subr.bf16.mxu0 %v1055
    %2178 = vmatpush1.bf16.msra.mxu0 %v1054
    %2179 = vmatprep.subr.bf16.mxu0 %v1057
    %2180 = vmatpush1.bf16.msra.mxu0 %v1056
    %2181 = vmatprep.mubr.bf16.mxu0 %v2144
    %2182 = vmatmul.mubr.bf16.gmra.mrb[0].mxu0 %v2143
    %v2183 = vpop.f32.mrb[0].mxu0
    %v2184 = vadd.f32 %v913, %v2183
    %v2185 = vpop.f32.mrb[0].mxu0
    %v2186 = vadd.f32 %v917, %v2185
    %v2187 = vpop.f32.mrb[0].mxu0
    %v2188 = vpop.f32.mrb[0].mxu0
    %2189 = vdwg.mxu0
    %2190 = vmatprep.subr.bf16.mxu0 %v1059
    %2191 = vmatpush1.bf16.msra.mxu0 %v1058
    %2192 = vmatprep.subr.bf16.mxu0 %v1105
    %2193 = vmatpush1.bf16.msra.mxu0 %v1102
    %2194 = vmatprep.subr.bf16.mxu0 0
    %2195 = vmatpush1.bf16.msra.mxu0 0
    %2196 = vmatprep.subr.bf16.mxu0 0
    %2197 = vmatpush1.bf16.msra.mxu0 0
    %2198 = vmatprep.subr.bf16.mxu0 0
    %2199 = vmatpush1.bf16.msra.mxu0 0
    %2200 = vmatprep.subr.bf16.mxu0 0
    %2201 = vmatpush1.bf16.msra.mxu0 0
    %2202 = vmatprep.subr.bf16.mxu0 0
    %2203 = vmatpush1.bf16.msra.mxu0 0
    %2204 = vmatprep.subr.bf16.mxu0 0
    %2205 = vmatpush1.bf16.msra.mxu0 0
    %2206 = vmatprep.subr.bf16.mxu0 0
    %2207 = vmatpush1.bf16.msra.mxu0 0
    %2208 = vmatprep.subr.bf16.mxu0 0
    %2209 = vmatpush1.bf16.msra.mxu0 0
    %2210 = vmatprep.subr.bf16.mxu0 0
    %2211 = vmatpush1.bf16.msra.mxu0 0
    %2212 = vmatprep.subr.bf16.mxu0 0
    %2213 = vmatpush1.bf16.msra.mxu0 0
    %2214 = vmatprep.subr.bf16.mxu0 0
    %2215 = vmatpush1.bf16.msra.mxu0 0
    %2216 = vmatprep.subr.bf16.mxu0 0
    %2217 = vmatpush1.bf16.msra.mxu0 0
    %2218 = vmatprep.subr.bf16.mxu0 0
    %2219 = vmatpush1.bf16.msra.mxu0 0
    %2220 = vmatprep.subr.bf16.mxu0 0
    %2221 = vmatpush1.bf16.msra.mxu0 0
    %2222 = vmatprep.mubr.bf16.mxu0 0
    %2223 = vmatmul.mubr.bf16.gmra.mrb[0].mxu0 %v2147
    %v2224 = vpop.f32.mrb[0].mxu0
    %v2225 = vadd.f32 %v2184, %v2224
    %v2226 = vpop.f32.mrb[0].mxu0
    %v2227 = vadd.f32 %v2186, %v2226
    %v2228 = vpop.f32.mrb[0].mxu0
    %v2229 = vpop.f32.mrb[0].mxu0
    %2230 = vdwg.mxu0
    %v2231 = vmax.f32 %v2225, 0.0
    %v2232 = vmax.f32 %v2227, 0.0
    %2234 = vrot.lane.b32.xlu0 %v83, 80
    %v2235 = vpop.permute.xlu0 %2234
    %2236 = vrot.lane.b32.xlu0 %v84, 80
    %v2237 = vpop.permute.xlu0 %2236
    %2238 = vrot.lane.b32.xlu0 %v85, 80
    %v2239 = vpop.permute.xlu0 %2238
    %vm2240 = vcmask 654336
    %v2241 = vsel %vm2240, %v2235, %v2237
    %v2242 = vsel %vm2240, %v2237, %v2239
    %v2245 = vsel %vm746, %v2242, 0
    %2247 = vmatprep.subr.bf16.mxu0 %v607
    %2248 = vmatpush1.bf16.msra.mxu0 %v606
    %2249 = vmatprep.subr.bf16.mxu0 %v612
    %2250 = vmatpush1.bf16.msra.mxu0 %v611
    %2251 = vmatprep.subr.bf16.mxu0 %v617
    %2252 = vmatpush1.bf16.msra.mxu0 %v616
    %2253 = vmatprep.subr.bf16.mxu0 %v622
    %2254 = vmatpush1.bf16.msra.mxu0 %v621
    %2255 = vmatprep.subr.bf16.mxu0 %v627
    %2256 = vmatpush1.bf16.msra.mxu0 %v626
    %2257 = vmatprep.subr.bf16.mxu0 %v632
    %2258 = vmatpush1.bf16.msra.mxu0 %v631
    %2259 = vmatprep.subr.bf16.mxu0 %v637
    %2260 = vmatpush1.bf16.msra.mxu0 %v636
    %2261 = vmatprep.subr.bf16.mxu0 %v642
    %2262 = vmatpush1.bf16.msra.mxu0 %v641
    %2263 = vmatprep.subr.bf16.mxu0 %v647
    %2264 = vmatpush1.bf16.msra.mxu0 %v646
    %2265 = vmatprep.subr.bf16.mxu0 %v652
    %2266 = vmatpush1.bf16.msra.mxu0 %v651
    %2267 = vmatprep.subr.bf16.mxu0 %v657
    %2268 = vmatpush1.bf16.msra.mxu0 %v656
    %2269 = vmatprep.subr.bf16.mxu0 %v662
    %2270 = vmatpush1.bf16.msra.mxu0 %v661
    %2271 = vmatprep.subr.bf16.mxu0 %v667
    %2272 = vmatpush1.bf16.msra.mxu0 %v666
    %2273 = vmatprep.subr.bf16.mxu0 %v672
    %2274 = vmatpush1.bf16.msra.mxu0 %v671
    %2275 = vmatprep.subr.bf16.mxu0 0
    %2276 = vmatpush1.bf16.msra.mxu0 0
    %2277 = vmatprep.subr.bf16.mxu0 0
    %2278 = vmatpush1.bf16.msra.mxu0 0
    %2279 = vmatprep.mubr.bf16.mxu0 %v2245
    %2280 = vmatmul.mubr.bf16.gmra.mrb[0].mxu0 %v2241
    %v2281 = vpop.f32.mrb[0].mxu0
    %v2282 = vadd.f32 0.0, %v2281
    %v2283 = vpop.f32.mrb[0].mxu0
    %v2284 = vadd.f32 0.0, %v2283
    %v2285 = vpop.f32.mrb[0].mxu0
    %v2286 = vpop.f32.mrb[0].mxu0
    %2287 = vdwg.mxu0
    %2288 = vmatprep.subr.bf16.mxu0 %v609
    %2289 = vmatpush1.bf16.msra.mxu0 %v608
    %2290 = vmatprep.subr.bf16.mxu0 %v614
    %2291 = vmatpush1.bf16.msra.mxu0 %v613
    %2292 = vmatprep.subr.bf16.mxu0 %v619
    %2293 = vmatpush1.bf16.msra.mxu0 %v618
    %2294 = vmatprep.subr.bf16.mxu0 %v624
    %2295 = vmatpush1.bf16.msra.mxu0 %v623
    %2296 = vmatprep.subr.bf16.mxu0 %v629
    %2297 = vmatpush1.bf16.msra.mxu0 %v628
    %2298 = vmatprep.subr.bf16.mxu0 %v634
    %2299 = vmatpush1.bf16.msra.mxu0 %v633
    %2300 = vmatprep.subr.bf16.mxu0 %v639
    %2301 = vmatpush1.bf16.msra.mxu0 %v638
    %2302 = vmatprep.subr.bf16.mxu0 %v644
    %2303 = vmatpush1.bf16.msra.mxu0 %v643
    %2304 = vmatprep.subr.bf16.mxu0 %v649
    %2305 = vmatpush1.bf16.msra.mxu0 %v648
    %2306 = vmatprep.subr.bf16.mxu0 %v654
    %2307 = vmatpush1.bf16.msra.mxu0 %v653
    %2308 = vmatprep.subr.bf16.mxu0 %v659
    %2309 = vmatpush1.bf16.msra.mxu0 %v658
    %2310 = vmatprep.subr.bf16.mxu0 %v664
    %2311 = vmatpush1.bf16.msra.mxu0 %v663
    %2312 = vmatprep.subr.bf16.mxu0 %v669
    %2313 = vmatpush1.bf16.msra.mxu0 %v668
    %2314 = vmatprep.subr.bf16.mxu0 %v674
    %2315 = vmatpush1.bf16.msra.mxu0 %v673
    %2316 = vmatprep.subr.bf16.mxu0 0
    %2317 = vmatpush1.bf16.msra.mxu0 0
    %2318 = vmatprep.subr.bf16.mxu0 0
    %2319 = vmatpush1.bf16.msra.mxu0 0
    %2320 = vmatprep.mubr.bf16.mxu0 %v2245
    %2321 = vmatmul.mubr.bf16.gmra.mrb[0].mxu0 %v2241
    %v2322 = vpop.f32.mrb[0].mxu0
    %v2323 = vadd.f32 0.0, %v2322
    %v2324 = vpop.f32.mrb[0].mxu0
    %v2325 = vadd.f32 0.0, %v2324
    %v2326 = vpop.f32.mrb[0].mxu0
    %v2327 = vpop.f32.mrb[0].mxu0
    %2328 = vdwg.mxu0
    %2329 = vmatprep.subr.bf16.mxu0 0
    %2330 = vmatpush1.bf16.msra.mxu0 %v610
    %2331 = vmatprep.subr.bf16.mxu0 0
    %2332 = vmatpush1.bf16.msra.mxu0 %v615
    %2333 = vmatprep.subr.bf16.mxu0 0
    %2334 = vmatpush1.bf16.msra.mxu0 %v620
    %2335 = vmatprep.subr.bf16.mxu0 0
    %2336 = vmatpush1.bf16.msra.mxu0 %v625
    %2337 = vmatprep.subr.bf16.mxu0 0
    %2338 = vmatpush1.bf16.msra.mxu0 %v630
    %2339 = vmatprep.subr.bf16.mxu0 0
    %2340 = vmatpush1.bf16.msra.mxu0 %v635
    %2341 = vmatprep.subr.bf16.mxu0 0
    %2342 = vmatpush1.bf16.msra.mxu0 %v640
    %2343 = vmatprep.subr.bf16.mxu0 0
    %2344 = vmatpush1.bf16.msra.mxu0 %v645
    %2345 = vmatprep.subr.bf16.mxu0 0
    %2346 = vmatpush1.bf16.msra.mxu0 %v650
    %2347 = vmatprep.subr.bf16.mxu0 0
    %2348 = vmatpush1.bf16.msra.mxu0 %v655
    %2349 = vmatprep.subr.bf16.mxu0 0
    %2350 = vmatpush1.bf16.msra.mxu0 %v660
    %2351 = vmatprep.subr.bf16.mxu0 0
    %2352 = vmatpush1.bf16.msra.mxu0 %v665
    %2353 = vmatprep.subr.bf16.mxu0 0
    %2354 = vmatpush1.bf16.msra.mxu0 %v670
    %2355 = vmatprep.subr.bf16.mxu0 0
    %2356 = vmatpush1.bf16.msra.mxu0 %v675
    %2357 = vmatprep.subr.bf16.mxu0 0
    %2358 = vmatpush1.bf16.msra.mxu0 0
    %2359 = vmatprep.subr.bf16.mxu0 0
    %2360 = vmatpush1.bf16.msra.mxu0 0
    %2361 = vmatprep.mubr.bf16.mxu0 %v2245
    %2362 = vmatmul.mubr.bf16.gmra.mrb[0].mxu0 %v2241
    %v2363 = vpop.f32.mrb[0].mxu0
    %v2364 = vadd.f32 0.0, %v2363
    %v2365 = vpop.f32.mrb[0].mxu0
    %v2366 = vpop.f32.mrb[0].mxu0
    %v2367 = vpop.f32.mrb[0].mxu0
    %2368 = vdwg.mxu0
    %2372 = vrot.lane.b32.xlu0 %v2323, 96
    %v2373 = vpop.permute.xlu0 %2372
    %2374 = vrot.lane.b32.xlu0 %v2325, 96
    %v2375 = vpop.permute.xlu0 %2374
    %2376 = vrot.lane.b32.xlu0 %v2364, 96
    %v2377 = vpop.permute.xlu0 %2376
    %v2378 = vsel %vm746, %v2373, %v2375
    %v2379 = vsel %vm746, %v2375, %v2377
    %v2383 = vmax.f32 %v2282, %v2378
    %v2384 = vmax.f32 %v2284, %v2379
    %v2385 = vmax.f32 %v2323, %v2377
    %2389 = vrot.lane.b32.xlu0 %v2383, 122
    %v2390 = vpop.permute.xlu0 %2389
    %2391 = vrot.lane.b32.xlu0 %v2384, 122
    %v2392 = vpop.permute.xlu0 %2391
    %2393 = vrot.lane.b32.xlu0 %v2385, 122
    %v2394 = vpop.permute.xlu0 %2393
    %v2395 = vsel %vm898, %v2390, %v2392
    %v2396 = vsel %vm898, %v2392, %v2394
    %v2400 = vmax.f32 %v2383, %v2395
    %v2401 = vmax.f32 %v2384, %v2396
    %v2402 = vmax.f32 %v2385, %v2394
    %v2403 = vpack.c.bf16 %v2400, %v2400
    %v2404 = vpack.c.bf16 %v2401, %v2401
    %v2405 = vpack.c.bf16 %v2402, %v2402
    %v2407 = vsel %vm1096, %v2405, 0
    %2409 = vmatprep.subr.bf16.mxu0 %v1027
    %2410 = vmatpush1.bf16.msra.mxu0 %v1026
    %2411 = vmatprep.subr.bf16.mxu0 %v1029
    %2412 = vmatpush1.bf16.msra.mxu0 %v1028
    %2413 = vmatprep.subr.bf16.mxu0 %v1031
    %2414 = vmatpush1.bf16.msra.mxu0 %v1030
    %2415 = vmatprep.subr.bf16.mxu0 %v1033
    %2416 = vmatpush1.bf16.msra.mxu0 %v1032
    %2417 = vmatprep.subr.bf16.mxu0 %v1035
    %2418 = vmatpush1.bf16.msra.mxu0 %v1034
    %2419 = vmatprep.subr.bf16.mxu0 %v1037
    %2420 = vmatpush1.bf16.msra.mxu0 %v1036
    %2421 = vmatprep.subr.bf16.mxu0 %v1039
    %2422 = vmatpush1.bf16.msra.mxu0 %v1038
    %2423 = vmatprep.subr.bf16.mxu0 %v1041
    %2424 = vmatpush1.bf16.msra.mxu0 %v1040
    %2425 = vmatprep.subr.bf16.mxu0 %v1043
    %2426 = vmatpush1.bf16.msra.mxu0 %v1042
    %2427 = vmatprep.subr.bf16.mxu0 %v1045
    %2428 = vmatpush1.bf16.msra.mxu0 %v1044
    %2429 = vmatprep.subr.bf16.mxu0 %v1047
    %2430 = vmatpush1.bf16.msra.mxu0 %v1046
    %2431 = vmatprep.subr.bf16.mxu0 %v1049
    %2432 = vmatpush1.bf16.msra.mxu0 %v1048
    %2433 = vmatprep.subr.bf16.mxu0 %v1051
    %2434 = vmatpush1.bf16.msra.mxu0 %v1050
    %2435 = vmatprep.subr.bf16.mxu0 %v1053
    %2436 = vmatpush1.bf16.msra.mxu0 %v1052
    %2437 = vmatprep.subr.bf16.mxu0 %v1055
    %2438 = vmatpush1.bf16.msra.mxu0 %v1054
    %2439 = vmatprep.subr.bf16.mxu0 %v1057
    %2440 = vmatpush1.bf16.msra.mxu0 %v1056
    %2441 = vmatprep.mubr.bf16.mxu0 %v2404
    %2442 = vmatmul.mubr.bf16.gmra.mrb[0].mxu0 %v2403
    %v2443 = vpop.f32.mrb[0].mxu0
    %v2444 = vadd.f32 %v913, %v2443
    %v2445 = vpop.f32.mrb[0].mxu0
    %v2446 = vadd.f32 %v917, %v2445
    %v2447 = vpop.f32.mrb[0].mxu0
    %v2448 = vpop.f32.mrb[0].mxu0
    %2449 = vdwg.mxu0
    %2450 = vmatprep.subr.bf16.mxu0 %v1059
    %2451 = vmatpush1.bf16.msra.mxu0 %v1058
    %2452 = vmatprep.subr.bf16.mxu0 %v1105
    %2453 = vmatpush1.bf16.msra.mxu0 %v1102
    %2454 = vmatprep.subr.bf16.mxu0 0
    %2455 = vmatpush1.bf16.msra.mxu0 0
    %2456 = vmatprep.subr.bf16.mxu0 0
    %2457 = vmatpush1.bf16.msra.mxu0 0
    %2458 = vmatprep.subr.bf16.mxu0 0
    %2459 = vmatpush1.bf16.msra.mxu0 0
    %2460 = vmatprep.subr.bf16.mxu0 0
    %2461 = vmatpush1.bf16.msra.mxu0 0
    %2462 = vmatprep.subr.bf16.mxu0 0
    %2463 = vmatpush1.bf16.msra.mxu0 0
    %2464 = vmatprep.subr.bf16.mxu0 0
    %2465 = vmatpush1.bf16.msra.mxu0 0
    %2466 = vmatprep.subr.bf16.mxu0 0
    %2467 = vmatpush1.bf16.msra.mxu0 0
    %2468 = vmatprep.subr.bf16.mxu0 0
    %2469 = vmatpush1.bf16.msra.mxu0 0
    %2470 = vmatprep.subr.bf16.mxu0 0
    %2471 = vmatpush1.bf16.msra.mxu0 0
    %2472 = vmatprep.subr.bf16.mxu0 0
    %2473 = vmatpush1.bf16.msra.mxu0 0
    %2474 = vmatprep.subr.bf16.mxu0 0
    %2475 = vmatpush1.bf16.msra.mxu0 0
    %2476 = vmatprep.subr.bf16.mxu0 0
    %2477 = vmatpush1.bf16.msra.mxu0 0
    %2478 = vmatprep.subr.bf16.mxu0 0
    %2479 = vmatpush1.bf16.msra.mxu0 0
    %2480 = vmatprep.subr.bf16.mxu0 0
    %2481 = vmatpush1.bf16.msra.mxu0 0
    %2482 = vmatprep.mubr.bf16.mxu0 0
    %2483 = vmatmul.mubr.bf16.gmra.mrb[0].mxu0 %v2407
    %v2484 = vpop.f32.mrb[0].mxu0
    %v2485 = vadd.f32 %v2444, %v2484
    %v2486 = vpop.f32.mrb[0].mxu0
    %v2487 = vadd.f32 %v2446, %v2486
    %v2488 = vpop.f32.mrb[0].mxu0
    %v2489 = vpop.f32.mrb[0].mxu0
    %2490 = vdwg.mxu0
    %v2491 = vmax.f32 %v2485, 0.0
    %v2492 = vmax.f32 %v2487, 0.0
    %2495 = vrot.lane.b32.xlu0 %v1451, 16
    %v2496 = vpop.permute.xlu0 %2495
    %2497 = vrot.lane.b32.xlu0 %v1452, 16
    %v2498 = vpop.permute.xlu0 %2497
    %vm2499 = vcmask 130048
    %v2500 = vsel %vm2499, %v2496, %v2498
    %2505 = vrot.lane.b32.xlu0 %v1711, 32
    %v2506 = vpop.permute.xlu0 %2505
    %2507 = vrot.lane.b32.xlu0 %v1712, 32
    %v2508 = vpop.permute.xlu0 %2507
    %vm2509 = vcmask 261120
    %v2510 = vsel %vm2509, %v2506, %v2508
    %2515 = vrot.lane.b32.xlu0 %v1971, 48
    %v2516 = vpop.permute.xlu0 %2515
    %2517 = vrot.lane.b32.xlu0 %v1972, 48
    %v2518 = vpop.permute.xlu0 %2517
    %vm2519 = vcmask 392192
    %v2520 = vsel %vm2519, %v2516, %v2518
    %v2523 = vsel %vm2499, %v1190, %v2496
    %v2524 = vsel %vm2509, %v2500, %v2506
    %v2525 = vsel %vm2519, %v2510, %v2516
    %v2526 = vpack.c.bf16 %v1189, %v1189
    %v2527 = vpack.c.bf16 %v2523, %v2523
    %v2528 = vpack.c.bf16 %v2524, %v2524
    %v2529 = vpack.c.bf16 %v2525, %v2525
    %v2530 = vpack.c.bf16 %v2520, %v2520
    %v2675 = vunpack.c.l.b16 %v208
    %v2676 = vunpack.c.h.b16 %v208
    %v2677 = vunpack.c.l.b16 %v209
    %v2678 = vunpack.c.h.b16 %v209
    %v2679 = vunpack.c.l.b16 %v210
    %v2680 = vunpack.c.h.b16 %v210
    %v2681 = vunpack.c.l.b16 %v211
    %v2682 = vunpack.c.h.b16 %v211
    %v2683 = vunpack.c.l.b16 %v212
    %v2684 = vunpack.c.h.b16 %v212
    %v2685 = vunpack.c.l.b16 %v213
    %v2686 = vunpack.c.h.b16 %v213
    %v2687 = vunpack.c.l.b16 %v214
    %v2688 = vunpack.c.h.b16 %v214
    %v2689 = vunpack.c.l.b16 %v215
    %v2690 = vunpack.c.h.b16 %v215
    %v2691 = vunpack.c.l.b16 %v216
    %v2692 = vunpack.c.h.b16 %v216
    %v2693 = vunpack.c.l.b16 %v217
    %v2694 = vunpack.c.h.b16 %v217
    %v2695 = vunpack.c.l.b16 %v218
    %v2696 = vunpack.c.h.b16 %v218
    %v2697 = vunpack.c.l.b16 %v219
    %v2698 = vunpack.c.h.b16 %v219
    %v2699 = vunpack.c.l.b16 %v220
    %v2700 = vunpack.c.h.b16 %v220
    %v2701 = vunpack.c.l.b16 %v221
    %v2702 = vunpack.c.h.b16 %v221
    %v2703 = vunpack.c.l.b16 %v222
    %v2704 = vunpack.c.h.b16 %v222
    %v2705 = vunpack.c.l.b16 %v223
    %v2706 = vunpack.c.h.b16 %v223
    %v2707 = vunpack.c.l.b16 %v224
    %v2708 = vunpack.c.h.b16 %v224
    %v2709 = vunpack.c.l.b16 %v225
    %v2710 = vunpack.c.h.b16 %v225
    %v2711 = vunpack.c.l.b16 %v226
    %v2712 = vunpack.c.h.b16 %v226
    %v2713 = vunpack.c.l.b16 %v227
    %v2714 = vunpack.c.h.b16 %v227
    %v2715 = vunpack.c.l.b16 %v228
    %v2716 = vunpack.c.h.b16 %v228
    %v2717 = vunpack.c.l.b16 %v229
    %v2718 = vunpack.c.h.b16 %v229
    %v2719 = vunpack.c.l.b16 %v230
    %v2720 = vunpack.c.h.b16 %v230
    %v2721 = vunpack.c.l.b16 %v231
    %v2722 = vunpack.c.h.b16 %v231
    %v2723 = vunpack.c.l.b16 %v232
    %v2724 = vunpack.c.h.b16 %v232
    %v2725 = vunpack.c.l.b16 %v233
    %v2726 = vunpack.c.h.b16 %v233
    %v2727 = vunpack.c.l.b16 %v234
    %v2728 = vunpack.c.h.b16 %v234
    %v2729 = vunpack.c.l.b16 %v235
    %v2730 = vunpack.c.h.b16 %v235
    %v2731 = vunpack.c.l.b16 %v236
    %v2732 = vunpack.c.h.b16 %v236
    %v2733 = vunpack.c.l.b16 %v237
    %v2734 = vunpack.c.h.b16 %v237
    %v2735 = vunpack.c.l.b16 %v238
    %v2736 = vunpack.c.h.b16 %v238
    %v2737 = vunpack.c.l.b16 %v239
    %v2738 = vunpack.c.h.b16 %v239
    %v2739 = vunpack.c.l.b16 %v240
    %v2740 = vunpack.c.h.b16 %v240
    %v2741 = vunpack.c.l.b16 %v241
    %v2742 = vunpack.c.h.b16 %v241
    %v2743 = vunpack.c.l.b16 %v242
    %v2744 = vunpack.c.h.b16 %v242
    %v2745 = vunpack.c.l.b16 %v243
    %v2746 = vunpack.c.h.b16 %v243
    %v2747 = vunpack.c.l.b16 %v244
    %v2748 = vunpack.c.h.b16 %v244
    %v2749 = vunpack.c.l.b16 %v245
    %v2750 = vunpack.c.h.b16 %v245
    %v2751 = vunpack.c.l.b16 %v246
    %v2752 = vunpack.c.h.b16 %v246
    %v2753 = vunpack.c.l.b16 %v247
    %v2754 = vunpack.c.h.b16 %v247
    %v2755 = vunpack.c.l.b16 %v248
    %v2756 = vunpack.c.h.b16 %v248
    %v2757 = vunpack.c.l.b16 %v249
    %v2758 = vunpack.c.h.b16 %v249
    %v2759 = vunpack.c.l.b16 %v250
    %v2760 = vunpack.c.h.b16 %v250
    %v2761 = vunpack.c.l.b16 %v251
    %v2762 = vunpack.c.h.b16 %v251
    %v2763 = vunpack.c.l.b16 %v252
    %v2764 = vunpack.c.h.b16 %v252
    %v2765 = vunpack.c.l.b16 %v253
    %v2766 = vunpack.c.h.b16 %v253
    %v2767 = vunpack.c.l.b16 %v254
    %v2768 = vunpack.c.h.b16 %v254
    %v2769 = vunpack.c.l.b16 %v255
    %v2770 = vunpack.c.h.b16 %v255
    %v2771 = vunpack.c.l.b16 %v256
    %v2772 = vunpack.c.h.b16 %v256
    %v2773 = vunpack.c.l.b16 %v257
    %v2774 = vunpack.c.h.b16 %v257
    %v2775 = vunpack.c.l.b16 %v258
    %v2776 = vunpack.c.h.b16 %v258
    %v2777 = vunpack.c.l.b16 %v259
    %v2778 = vunpack.c.h.b16 %v259
    %v2779 = vunpack.c.l.b16 %v260
    %v2780 = vunpack.c.h.b16 %v260
    %v2781 = vunpack.c.l.b16 %v261
    %v2782 = vunpack.c.h.b16 %v261
    %v2783 = vunpack.c.l.b16 %v262
    %v2784 = vunpack.c.h.b16 %v262
    %v2785 = vunpack.c.l.b16 %v263
    %v2786 = vunpack.c.h.b16 %v263
    %v2787 = vunpack.c.l.b16 %v264
    %v2788 = vunpack.c.h.b16 %v264
    %v2789 = vunpack.c.l.b16 %v265
    %v2790 = vunpack.c.h.b16 %v265
    %v2791 = vunpack.c.l.b16 %v266
    %v2792 = vunpack.c.h.b16 %v266
    %v2793 = vunpack.c.l.b16 %v267
    %v2794 = vunpack.c.h.b16 %v267
    %v2795 = vunpack.c.l.b16 %v268
    %v2796 = vunpack.c.h.b16 %v268
    %v2797 = vunpack.c.l.b16 %v269
    %v2798 = vunpack.c.h.b16 %v269
    %v2799 = vunpack.c.l.b16 %v270
    %v2800 = vunpack.c.h.b16 %v270
    %v2801 = vunpack.c.l.b16 %v271
    %v2802 = vunpack.c.h.b16 %v271
    %v2803 = vunpack.c.l.b16 %v272
    %v2804 = vunpack.c.h.b16 %v272
    %v2805 = vunpack.c.l.b16 %v273
    %v2806 = vunpack.c.h.b16 %v273
    %v2807 = vunpack.c.l.b16 %v274
    %v2808 = vunpack.c.h.b16 %v274
    %v2809 = vunpack.c.l.b16 %v275
    %v2810 = vunpack.c.h.b16 %v275
    %v2811 = vunpack.c.l.b16 %v276
    %v2812 = vunpack.c.h.b16 %v276
    %v2813 = vunpack.c.l.b16 %v277
    %v2814 = vunpack.c.h.b16 %v277
    %v2815 = vunpack.c.l.b16 %v278
    %v2816 = vunpack.c.h.b16 %v278
    %v2817 = vunpack.c.l.b16 %v279
    %v2818 = vunpack.c.h.b16 %v279
    %v2819 = vunpack.c.l.b16 %v280
    %v2820 = vunpack.c.h.b16 %v280
    %v2821 = vunpack.c.l.b16 %v281
    %v2822 = vunpack.c.h.b16 %v281
    %v2823 = vunpack.c.l.b16 %v282
    %v2824 = vunpack.c.h.b16 %v282
    %v2825 = vunpack.c.l.b16 %v283
    %v2826 = vunpack.c.h.b16 %v283
    %v2827 = vunpack.c.l.b16 %v284
    %v2828 = vunpack.c.h.b16 %v284
    %v2829 = vunpack.c.l.b16 %v285
    %v2830 = vunpack.c.h.b16 %v285
    %v2831 = vunpack.c.l.b16 %v286
    %v2832 = vunpack.c.h.b16 %v286
    %v2833 = vunpack.c.l.b16 %v287
    %v2834 = vunpack.c.h.b16 %v287
    %v2835 = vunpack.c.l.b16 %v288
    %v2836 = vunpack.c.h.b16 %v288
    %v2837 = vunpack.c.l.b16 %v289
    %v2838 = vunpack.c.h.b16 %v289
    %v2839 = vunpack.c.l.b16 %v290
    %v2840 = vunpack.c.h.b16 %v290
    %v2841 = vunpack.c.l.b16 %v291
    %v2842 = vunpack.c.h.b16 %v291
    %v2843 = vunpack.c.l.b16 %v292
    %v2844 = vunpack.c.h.b16 %v292
    %v2845 = vunpack.c.l.b16 %v293
    %v2846 = vunpack.c.h.b16 %v293
    %v2847 = vunpack.c.l.b16 %v294
    %v2848 = vunpack.c.h.b16 %v294
    %v2849 = vunpack.c.l.b16 %v295
    %v2850 = vunpack.c.h.b16 %v295
    %v2851 = vunpack.c.l.b16 %v296
    %v2852 = vunpack.c.h.b16 %v296
    %v2853 = vunpack.c.l.b16 %v297
    %v2854 = vunpack.c.h.b16 %v297
    %v2855 = vunpack.c.l.b16 %v298
    %v2856 = vunpack.c.h.b16 %v298
    %v2857 = vunpack.c.l.b16 %v299
    %v2858 = vunpack.c.h.b16 %v299
    %v2859 = vunpack.c.l.b16 %v300
    %v2860 = vunpack.c.h.b16 %v300
    %v2861 = vunpack.c.l.b16 %v301
    %v2862 = vunpack.c.h.b16 %v301
    %v2863 = vunpack.c.l.b16 %v302
    %v2864 = vunpack.c.h.b16 %v302
    %v2865 = vunpack.c.l.b16 %v303
    %v2866 = vunpack.c.h.b16 %v303
    %v2867 = vunpack.c.l.b16 %v304
    %v2868 = vunpack.c.h.b16 %v304
    %v2869 = vunpack.c.l.b16 %v305
    %v2870 = vunpack.c.h.b16 %v305
    %v2871 = vunpack.c.l.b16 %v306
    %v2872 = vunpack.c.h.b16 %v306
    %v2873 = vunpack.c.l.b16 %v307
    %v2874 = vunpack.c.h.b16 %v307
    %v2875 = vunpack.c.l.b16 %v308
    %v2876 = vunpack.c.h.b16 %v308
    %v2877 = vunpack.c.l.b16 %v309
    %v2878 = vunpack.c.h.b16 %v309
    %v2879 = vunpack.c.l.b16 %v310
    %v2880 = vunpack.c.h.b16 %v310
    %v2881 = vunpack.c.l.b16 %v311
    %v2882 = vunpack.c.h.b16 %v311
    %v2883 = vunpack.c.l.b16 %v312
    %v2884 = vunpack.c.h.b16 %v312
    %v2885 = vunpack.c.l.b16 %v313
    %v2886 = vunpack.c.h.b16 %v313
    %v2887 = vunpack.c.l.b16 %v314
    %v2888 = vunpack.c.h.b16 %v314
    %v2889 = vunpack.c.l.b16 %v315
    %v2890 = vunpack.c.h.b16 %v315
    %v2891 = vunpack.c.l.b16 %v316
    %v2892 = vunpack.c.h.b16 %v316
    %v2893 = vunpack.c.l.b16 %v317
    %v2894 = vunpack.c.h.b16 %v317
    %v2895 = vunpack.c.l.b16 %v318
    %v2896 = vunpack.c.h.b16 %v318
    %v2897 = vunpack.c.l.b16 %v319
    %v2898 = vunpack.c.h.b16 %v319
    %v2899 = vunpack.c.l.b16 %v320
    %v2900 = vunpack.c.h.b16 %v320
    %v2901 = vunpack.c.l.b16 %v321
    %v2902 = vunpack.c.h.b16 %v321
    %v2903 = vunpack.c.l.b16 %v322
    %v2904 = vunpack.c.h.b16 %v322
    %v2905 = vunpack.c.l.b16 %v323
    %v2906 = vunpack.c.h.b16 %v323
    %v2907 = vunpack.c.l.b16 %v324
    %v2908 = vunpack.c.h.b16 %v324
    %v2909 = vunpack.c.l.b16 %v325
    %v2910 = vunpack.c.h.b16 %v325
    %v2911 = vunpack.c.l.b16 %v326
    %v2912 = vunpack.c.h.b16 %v326
    %v2913 = vunpack.c.l.b16 %v327
    %v2914 = vunpack.c.h.b16 %v327
    %v2915 = vunpack.c.l.b16 %v328
    %v2916 = vunpack.c.h.b16 %v328
    %v2917 = vunpack.c.l.b16 %v329
    %v2918 = vunpack.c.h.b16 %v329
    %v2919 = vunpack.c.l.b16 %v330
    %v2920 = vunpack.c.h.b16 %v330
    %v2921 = vunpack.c.l.b16 %v331
    %v2922 = vunpack.c.h.b16 %v331
    %v2923 = vunpack.c.l.b16 %v332
    %v2924 = vunpack.c.h.b16 %v332
    %v2925 = vunpack.c.l.b16 %v333
    %v2926 = vunpack.c.h.b16 %v333
    %v2927 = vunpack.c.l.b16 %v334
    %v2928 = vunpack.c.h.b16 %v334
    %v2929 = vunpack.c.l.b16 %v335
    %v2930 = vunpack.c.h.b16 %v335
    %v2931 = vunpack.c.l.b16 %v336
    %v2932 = vunpack.c.h.b16 %v336
    %v2933 = vunpack.c.l.b16 %v337
    %v2934 = vunpack.c.h.b16 %v337
    %v2935 = vunpack.c.l.b16 %v338
    %v2936 = vunpack.c.h.b16 %v338
    %v2937 = vunpack.c.l.b16 %v339
    %v2938 = vunpack.c.h.b16 %v339
    %v2939 = vunpack.c.l.b16 %v340
    %v2940 = vunpack.c.h.b16 %v340
    %v2941 = vunpack.c.l.b16 %v341
    %v2942 = vunpack.c.h.b16 %v341
    %v2943 = vunpack.c.l.b16 %v342
    %v2944 = vunpack.c.h.b16 %v342
    %v2945 = vunpack.c.l.b16 %v343
    %v2946 = vunpack.c.h.b16 %v343
    %v2947 = vunpack.c.l.b16 %v344
    %v2948 = vunpack.c.h.b16 %v344
    %v2949 = vunpack.c.l.b16 %v345
    %v2950 = vunpack.c.h.b16 %v345
    %v2951 = vunpack.c.l.b16 %v346
    %v2952 = vunpack.c.h.b16 %v346
    %v2953 = vunpack.c.l.b16 %v347
    %v2954 = vunpack.c.h.b16 %v347
    %v2955 = vunpack.c.l.b16 %v348
    %v2956 = vunpack.c.h.b16 %v348
    %v2957 = vunpack.c.l.b16 %v349
    %v2958 = vunpack.c.h.b16 %v349
    %v2959 = vunpack.c.l.b16 %v350
    %v2960 = vunpack.c.h.b16 %v350
    %v2961 = vunpack.c.l.b16 %v351
    %v2962 = vunpack.c.h.b16 %v351
    %v2963 = vpack.c.b16 %v2679, %v2675
    %v2964 = vpack.c.b16 %v2680, %v2676
    %v2965 = vpack.c.b16 %v2681, %v2677
    %v2966 = vpack.c.b16 %v2682, %v2678
    %v2967 = vpack.c.b16 %v2687, %v2683
    %v2968 = vpack.c.b16 %v2688, %v2684
    %v2969 = vpack.c.b16 %v2689, %v2685
    %v2970 = vpack.c.b16 %v2690, %v2686
    %v2971 = vpack.c.b16 %v2695, %v2691
    %v2972 = vpack.c.b16 %v2696, %v2692
    %v2973 = vpack.c.b16 %v2697, %v2693
    %v2974 = vpack.c.b16 %v2698, %v2694
    %v2975 = vpack.c.b16 %v2703, %v2699
    %v2976 = vpack.c.b16 %v2704, %v2700
    %v2977 = vpack.c.b16 %v2705, %v2701
    %v2978 = vpack.c.b16 %v2706, %v2702
    %v2979 = vpack.c.b16 %v2711, %v2707
    %v2980 = vpack.c.b16 %v2712, %v2708
    %v2981 = vpack.c.b16 %v2713, %v2709
    %v2982 = vpack.c.b16 %v2714, %v2710
    %v2983 = vpack.c.b16 %v2719, %v2715
    %v2984 = vpack.c.b16 %v2720, %v2716
    %v2985 = vpack.c.b16 %v2721, %v2717
    %v2986 = vpack.c.b16 %v2722, %v2718
    %v2987 = vpack.c.b16 %v2727, %v2723
    %v2988 = vpack.c.b16 %v2728, %v2724
    %v2989 = vpack.c.b16 %v2729, %v2725
    %v2990 = vpack.c.b16 %v2730, %v2726
    %v2991 = vpack.c.b16 %v2735, %v2731
    %v2992 = vpack.c.b16 %v2736, %v2732
    %v2993 = vpack.c.b16 %v2737, %v2733
    %v2994 = vpack.c.b16 %v2738, %v2734
    %v2995 = vpack.c.b16 %v2743, %v2739
    %v2996 = vpack.c.b16 %v2744, %v2740
    %v2997 = vpack.c.b16 %v2745, %v2741
    %v2998 = vpack.c.b16 %v2746, %v2742
    %v2999 = vpack.c.b16 %v2751, %v2747
    %v3000 = vpack.c.b16 %v2752, %v2748
    %v3001 = vpack.c.b16 %v2753, %v2749
    %v3002 = vpack.c.b16 %v2754, %v2750
    %v3003 = vpack.c.b16 %v2759, %v2755
    %v3004 = vpack.c.b16 %v2760, %v2756
    %v3005 = vpack.c.b16 %v2761, %v2757
    %v3006 = vpack.c.b16 %v2762, %v2758
    %v3007 = vpack.c.b16 %v2767, %v2763
    %v3008 = vpack.c.b16 %v2768, %v2764
    %v3009 = vpack.c.b16 %v2769, %v2765
    %v3010 = vpack.c.b16 %v2770, %v2766
    %v3011 = vpack.c.b16 %v2775, %v2771
    %v3012 = vpack.c.b16 %v2776, %v2772
    %v3013 = vpack.c.b16 %v2777, %v2773
    %v3014 = vpack.c.b16 %v2778, %v2774
    %v3015 = vpack.c.b16 %v2783, %v2779
    %v3016 = vpack.c.b16 %v2784, %v2780
    %v3017 = vpack.c.b16 %v2785, %v2781
    %v3018 = vpack.c.b16 %v2786, %v2782
    %v3019 = vpack.c.b16 %v2791, %v2787
    %v3020 = vpack.c.b16 %v2792, %v2788
    %v3021 = vpack.c.b16 %v2793, %v2789
    %v3022 = vpack.c.b16 %v2794, %v2790
    %v3023 = vpack.c.b16 %v2799, %v2795
    %v3024 = vpack.c.b16 %v2800, %v2796
    %v3025 = vpack.c.b16 %v2801, %v2797
    %v3026 = vpack.c.b16 %v2802, %v2798
    %v3027 = vpack.c.b16 %v2807, %v2803
    %v3028 = vpack.c.b16 %v2808, %v2804
    %v3029 = vpack.c.b16 %v2809, %v2805
    %v3030 = vpack.c.b16 %v2810, %v2806
    %v3031 = vpack.c.b16 %v2815, %v2811
    %v3032 = vpack.c.b16 %v2816, %v2812
    %v3033 = vpack.c.b16 %v2817, %v2813
    %v3034 = vpack.c.b16 %v2818, %v2814
    %v3035 = vpack.c.b16 %v2823, %v2819
    %v3036 = vpack.c.b16 %v2824, %v2820
    %v3037 = vpack.c.b16 %v2825, %v2821
    %v3038 = vpack.c.b16 %v2826, %v2822
    %v3039 = vpack.c.b16 %v2831, %v2827
    %v3040 = vpack.c.b16 %v2832, %v2828
    %v3041 = vpack.c.b16 %v2833, %v2829
    %v3042 = vpack.c.b16 %v2834, %v2830
    %v3043 = vpack.c.b16 %v2839, %v2835
    %v3044 = vpack.c.b16 %v2840, %v2836
    %v3045 = vpack.c.b16 %v2841, %v2837
    %v3046 = vpack.c.b16 %v2842, %v2838
    %v3047 = vpack.c.b16 %v2847, %v2843
    %v3048 = vpack.c.b16 %v2848, %v2844
    %v3049 = vpack.c.b16 %v2849, %v2845
    %v3050 = vpack.c.b16 %v2850, %v2846
    %v3051 = vpack.c.b16 %v2855, %v2851
    %v3052 = vpack.c.b16 %v2856, %v2852
    %v3053 = vpack.c.b16 %v2857, %v2853
    %v3054 = vpack.c.b16 %v2858, %v2854
    %v3055 = vpack.c.b16 %v2863, %v2859
    %v3056 = vpack.c.b16 %v2864, %v2860
    %v3057 = vpack.c.b16 %v2865, %v2861
    %v3058 = vpack.c.b16 %v2866, %v2862
    %v3059 = vpack.c.b16 %v2871, %v2867
    %v3060 = vpack.c.b16 %v2872, %v2868
    %v3061 = vpack.c.b16 %v2873, %v2869
    %v3062 = vpack.c.b16 %v2874, %v2870
    %v3063 = vpack.c.b16 %v2879, %v2875
    %v3064 = vpack.c.b16 %v2880, %v2876
    %v3065 = vpack.c.b16 %v2881, %v2877
    %v3066 = vpack.c.b16 %v2882, %v2878
    %v3067 = vpack.c.b16 %v2887, %v2883
    %v3068 = vpack.c.b16 %v2888, %v2884
    %v3069 = vpack.c.b16 %v2889, %v2885
    %v3070 = vpack.c.b16 %v2890, %v2886
    %v3071 = vpack.c.b16 %v2895, %v2891
    %v3072 = vpack.c.b16 %v2896, %v2892
    %v3073 = vpack.c.b16 %v2897, %v2893
    %v3074 = vpack.c.b16 %v2898, %v2894
    %v3075 = vpack.c.b16 %v2903, %v2899
    %v3076 = vpack.c.b16 %v2904, %v2900
    %v3077 = vpack.c.b16 %v2905, %v2901
    %v3078 = vpack.c.b16 %v2906, %v2902
    %v3079 = vpack.c.b16 %v2911, %v2907
    %v3080 = vpack.c.b16 %v2912, %v2908
    %v3081 = vpack.c.b16 %v2913, %v2909
    %v3082 = vpack.c.b16 %v2914, %v2910
    %v3083 = vpack.c.b16 %v2919, %v2915
    %v3084 = vpack.c.b16 %v2920, %v2916
    %v3085 = vpack.c.b16 %v2921, %v2917
    %v3086 = vpack.c.b16 %v2922, %v2918
    %v3087 = vpack.c.b16 %v2927, %v2923
    %v3088 = vpack.c.b16 %v2928, %v2924
    %v3089 = vpack.c.b16 %v2929, %v2925
    %v3090 = vpack.c.b16 %v2930, %v2926
    %v3091 = vpack.c.b16 %v2935, %v2931
    %v3092 = vpack.c.b16 %v2936, %v2932
    %v3093 = vpack.c.b16 %v2937, %v2933
    %v3094 = vpack.c.b16 %v2938, %v2934
    %v3095 = vpack.c.b16 %v2943, %v2939
    %v3096 = vpack.c.b16 %v2944, %v2940
    %v3097 = vpack.c.b16 %v2945, %v2941
    %v3098 = vpack.c.b16 %v2946, %v2942
    %v3099 = vpack.c.b16 %v2951, %v2947
    %v3100 = vpack.c.b16 %v2952, %v2948
    %v3101 = vpack.c.b16 %v2953, %v2949
    %v3102 = vpack.c.b16 %v2954, %v2950
    %v3103 = vpack.c.b16 %v2959, %v2955
    %v3104 = vpack.c.b16 %v2960, %v2956
    %v3105 = vpack.c.b16 %v2961, %v2957
    %v3106 = vpack.c.b16 %v2962, %v2958
    %vm3251 = vcmask 523264
    %v3253 = vsel %vm3251, %v2530, 0
    %3255 = vmatprep.subr.bf16.mxu0 %v2964
    %3256 = vmatpush1.bf16.msra.mxu0 %v2963
    %3257 = vmatprep.subr.bf16.mxu0 %v2968
    %3258 = vmatpush1.bf16.msra.mxu0 %v2967
    %3259 = vmatprep.subr.bf16.mxu0 %v2972
    %3260 = vmatpush1.bf16.msra.mxu0 %v2971
    %3261 = vmatprep.subr.bf16.mxu0 %v2976
    %3262 = vmatpush1.bf16.msra.mxu0 %v2975
    %3263 = vmatprep.subr.bf16.mxu0 %v2980
    %3264 = vmatpush1.bf16.msra.mxu0 %v2979
    %3265 = vmatprep.subr.bf16.mxu0 %v2984
    %3266 = vmatpush1.bf16.msra.mxu0 %v2983
    %3267 = vmatprep.subr.bf16.mxu0 %v2988
    %3268 = vmatpush1.bf16.msra.mxu0 %v2987
    %3269 = vmatprep.subr.bf16.mxu0 %v2992
    %3270 = vmatpush1.bf16.msra.mxu0 %v2991
    %3271 = vmatprep.subr.bf16.mxu0 %v2996
    %3272 = vmatpush1.bf16.msra.mxu0 %v2995
    %3273 = vmatprep.subr.bf16.mxu0 %v3000
    %3274 = vmatpush1.bf16.msra.mxu0 %v2999
    %3275 = vmatprep.subr.bf16.mxu0 %v3004
    %3276 = vmatpush1.bf16.msra.mxu0 %v3003
    %3277 = vmatprep.subr.bf16.mxu0 %v3008
    %3278 = vmatpush1.bf16.msra.mxu0 %v3007
    %3279 = vmatprep.subr.bf16.mxu0 %v3012
    %3280 = vmatpush1.bf16.msra.mxu0 %v3011
    %3281 = vmatprep.subr.bf16.mxu0 %v3016
    %3282 = vmatpush1.bf16.msra.mxu0 %v3015
    %3283 = vmatprep.subr.bf16.mxu0 %v3020
    %3284 = vmatpush1.bf16.msra.mxu0 %v3019
    %3285 = vmatprep.subr.bf16.mxu0 %v3024
    %3286 = vmatpush1.bf16.msra.mxu0 %v3023
    %3287 = vmatprep.mubr.bf16.mxu0 %v2527
    %3288 = vmatmul.mubr.bf16.gmra.mrb[0].mxu0 %v2526
    %v3289 = vpop.f32.mrb[0].mxu0
    %v3290 = vadd.f32 0.0, %v3289
    %v3291 = vpop.f32.mrb[0].mxu0
    %v3292 = vadd.f32 0.0, %v3291
    %v3293 = vpop.f32.mrb[0].mxu0
    %v3294 = vpop.f32.mrb[0].mxu0
    %3295 = vdwg.mxu0
    %3296 = vmatprep.subr.bf16.mxu0 %v3028
    %3297 = vmatpush1.bf16.msra.mxu0 %v3027
    %3298 = vmatprep.subr.bf16.mxu0 %v3032
    %3299 = vmatpush1.bf16.msra.mxu0 %v3031
    %3300 = vmatprep.subr.bf16.mxu0 %v3036
    %3301 = vmatpush1.bf16.msra.mxu0 %v3035
    %3302 = vmatprep.subr.bf16.mxu0 %v3040
    %3303 = vmatpush1.bf16.msra.mxu0 %v3039
    %3304 = vmatprep.subr.bf16.mxu0 %v3044
    %3305 = vmatpush1.bf16.msra.mxu0 %v3043
    %3306 = vmatprep.subr.bf16.mxu0 %v3048
    %3307 = vmatpush1.bf16.msra.mxu0 %v3047
    %3308 = vmatprep.subr.bf16.mxu0 %v3052
    %3309 = vmatpush1.bf16.msra.mxu0 %v3051
    %3310 = vmatprep.subr.bf16.mxu0 %v3056
    %3311 = vmatpush1.bf16.msra.mxu0 %v3055
    %3312 = vmatprep.subr.bf16.mxu0 %v3060
    %3313 = vmatpush1.bf16.msra.mxu0 %v3059
    %3314 = vmatprep.subr.bf16.mxu0 %v3064
    %3315 = vmatpush1.bf16.msra.mxu0 %v3063
    %3316 = vmatprep.subr.bf16.mxu0 %v3068
    %3317 = vmatpush1.bf16.msra.mxu0 %v3067
    %3318 = vmatprep.subr.bf16.mxu0 %v3072
    %3319 = vmatpush1.bf16.msra.mxu0 %v3071
    %3320 = vmatprep.subr.bf16.mxu0 %v3076
    %3321 = vmatpush1.bf16.msra.mxu0 %v3075
    %3322 = vmatprep.subr.bf16.mxu0 %v3080
    %3323 = vmatpush1.bf16.msra.mxu0 %v3079
    %3324 = vmatprep.subr.bf16.mxu0 %v3084
    %3325 = vmatpush1.bf16.msra.mxu0 %v3083
    %3326 = vmatprep.subr.bf16.mxu0 %v3088
    %3327 = vmatpush1.bf16.msra.mxu0 %v3087
    %3328 = vmatprep.mubr.bf16.mxu0 %v2529
    %3329 = vmatmul.mubr.bf16.gmra.mrb[0].mxu0 %v2528
    %v3330 = vpop.f32.mrb[0].mxu0
    %v3331 = vadd.f32 %v3290, %v3330
    %v3332 = vpop.f32.mrb[0].mxu0
    %v3333 = vadd.f32 %v3292, %v3332
    %v3334 = vpop.f32.mrb[0].mxu0
    %v3335 = vpop.f32.mrb[0].mxu0
    %3336 = vdwg.mxu0
    %3337 = vmatprep.subr.bf16.mxu0 %v3092
    %3338 = vmatpush1.bf16.msra.mxu0 %v3091
    %3339 = vmatprep.subr.bf16.mxu0 %v3096
    %3340 = vmatpush1.bf16.msra.mxu0 %v3095
    %3341 = vmatprep.subr.bf16.mxu0 %v3100
    %3342 = vmatpush1.bf16.msra.mxu0 %v3099
    %3343 = vmatprep.subr.bf16.mxu0 %v3104
    %3344 = vmatpush1.bf16.msra.mxu0 %v3103
    %3345 = vmatprep.subr.bf16.mxu0 0
    %3346 = vmatpush1.bf16.msra.mxu0 0
    %3347 = vmatprep.subr.bf16.mxu0 0
    %3348 = vmatpush1.bf16.msra.mxu0 0
    %3349 = vmatprep.subr.bf16.mxu0 0
    %3350 = vmatpush1.bf16.msra.mxu0 0
    %3351 = vmatprep.subr.bf16.mxu0 0
    %3352 = vmatpush1.bf16.msra.mxu0 0
    %3353 = vmatprep.subr.bf16.mxu0 0
    %3354 = vmatpush1.bf16.msra.mxu0 0
    %3355 = vmatprep.subr.bf16.mxu0 0
    %3356 = vmatpush1.bf16.msra.mxu0 0
    %3357 = vmatprep.subr.bf16.mxu0 0
    %3358 = vmatpush1.bf16.msra.mxu0 0
    %3359 = vmatprep.subr.bf16.mxu0 0
    %3360 = vmatpush1.bf16.msra.mxu0 0
    %3361 = vmatprep.subr.bf16.mxu0 0
    %3362 = vmatpush1.bf16.msra.mxu0 0
    %3363 = vmatprep.subr.bf16.mxu0 0
    %3364 = vmatpush1.bf16.msra.mxu0 0
    %3365 = vmatprep.subr.bf16.mxu0 0
    %3366 = vmatpush1.bf16.msra.mxu0 0
    %3367 = vmatprep.subr.bf16.mxu0 0
    %3368 = vmatpush1.bf16.msra.mxu0 0
    %3369 = vmatprep.mubr.bf16.mxu0 0
    %3370 = vmatmul.mubr.bf16.gmra.mrb[0].mxu0 %v3253
    %v3371 = vpop.f32.mrb[0].mxu0
    %v3372 = vadd.f32 %v3331, %v3371
    %v3373 = vpop.f32.mrb[0].mxu0
    %v3374 = vadd.f32 %v3333, %v3373
    %v3375 = vpop.f32.mrb[0].mxu0
    %v3376 = vpop.f32.mrb[0].mxu0
    %3377 = vdwg.mxu0
    %3378 = vmatprep.subr.bf16.mxu0 %v2966
    %3379 = vmatpush1.bf16.msra.mxu0 %v2965
    %3380 = vmatprep.subr.bf16.mxu0 %v2970
    %3381 = vmatpush1.bf16.msra.mxu0 %v2969
    %3382 = vmatprep.subr.bf16.mxu0 %v2974
    %3383 = vmatpush1.bf16.msra.mxu0 %v2973
    %3384 = vmatprep.subr.bf16.mxu0 %v2978
    %3385 = vmatpush1.bf16.msra.mxu0 %v2977
    %3386 = vmatprep.subr.bf16.mxu0 %v2982
    %3387 = vmatpush1.bf16.msra.mxu0 %v2981
    %3388 = vmatprep.subr.bf16.mxu0 %v2986
    %3389 = vmatpush1.bf16.msra.mxu0 %v2985
    %3390 = vmatprep.subr.bf16.mxu0 %v2990
    %3391 = vmatpush1.bf16.msra.mxu0 %v2989
    %3392 = vmatprep.subr.bf16.mxu0 %v2994
    %3393 = vmatpush1.bf16.msra.mxu0 %v2993
    %3394 = vmatprep.subr.bf16.mxu0 %v2998
    %3395 = vmatpush1.bf16.msra.mxu0 %v2997
    %3396 = vmatprep.subr.bf16.mxu0 %v3002
    %3397 = vmatpush1.bf16.msra.mxu0 %v3001
    %3398 = vmatprep.subr.bf16.mxu0 %v3006
    %3399 = vmatpush1.bf16.msra.mxu0 %v3005
    %3400 = vmatprep.subr.bf16.mxu0 %v3010
    %3401 = vmatpush1.bf16.msra.mxu0 %v3009
    %3402 = vmatprep.subr.bf16.mxu0 %v3014
    %3403 = vmatpush1.bf16.msra.mxu0 %v3013
    %3404 = vmatprep.subr.bf16.mxu0 %v3018
    %3405 = vmatpush1.bf16.msra.mxu0 %v3017
    %3406 = vmatprep.subr.bf16.mxu0 %v3022
    %3407 = vmatpush1.bf16.msra.mxu0 %v3021
    %3408 = vmatprep.subr.bf16.mxu0 %v3026
    %3409 = vmatpush1.bf16.msra.mxu0 %v3025
    %3410 = vmatprep.mubr.bf16.mxu0 %v2527
    %3411 = vmatmul.mubr.bf16.gmra.mrb[0].mxu0 %v2526
    %v3412 = vpop.f32.mrb[0].mxu0
    %v3413 = vadd.f32 0.0, %v3412
    %v3414 = vpop.f32.mrb[0].mxu0
    %v3415 = vadd.f32 0.0, %v3414
    %v3416 = vpop.f32.mrb[0].mxu0
    %v3417 = vpop.f32.mrb[0].mxu0
    %3418 = vdwg.mxu0
    %3419 = vmatprep.subr.bf16.mxu0 %v3030
    %3420 = vmatpush1.bf16.msra.mxu0 %v3029
    %3421 = vmatprep.subr.bf16.mxu0 %v3034
    %3422 = vmatpush1.bf16.msra.mxu0 %v3033
    %3423 = vmatprep.subr.bf16.mxu0 %v3038
    %3424 = vmatpush1.bf16.msra.mxu0 %v3037
    %3425 = vmatprep.subr.bf16.mxu0 %v3042
    %3426 = vmatpush1.bf16.msra.mxu0 %v3041
    %3427 = vmatprep.subr.bf16.mxu0 %v3046
    %3428 = vmatpush1.bf16.msra.mxu0 %v3045
    %3429 = vmatprep.subr.bf16.mxu0 %v3050
    %3430 = vmatpush1.bf16.msra.mxu0 %v3049
    %3431 = vmatprep.subr.bf16.mxu0 %v3054
    %3432 = vmatpush1.bf16.msra.mxu0 %v3053
    %3433 = vmatprep.subr.bf16.mxu0 %v3058
    %3434 = vmatpush1.bf16.msra.mxu0 %v3057
    %3435 = vmatprep.subr.bf16.mxu0 %v3062
    %3436 = vmatpush1.bf16.msra.mxu0 %v3061
    %3437 = vmatprep.subr.bf16.mxu0 %v3066
    %3438 = vmatpush1.bf16.msra.mxu0 %v3065
    %3439 = vmatprep.subr.bf16.mxu0 %v3070
    %3440 = vmatpush1.bf16.msra.mxu0 %v3069
    %3441 = vmatprep.subr.bf16.mxu0 %v3074
    %3442 = vmatpush1.bf16.msra.mxu0 %v3073
    %3443 = vmatprep.subr.bf16.mxu0 %v3078
    %3444 = vmatpush1.bf16.msra.mxu0 %v3077
    %3445 = vmatprep.subr.bf16.mxu0 %v3082
    %3446 = vmatpush1.bf16.msra.mxu0 %v3081
    %3447 = vmatprep.subr.bf16.mxu0 %v3086
    %3448 = vmatpush1.bf16.msra.mxu0 %v3085
    %3449 = vmatprep.subr.bf16.mxu0 %v3090
    %3450 = vmatpush1.bf16.msra.mxu0 %v3089
    %3451 = vmatprep.mubr.bf16.mxu0 %v2529
    %3452 = vmatmul.mubr.bf16.gmra.mrb[0].mxu0 %v2528
    %v3453 = vpop.f32.mrb[0].mxu0
    %v3454 = vadd.f32 %v3413, %v3453
    %v3455 = vpop.f32.mrb[0].mxu0
    %v3456 = vadd.f32 %v3415, %v3455
    %v3457 = vpop.f32.mrb[0].mxu0
    %v3458 = vpop.f32.mrb[0].mxu0
    %3459 = vdwg.mxu0
    %3460 = vmatprep.subr.bf16.mxu0 %v3094
    %3461 = vmatpush1.bf16.msra.mxu0 %v3093
    %3462 = vmatprep.subr.bf16.mxu0 %v3098
    %3463 = vmatpush1.bf16.msra.mxu0 %v3097
    %3464 = vmatprep.subr.bf16.mxu0 %v3102
    %3465 = vmatpush1.bf16.msra.mxu0 %v3101
    %3466 = vmatprep.subr.bf16.mxu0 %v3106
    %3467 = vmatpush1.bf16.msra.mxu0 %v3105
    %3468 = vmatprep.subr.bf16.mxu0 0
    %3469 = vmatpush1.bf16.msra.mxu0 0
    %3470 = vmatprep.subr.bf16.mxu0 0
    %3471 = vmatpush1.bf16.msra.mxu0 0
    %3472 = vmatprep.subr.bf16.mxu0 0
    %3473 = vmatpush1.bf16.msra.mxu0 0
    %3474 = vmatprep.subr.bf16.mxu0 0
    %3475 = vmatpush1.bf16.msra.mxu0 0
    %3476 = vmatprep.subr.bf16.mxu0 0
    %3477 = vmatpush1.bf16.msra.mxu0 0
    %3478 = vmatprep.subr.bf16.mxu0 0
    %3479 = vmatpush1.bf16.msra.mxu0 0
    %3480 = vmatprep.subr.bf16.mxu0 0
    %3481 = vmatpush1.bf16.msra.mxu0 0
    %3482 = vmatprep.subr.bf16.mxu0 0
    %3483 = vmatpush1.bf16.msra.mxu0 0
    %3484 = vmatprep.subr.bf16.mxu0 0
    %3485 = vmatpush1.bf16.msra.mxu0 0
    %3486 = vmatprep.subr.bf16.mxu0 0
    %3487 = vmatpush1.bf16.msra.mxu0 0
    %3488 = vmatprep.subr.bf16.mxu0 0
    %3489 = vmatpush1.bf16.msra.mxu0 0
    %3490 = vmatprep.subr.bf16.mxu0 0
    %3491 = vmatpush1.bf16.msra.mxu0 0
    %3492 = vmatprep.mubr.bf16.mxu0 0
    %3493 = vmatmul.mubr.bf16.gmra.mrb[0].mxu0 %v3253
    %v3494 = vpop.f32.mrb[0].mxu0
    %v3495 = vadd.f32 %v3454, %v3494
    %v3496 = vpop.f32.mrb[0].mxu0
    %v3497 = vadd.f32 %v3456, %v3496
    %v3498 = vpop.f32.mrb[0].mxu0
    %v3499 = vpop.f32.mrb[0].mxu0
    %3500 = vdwg.mxu0
    %v3501 = vmax.f32 %v3372, %v3495
    %v3502 = vmax.f32 %v3374, %v3497
    %3505 = vrot.lane.b32.xlu0 %v3501, 112
    %v3506 = vpop.permute.xlu0 %3505
    %3507 = vrot.lane.b32.xlu0 %v3502, 112
    %v3508 = vpop.permute.xlu0 %3507
    %vm3509 = vcmask 916480
    %v3510 = vsel %vm3509, %v3506, %v3508
    %v3513 = vmax.f32 %v3501, %v3510
    %v3514 = vmax.f32 %v3502, %v3508
    %v3515 = vpack.c.bf16 %v3513, %v3513
    %v3516 = vpack.c.bf16 %v3514, %v3514
    %v3517 = vlaneseq
    %v3518 = vshrl.u32 %v3517, 7
    %v3519 = vsub.s32 1, %v3518
    %v3520 = vrot.slane %v86, %v3519
    %v3551 = vunpack.c.l.b16 %v352
    %v3552 = vunpack.c.l.b16 %v353
    %v3553 = vunpack.c.l.b16 %v354
    %v3554 = vunpack.c.l.b16 %v355
    %v3555 = vunpack.c.l.b16 %v356
    %v3556 = vunpack.c.l.b16 %v357
    %v3557 = vunpack.c.l.b16 %v358
    %v3558 = vunpack.c.l.b16 %v359
    %v3559 = vunpack.c.l.b16 %v360
    %v3560 = vunpack.c.l.b16 %v361
    %v3561 = vunpack.c.l.b16 %v362
    %v3562 = vunpack.c.l.b16 %v363
    %v3563 = vunpack.c.l.b16 %v364
    %v3564 = vunpack.c.l.b16 %v365
    %v3565 = vunpack.c.l.b16 %v366
    %v3566 = vunpack.c.l.b16 %v367
    %v3567 = vunpack.c.l.b16 %v368
    %v3568 = vunpack.c.l.b16 %v369
    %v3569 = vunpack.c.l.b16 %v370
    %v3570 = vunpack.c.l.b16 %v371
    %v3571 = vunpack.c.l.b16 %v372
    %v3572 = vunpack.c.l.b16 %v373
    %v3573 = vunpack.c.l.b16 %v374
    %v3574 = vunpack.c.l.b16 %v375
    %v3575 = vunpack.c.l.b16 %v376
    %v3576 = vunpack.c.l.b16 %v377
    %v3577 = vunpack.c.l.b16 %v378
    %v3578 = vunpack.c.l.b16 %v379
    %v3579 = vunpack.c.l.b16 %v380
    %v3580 = vunpack.c.l.b16 %v381
    %v3581 = vpack.c.b16 %v3552, %v3551
    %v3582 = vpack.c.b16 %v3554, %v3553
    %v3583 = vpack.c.b16 %v3556, %v3555
    %v3584 = vpack.c.b16 %v3558, %v3557
    %v3585 = vpack.c.b16 %v3560, %v3559
    %v3586 = vpack.c.b16 %v3562, %v3561
    %v3587 = vpack.c.b16 %v3564, %v3563
    %v3588 = vpack.c.b16 %v3566, %v3565
    %v3589 = vpack.c.b16 %v3568, %v3567
    %v3590 = vpack.c.b16 %v3570, %v3569
    %v3591 = vpack.c.b16 %v3572, %v3571
    %v3592 = vpack.c.b16 %v3574, %v3573
    %v3593 = vpack.c.b16 %v3576, %v3575
    %v3594 = vpack.c.b16 %v3578, %v3577
    %v3595 = vpack.c.b16 %v3580, %v3579
    %v3612 = vsel %vm3509, %v3516, 0
    %3614 = vmatprep.subr.bf16.mxu0 0
    %3615 = vmatpush1.bf16.msra.mxu0 %v3581
    %3616 = vmatprep.subr.bf16.mxu0 0
    %3617 = vmatpush1.bf16.msra.mxu0 %v3582
    %3618 = vmatprep.subr.bf16.mxu0 0
    %3619 = vmatpush1.bf16.msra.mxu0 %v3583
    %3620 = vmatprep.subr.bf16.mxu0 0
    %3621 = vmatpush1.bf16.msra.mxu0 %v3584
    %3622 = vmatprep.subr.bf16.mxu0 0
    %3623 = vmatpush1.bf16.msra.mxu0 %v3585
    %3624 = vmatprep.subr.bf16.mxu0 0
    %3625 = vmatpush1.bf16.msra.mxu0 %v3586
    %3626 = vmatprep.subr.bf16.mxu0 0
    %3627 = vmatpush1.bf16.msra.mxu0 %v3587
    %3628 = vmatprep.subr.bf16.mxu0 0
    %3629 = vmatpush1.bf16.msra.mxu0 %v3588
    %3630 = vmatprep.subr.bf16.mxu0 0
    %3631 = vmatpush1.bf16.msra.mxu0 %v3589
    %3632 = vmatprep.subr.bf16.mxu0 0
    %3633 = vmatpush1.bf16.msra.mxu0 %v3590
    %3634 = vmatprep.subr.bf16.mxu0 0
    %3635 = vmatpush1.bf16.msra.mxu0 %v3591
    %3636 = vmatprep.subr.bf16.mxu0 0
    %3637 = vmatpush1.bf16.msra.mxu0 %v3592
    %3638 = vmatprep.subr.bf16.mxu0 0
    %3639 = vmatpush1.bf16.msra.mxu0 %v3593
    %3640 = vmatprep.subr.bf16.mxu0 0
    %3641 = vmatpush1.bf16.msra.mxu0 %v3594
    %3642 = vmatprep.subr.bf16.mxu0 0
    %3643 = vmatpush1.bf16.msra.mxu0 %v3595
    %3644 = vmatprep.subr.bf16.mxu0 0
    %3645 = vmatpush1.bf16.msra.mxu0 0
    %3646 = vmatprep.mubr.bf16.mxu0 %v3612
    %3647 = vmatmul.mubr.bf16.gmra.mrb[0].mxu0 %v3515
    %v3648 = vpop.f32.mrb[0].mxu0
    %v3649 = vadd.f32 %v3520, %v3648
    %v3650 = vpop.f32.mrb[0].mxu0
    %v3651 = vpop.f32.mrb[0].mxu0
    %v3652 = vpop.f32.mrb[0].mxu0
    %3653 = vdwg.mxu0
    %v3654 = vmax.f32 %v3649, 0.0
    %3655 = vrot.lane.b32.xlu0 %v1971, 16
    %v3656 = vpop.permute.xlu0 %3655
    %3657 = vrot.lane.b32.xlu0 %v1972, 16
    %v3658 = vpop.permute.xlu0 %3657
    %v3659 = vsel %vm2499, %v3656, %v3658
    %3664 = vrot.lane.b32.xlu0 %v2231, 32
    %v3665 = vpop.permute.xlu0 %3664
    %3666 = vrot.lane.b32.xlu0 %v2232, 32
    %v3667 = vpop.permute.xlu0 %3666
    %v3668 = vsel %vm2509, %v3665, %v3667
    %3673 = vrot.lane.b32.xlu0 %v2491, 48
    %v3674 = vpop.permute.xlu0 %3673
    %3675 = vrot.lane.b32.xlu0 %v2492, 48
    %v3676 = vpop.permute.xlu0 %3675
    %v3677 = vsel %vm2519, %v3674, %v3676
    %v3680 = vsel %vm2499, %v1712, %v3656
    %v3681 = vsel %vm2509, %v3659, %v3665
    %v3682 = vsel %vm2519, %v3668, %v3674
    %v3683 = vpack.c.bf16 %v1711, %v1711
    %v3684 = vpack.c.bf16 %v3680, %v3680
    %v3685 = vpack.c.bf16 %v3681, %v3681
    %v3686 = vpack.c.bf16 %v3682, %v3682
    %v3687 = vpack.c.bf16 %v3677, %v3677
    %v3689 = vsel %vm3251, %v3687, 0
    %3691 = vmatprep.subr.bf16.mxu0 %v2964
    %3692 = vmatpush1.bf16.msra.mxu0 %v2963
    %3693 = vmatprep.subr.bf16.mxu0 %v2968
    %3694 = vmatpush1.bf16.msra.mxu0 %v2967
    %3695 = vmatprep.subr.bf16.mxu0 %v2972
    %3696 = vmatpush1.bf16.msra.mxu0 %v2971
    %3697 = vmatprep.subr.bf16.mxu0 %v2976
    %3698 = vmatpush1.bf16.msra.mxu0 %v2975
    %3699 = vmatprep.subr.bf16.mxu0 %v2980
    %3700 = vmatpush1.bf16.msra.mxu0 %v2979
    %3701 = vmatprep.subr.bf16.mxu0 %v2984
    %3702 = vmatpush1.bf16.msra.mxu0 %v2983
    %3703 = vmatprep.subr.bf16.mxu0 %v2988
    %3704 = vmatpush1.bf16.msra.mxu0 %v2987
    %3705 = vmatprep.subr.bf16.mxu0 %v2992
    %3706 = vmatpush1.bf16.msra.mxu0 %v2991
    %3707 = vmatprep.subr.bf16.mxu0 %v2996
    %3708 = vmatpush1.bf16.msra.mxu0 %v2995
    %3709 = vmatprep.subr.bf16.mxu0 %v3000
    %3710 = vmatpush1.bf16.msra.mxu0 %v2999
    %3711 = vmatprep.subr.bf16.mxu0 %v3004
    %3712 = vmatpush1.bf16.msra.mxu0 %v3003
    %3713 = vmatprep.subr.bf16.mxu0 %v3008
    %3714 = vmatpush1.bf16.msra.mxu0 %v3007
    %3715 = vmatprep.subr.bf16.mxu0 %v3012
    %3716 = vmatpush1.bf16.msra.mxu0 %v3011
    %3717 = vmatprep.subr.bf16.mxu0 %v3016
    %3718 = vmatpush1.bf16.msra.mxu0 %v3015
    %3719 = vmatprep.subr.bf16.mxu0 %v3020
    %3720 = vmatpush1.bf16.msra.mxu0 %v3019
    %3721 = vmatprep.subr.bf16.mxu0 %v3024
    %3722 = vmatpush1.bf16.msra.mxu0 %v3023
    %3723 = vmatprep.mubr.bf16.mxu0 %v3684
    %3724 = vmatmul.mubr.bf16.gmra.mrb[0].mxu0 %v3683
    %v3725 = vpop.f32.mrb[0].mxu0
    %v3726 = vadd.f32 0.0, %v3725
    %v3727 = vpop.f32.mrb[0].mxu0
    %v3728 = vadd.f32 0.0, %v3727
    %v3729 = vpop.f32.mrb[0].mxu0
    %v3730 = vpop.f32.mrb[0].mxu0
    %3731 = vdwg.mxu0
    %3732 = vmatprep.subr.bf16.mxu0 %v3028
    %3733 = vmatpush1.bf16.msra.mxu0 %v3027
    %3734 = vmatprep.subr.bf16.mxu0 %v3032
    %3735 = vmatpush1.bf16.msra.mxu0 %v3031
    %3736 = vmatprep.subr.bf16.mxu0 %v3036
    %3737 = vmatpush1.bf16.msra.mxu0 %v3035
    %3738 = vmatprep.subr.bf16.mxu0 %v3040
    %3739 = vmatpush1.bf16.msra.mxu0 %v3039
    %3740 = vmatprep.subr.bf16.mxu0 %v3044
    %3741 = vmatpush1.bf16.msra.mxu0 %v3043
    %3742 = vmatprep.subr.bf16.mxu0 %v3048
    %3743 = vmatpush1.bf16.msra.mxu0 %v3047
    %3744 = vmatprep.subr.bf16.mxu0 %v3052
    %3745 = vmatpush1.bf16.msra.mxu0 %v3051
    %3746 = vmatprep.subr.bf16.mxu0 %v3056
    %3747 = vmatpush1.bf16.msra.mxu0 %v3055
    %3748 = vmatprep.subr.bf16.mxu0 %v3060
    %3749 = vmatpush1.bf16.msra.mxu0 %v3059
    %3750 = vmatprep.subr.bf16.mxu0 %v3064
    %3751 = vmatpush1.bf16.msra.mxu0 %v3063
    %3752 = vmatprep.subr.bf16.mxu0 %v3068
    %3753 = vmatpush1.bf16.msra.mxu0 %v3067
    %3754 = vmatprep.subr.bf16.mxu0 %v3072
    %3755 = vmatpush1.bf16.msra.mxu0 %v3071
    %3756 = vmatprep.subr.bf16.mxu0 %v3076
    %3757 = vmatpush1.bf16.msra.mxu0 %v3075
    %3758 = vmatprep.subr.bf16.mxu0 %v3080
    %3759 = vmatpush1.bf16.msra.mxu0 %v3079
    %3760 = vmatprep.subr.bf16.mxu0 %v3084
    %3761 = vmatpush1.bf16.msra.mxu0 %v3083
    %3762 = vmatprep.subr.bf16.mxu0 %v3088
    %3763 = vmatpush1.bf16.msra.mxu0 %v3087
    %3764 = vmatprep.mubr.bf16.mxu0 %v3686
    %3765 = vmatmul.mubr.bf16.gmra.mrb[0].mxu0 %v3685
    %v3766 = vpop.f32.mrb[0].mxu0
    %v3767 = vadd.f32 %v3726, %v3766
    %v3768 = vpop.f32.mrb[0].mxu0
    %v3769 = vadd.f32 %v3728, %v3768
    %v3770 = vpop.f32.mrb[0].mxu0
    %v3771 = vpop.f32.mrb[0].mxu0
    %3772 = vdwg.mxu0
    %3773 = vmatprep.subr.bf16.mxu0 %v3092
    %3774 = vmatpush1.bf16.msra.mxu0 %v3091
    %3775 = vmatprep.subr.bf16.mxu0 %v3096
    %3776 = vmatpush1.bf16.msra.mxu0 %v3095
    %3777 = vmatprep.subr.bf16.mxu0 %v3100
    %3778 = vmatpush1.bf16.msra.mxu0 %v3099
    %3779 = vmatprep.subr.bf16.mxu0 %v3104
    %3780 = vmatpush1.bf16.msra.mxu0 %v3103
    %3781 = vmatprep.subr.bf16.mxu0 0
    %3782 = vmatpush1.bf16.msra.mxu0 0
    %3783 = vmatprep.subr.bf16.mxu0 0
    %3784 = vmatpush1.bf16.msra.mxu0 0
    %3785 = vmatprep.subr.bf16.mxu0 0
    %3786 = vmatpush1.bf16.msra.mxu0 0
    %3787 = vmatprep.subr.bf16.mxu0 0
    %3788 = vmatpush1.bf16.msra.mxu0 0
    %3789 = vmatprep.subr.bf16.mxu0 0
    %3790 = vmatpush1.bf16.msra.mxu0 0
    %3791 = vmatprep.subr.bf16.mxu0 0
    %3792 = vmatpush1.bf16.msra.mxu0 0
    %3793 = vmatprep.subr.bf16.mxu0 0
    %3794 = vmatpush1.bf16.msra.mxu0 0
    %3795 = vmatprep.subr.bf16.mxu0 0
    %3796 = vmatpush1.bf16.msra.mxu0 0
    %3797 = vmatprep.subr.bf16.mxu0 0
    %3798 = vmatpush1.bf16.msra.mxu0 0
    %3799 = vmatprep.subr.bf16.mxu0 0
    %3800 = vmatpush1.bf16.msra.mxu0 0
    %3801 = vmatprep.subr.bf16.mxu0 0
    %3802 = vmatpush1.bf16.msra.mxu0 0
    %3803 = vmatprep.subr.bf16.mxu0 0
    %3804 = vmatpush1.bf16.msra.mxu0 0
    %3805 = vmatprep.mubr.bf16.mxu0 0
    %3806 = vmatmul.mubr.bf16.gmra.mrb[0].mxu0 %v3689
    %v3807 = vpop.f32.mrb[0].mxu0
    %v3808 = vadd.f32 %v3767, %v3807
    %v3809 = vpop.f32.mrb[0].mxu0
    %v3810 = vadd.f32 %v3769, %v3809
    %v3811 = vpop.f32.mrb[0].mxu0
    %v3812 = vpop.f32.mrb[0].mxu0
    %3813 = vdwg.mxu0
    %3814 = vmatprep.subr.bf16.mxu0 %v2966
    %3815 = vmatpush1.bf16.msra.mxu0 %v2965
    %3816 = vmatprep.subr.bf16.mxu0 %v2970
    %3817 = vmatpush1.bf16.msra.mxu0 %v2969
    %3818 = vmatprep.subr.bf16.mxu0 %v2974
    %3819 = vmatpush1.bf16.msra.mxu0 %v2973
    %3820 = vmatprep.subr.bf16.mxu0 %v2978
    %3821 = vmatpush1.bf16.msra.mxu0 %v2977
    %3822 = vmatprep.subr.bf16.mxu0 %v2982
    %3823 = vmatpush1.bf16.msra.mxu0 %v2981
    %3824 = vmatprep.subr.bf16.mxu0 %v2986
    %3825 = vmatpush1.bf16.msra.mxu0 %v2985
    %3826 = vmatprep.subr.bf16.mxu0 %v2990
    %3827 = vmatpush1.bf16.msra.mxu0 %v2989
    %3828 = vmatprep.subr.bf16.mxu0 %v2994
    %3829 = vmatpush1.bf16.msra.mxu0 %v2993
    %3830 = vmatprep.subr.bf16.mxu0 %v2998
    %3831 = vmatpush1.bf16.msra.mxu0 %v2997
    %3832 = vmatprep.subr.bf16.mxu0 %v3002
    %3833 = vmatpush1.bf16.msra.mxu0 %v3001
    %3834 = vmatprep.subr.bf16.mxu0 %v3006
    %3835 = vmatpush1.bf16.msra.mxu0 %v3005
    %3836 = vmatprep.subr.bf16.mxu0 %v3010
    %3837 = vmatpush1.bf16.msra.mxu0 %v3009
    %3838 = vmatprep.subr.bf16.mxu0 %v3014
    %3839 = vmatpush1.bf16.msra.mxu0 %v3013
    %3840 = vmatprep.subr.bf16.mxu0 %v3018
    %3841 = vmatpush1.bf16.msra.mxu0 %v3017
    %3842 = vmatprep.subr.bf16.mxu0 %v3022
    %3843 = vmatpush1.bf16.msra.mxu0 %v3021
    %3844 = vmatprep.subr.bf16.mxu0 %v3026
    %3845 = vmatpush1.bf16.msra.mxu0 %v3025
    %3846 = vmatprep.mubr.bf16.mxu0 %v3684
    %3847 = vmatmul.mubr.bf16.gmra.mrb[0].mxu0 %v3683
    %v3848 = vpop.f32.mrb[0].mxu0
    %v3849 = vadd.f32 0.0, %v3848
    %v3850 = vpop.f32.mrb[0].mxu0
    %v3851 = vadd.f32 0.0, %v3850
    %v3852 = vpop.f32.mrb[0].mxu0
    %v3853 = vpop.f32.mrb[0].mxu0
    %3854 = vdwg.mxu0
    %3855 = vmatprep.subr.bf16.mxu0 %v3030
    %3856 = vmatpush1.bf16.msra.mxu0 %v3029
    %3857 = vmatprep.subr.bf16.mxu0 %v3034
    %3858 = vmatpush1.bf16.msra.mxu0 %v3033
    %3859 = vmatprep.subr.bf16.mxu0 %v3038
    %3860 = vmatpush1.bf16.msra.mxu0 %v3037
    %3861 = vmatprep.subr.bf16.mxu0 %v3042
    %3862 = vmatpush1.bf16.msra.mxu0 %v3041
    %3863 = vmatprep.subr.bf16.mxu0 %v3046
    %3864 = vmatpush1.bf16.msra.mxu0 %v3045
    %3865 = vmatprep.subr.bf16.mxu0 %v3050
    %3866 = vmatpush1.bf16.msra.mxu0 %v3049
    %3867 = vmatprep.subr.bf16.mxu0 %v3054
    %3868 = vmatpush1.bf16.msra.mxu0 %v3053
    %3869 = vmatprep.subr.bf16.mxu0 %v3058
    %3870 = vmatpush1.bf16.msra.mxu0 %v3057
    %3871 = vmatprep.subr.bf16.mxu0 %v3062
    %3872 = vmatpush1.bf16.msra.mxu0 %v3061
    %3873 = vmatprep.subr.bf16.mxu0 %v3066
    %3874 = vmatpush1.bf16.msra.mxu0 %v3065
    %3875 = vmatprep.subr.bf16.mxu0 %v3070
    %3876 = vmatpush1.bf16.msra.mxu0 %v3069
    %3877 = vmatprep.subr.bf16.mxu0 %v3074
    %3878 = vmatpush1.bf16.msra.mxu0 %v3073
    %3879 = vmatprep.subr.bf16.mxu0 %v3078
    %3880 = vmatpush1.bf16.msra.mxu0 %v3077
    %3881 = vmatprep.subr.bf16.mxu0 %v3082
    %3882 = vmatpush1.bf16.msra.mxu0 %v3081
    %3883 = vmatprep.subr.bf16.mxu0 %v3086
    %3884 = vmatpush1.bf16.msra.mxu0 %v3085
    %3885 = vmatprep.subr.bf16.mxu0 %v3090
    %3886 = vmatpush1.bf16.msra.mxu0 %v3089
    %3887 = vmatprep.mubr.bf16.mxu0 %v3686
    %3888 = vmatmul.mubr.bf16.gmra.mrb[0].mxu0 %v3685
    %v3889 = vpop.f32.mrb[0].mxu0
    %v3890 = vadd.f32 %v3849, %v3889
    %v3891 = vpop.f32.mrb[0].mxu0
    %v3892 = vadd.f32 %v3851, %v3891
    %v3893 = vpop.f32.mrb[0].mxu0
    %v3894 = vpop.f32.mrb[0].mxu0
    %3895 = vdwg.mxu0
    %3896 = vmatprep.subr.bf16.mxu0 %v3094
    %3897 = vmatpush1.bf16.msra.mxu0 %v3093
    %3898 = vmatprep.subr.bf16.mxu0 %v3098
    %3899 = vmatpush1.bf16.msra.mxu0 %v3097
    %3900 = vmatprep.subr.bf16.mxu0 %v3102
    %3901 = vmatpush1.bf16.msra.mxu0 %v3101
    %3902 = vmatprep.subr.bf16.mxu0 %v3106
    %3903 = vmatpush1.bf16.msra.mxu0 %v3105
    %3904 = vmatprep.subr.bf16.mxu0 0
    %3905 = vmatpush1.bf16.msra.mxu0 0
    %3906 = vmatprep.subr.bf16.mxu0 0
    %3907 = vmatpush1.bf16.msra.mxu0 0
    %3908 = vmatprep.subr.bf16.mxu0 0
    %3909 = vmatpush1.bf16.msra.mxu0 0
    %3910 = vmatprep.subr.bf16.mxu0 0
    %3911 = vmatpush1.bf16.msra.mxu0 0
    %3912 = vmatprep.subr.bf16.mxu0 0
    %3913 = vmatpush1.bf16.msra.mxu0 0
    %3914 = vmatprep.subr.bf16.mxu0 0
    %3915 = vmatpush1.bf16.msra.mxu0 0
    %3916 = vmatprep.subr.bf16.mxu0 0
    %3917 = vmatpush1.bf16.msra.mxu0 0
    %3918 = vmatprep.subr.bf16.mxu0 0
    %3919 = vmatpush1.bf16.msra.mxu0 0
    %3920 = vmatprep.subr.bf16.mxu0 0
    %3921 = vmatpush1.bf16.msra.mxu0 0
    %3922 = vmatprep.subr.bf16.mxu0 0
    %3923 = vmatpush1.bf16.msra.mxu0 0
    %3924 = vmatprep.subr.bf16.mxu0 0
    %3925 = vmatpush1.bf16.msra.mxu0 0
    %3926 = vmatprep.subr.bf16.mxu0 0
    %3927 = vmatpush1.bf16.msra.mxu0 0
    %3928 = vmatprep.mubr.bf16.mxu0 0
    %3929 = vmatmul.mubr.bf16.gmra.mrb[0].mxu0 %v3689
    %v3930 = vpop.f32.mrb[0].mxu0
    %v3931 = vadd.f32 %v3890, %v3930
    %v3932 = vpop.f32.mrb[0].mxu0
    %v3933 = vadd.f32 %v3892, %v3932
    %v3934 = vpop.f32.mrb[0].mxu0
    %v3935 = vpop.f32.mrb[0].mxu0
    %3936 = vdwg.mxu0
    %v3937 = vmax.f32 %v3808, %v3931
    %v3938 = vmax.f32 %v3810, %v3933
    %3941 = vrot.lane.b32.xlu0 %v3937, 112
    %v3942 = vpop.permute.xlu0 %3941
    %3943 = vrot.lane.b32.xlu0 %v3938, 112
    %v3944 = vpop.permute.xlu0 %3943
    %v3945 = vsel %vm3509, %v3942, %v3944
    %v3948 = vmax.f32 %v3937, %v3945
    %v3949 = vmax.f32 %v3938, %v3944
    %v3950 = vpack.c.bf16 %v3948, %v3948
    %v3951 = vpack.c.bf16 %v3949, %v3949
    %v3953 = vsel %vm3509, %v3951, 0
    %3955 = vmatprep.subr.bf16.mxu0 0
    %3956 = vmatpush1.bf16.msra.mxu0 %v3581
    %3957 = vmatprep.subr.bf16.mxu0 0
    %3958 = vmatpush1.bf16.msra.mxu0 %v3582
    %3959 = vmatprep.subr.bf16.mxu0 0
    %3960 = vmatpush1.bf16.msra.mxu0 %v3583
    %3961 = vmatprep.subr.bf16.mxu0 0
    %3962 = vmatpush1.bf16.msra.mxu0 %v3584
    %3963 = vmatprep.subr.bf16.mxu0 0
    %3964 = vmatpush1.bf16.msra.mxu0 %v3585
    %3965 = vmatprep.subr.bf16.mxu0 0
    %3966 = vmatpush1.bf16.msra.mxu0 %v3586
    %3967 = vmatprep.subr.bf16.mxu0 0
    %3968 = vmatpush1.bf16.msra.mxu0 %v3587
    %3969 = vmatprep.subr.bf16.mxu0 0
    %3970 = vmatpush1.bf16.msra.mxu0 %v3588
    %3971 = vmatprep.subr.bf16.mxu0 0
    %3972 = vmatpush1.bf16.msra.mxu0 %v3589
    %3973 = vmatprep.subr.bf16.mxu0 0
    %3974 = vmatpush1.bf16.msra.mxu0 %v3590
    %3975 = vmatprep.subr.bf16.mxu0 0
    %3976 = vmatpush1.bf16.msra.mxu0 %v3591
    %3977 = vmatprep.subr.bf16.mxu0 0
    %3978 = vmatpush1.bf16.msra.mxu0 %v3592
    %3979 = vmatprep.subr.bf16.mxu0 0
    %3980 = vmatpush1.bf16.msra.mxu0 %v3593
    %3981 = vmatprep.subr.bf16.mxu0 0
    %3982 = vmatpush1.bf16.msra.mxu0 %v3594
    %3983 = vmatprep.subr.bf16.mxu0 0
    %3984 = vmatpush1.bf16.msra.mxu0 %v3595
    %3985 = vmatprep.subr.bf16.mxu0 0
    %3986 = vmatpush1.bf16.msra.mxu0 0
    %3987 = vmatprep.mubr.bf16.mxu0 %v3953
    %3988 = vmatmul.mubr.bf16.gmra.mrb[0].mxu0 %v3950
    %v3989 = vpop.f32.mrb[0].mxu0
    %v3990 = vadd.f32 %v3520, %v3989
    %v3991 = vpop.f32.mrb[0].mxu0
    %v3992 = vpop.f32.mrb[0].mxu0
    %v3993 = vpop.f32.mrb[0].mxu0
    %3994 = vdwg.mxu0
    %v3995 = vmax.f32 %v3990, 0.0
    %v3996 = vpack.c.bf16 %v3654, %v3654
    %v3997 = vpack.c.bf16 %v3995, %v3995
    %v3998 = vld [vmem:[%s5] sm:$0xf]
    %v3999 = vld [vmem:[%s5 + $0x4] sm:$0xf]
    %v4000 = vld [vmem:[%s5 + $0x8] sm:$0xf]
    %v4001 = vld [vmem:[%s5 + $0xc] sm:$0xf]
    %v4002 = vld [vmem:[%s5 + $0x10] sm:$0xf]
    %v4003 = vld [vmem:[%s5 + $0x14] sm:$0xf]
    %v4004 = vld [vmem:[%s5 + $0x18] sm:$0xf]
    %v4005 = vld [vmem:[%s5 + $0x1c] sm:$0xf]
    %v4006 = vld [vmem:[%s5 + $0x20] sm:$0xf]
    %v4007 = vld [vmem:[%s5 + $0x24] sm:$0xf]
    %v4008 = vld [vmem:[%s5 + $0x28] sm:$0xf]
    %v4009 = vld [vmem:[%s5 + $0x2c] sm:$0xf]
    %v4010 = vld [vmem:[%s5 + $0x30] sm:$0xf]
    %v4011 = vld [vmem:[%s5 + $0x34] sm:$0xf]
    %v4012 = vld [vmem:[%s5 + $0x38] sm:$0xf]
    %v4013 = vld [vmem:[%s5 + $0x3c] sm:$0xf]
    %v4014 = vld [vmem:[%s5 + $0x40] sm:$0xf]
    %v4015 = vld [vmem:[%s5 + $0x44] sm:$0xf]
    %v4016 = vld [vmem:[%s5 + $0x48] sm:$0xf]
    %v4017 = vld [vmem:[%s5 + $0x4c] sm:$0xf]
    %v4018 = vld [vmem:[%s5 + $0x50] sm:$0xf]
    %v4019 = vld [vmem:[%s5 + $0x54] sm:$0xf]
    %v4020 = vld [vmem:[%s5 + $0x58] sm:$0xf]
    %v4021 = vld [vmem:[%s5 + $0x5c] sm:$0xf]
    %v4022 = vld [vmem:[%s5 + $0x60] sm:$0xf]
    %v4023 = vld [vmem:[%s5 + $0x64] sm:$0xf]
    %v4024 = vld [vmem:[%s5 + $0x68] sm:$0xf]
    %v4025 = vld [vmem:[%s5 + $0x6c] sm:$0xf]
    %v4026 = vld [vmem:[%s5 + $0x70] sm:$0xf]
    %v4027 = vld [vmem:[%s5 + $0x74] sm:$0xf]
    %v4028 = vld [vmem:[%s5 + $0x78] sm:$0xf]
    %v4029 = vld [vmem:[%s5 + $0x7c] sm:$0xf]
    %v4030 = vlaneseq
    %v4031 = vshrl.u32 %v4030, 7
    %v4032 = vsub.s32 2, %v4031
    %v4033 = vrot.slane %v86, %v4032
    %v4066 = vunpack.c.l.b16 %v3998
    %v4067 = vunpack.c.l.b16 %v3999
    %v4068 = vunpack.c.l.b16 %v4000
    %v4069 = vunpack.c.l.b16 %v4001
    %v4070 = vunpack.c.l.b16 %v4002
    %v4071 = vunpack.c.l.b16 %v4003
    %v4072 = vunpack.c.l.b16 %v4004
    %v4073 = vunpack.c.l.b16 %v4005
    %v4074 = vunpack.c.l.b16 %v4006
    %v4075 = vunpack.c.l.b16 %v4007
    %v4076 = vunpack.c.l.b16 %v4008
    %v4077 = vunpack.c.l.b16 %v4009
    %v4078 = vunpack.c.l.b16 %v4010
    %v4079 = vunpack.c.l.b16 %v4011
    %v4080 = vunpack.c.l.b16 %v4012
    %v4081 = vunpack.c.l.b16 %v4013
    %v4082 = vunpack.c.l.b16 %v4014
    %v4083 = vunpack.c.l.b16 %v4015
    %v4084 = vunpack.c.l.b16 %v4016
    %v4085 = vunpack.c.l.b16 %v4017
    %v4086 = vunpack.c.l.b16 %v4018
    %v4087 = vunpack.c.l.b16 %v4019
    %v4088 = vunpack.c.l.b16 %v4020
    %v4089 = vunpack.c.l.b16 %v4021
    %v4090 = vunpack.c.l.b16 %v4022
    %v4091 = vunpack.c.l.b16 %v4023
    %v4092 = vunpack.c.l.b16 %v4024
    %v4093 = vunpack.c.l.b16 %v4025
    %v4094 = vunpack.c.l.b16 %v4026
    %v4095 = vunpack.c.l.b16 %v4027
    %v4096 = vunpack.c.l.b16 %v4028
    %v4097 = vunpack.c.l.b16 %v4029
    %v4098 = vpack.c.b16 %v4067, %v4066
    %v4099 = vpack.c.b16 %v4069, %v4068
    %v4100 = vpack.c.b16 %v4071, %v4070
    %v4101 = vpack.c.b16 %v4073, %v4072
    %v4102 = vpack.c.b16 %v4075, %v4074
    %v4103 = vpack.c.b16 %v4077, %v4076
    %v4104 = vpack.c.b16 %v4079, %v4078
    %v4105 = vpack.c.b16 %v4081, %v4080
    %v4106 = vpack.c.b16 %v4083, %v4082
    %v4107 = vpack.c.b16 %v4085, %v4084
    %v4108 = vpack.c.b16 %v4087, %v4086
    %v4109 = vpack.c.b16 %v4089, %v4088
    %v4110 = vpack.c.b16 %v4091, %v4090
    %v4111 = vpack.c.b16 %v4093, %v4092
    %v4112 = vpack.c.b16 %v4095, %v4094
    %v4113 = vpack.c.b16 %v4097, %v4096
    %4130 = vmatprep.subr.bf16.mxu0 0
    %4131 = vmatpush1.bf16.msra.mxu0 %v4098
    %4132 = vmatprep.subr.bf16.mxu0 0
    %4133 = vmatpush1.bf16.msra.mxu0 %v4099
    %4134 = vmatprep.subr.bf16.mxu0 0
    %4135 = vmatpush1.bf16.msra.mxu0 %v4100
    %4136 = vmatprep.subr.bf16.mxu0 0
    %4137 = vmatpush1.bf16.msra.mxu0 %v4101
    %4138 = vmatprep.subr.bf16.mxu0 0
    %4139 = vmatpush1.bf16.msra.mxu0 %v4102
    %4140 = vmatprep.subr.bf16.mxu0 0
    %4141 = vmatpush1.bf16.msra.mxu0 %v4103
    %4142 = vmatprep.subr.bf16.mxu0 0
    %4143 = vmatpush1.bf16.msra.mxu0 %v4104
    %4144 = vmatprep.subr.bf16.mxu0 0
    %4145 = vmatpush1.bf16.msra.mxu0 %v4105
    %4146 = vmatprep.subr.bf16.mxu0 0
    %4147 = vmatpush1.bf16.msra.mxu0 %v4106
    %4148 = vmatprep.subr.bf16.mxu0 0
    %4149 = vmatpush1.bf16.msra.mxu0 %v4107
    %4150 = vmatprep.subr.bf16.mxu0 0
    %4151 = vmatpush1.bf16.msra.mxu0 %v4108
    %4152 = vmatprep.subr.bf16.mxu0 0
    %4153 = vmatpush1.bf16.msra.mxu0 %v4109
    %4154 = vmatprep.subr.bf16.mxu0 0
    %4155 = vmatpush1.bf16.msra.mxu0 %v4110
    %4156 = vmatprep.subr.bf16.mxu0 0
    %4157 = vmatpush1.bf16.msra.mxu0 %v4111
    %4158 = vmatprep.subr.bf16.mxu0 0
    %4159 = vmatpush1.bf16.msra.mxu0 %v4112
    %4160 = vmatprep.subr.bf16.mxu0 0
    %4161 = vmatpush1.bf16.msra.mxu0 %v4113
    %4162 = vmatprep.mubr.bf16.mxu0 %v3997
    %4163 = vmatmul.mubr.bf16.gmra.mrb[0].mxu0 %v3996
    %v4164 = vpop.f32.mrb[0].mxu0
    %v4165 = vadd.f32 %v4033, %v4164
    %v4166 = vpop.f32.mrb[0].mxu0
    %v4167 = vpop.f32.mrb[0].mxu0
    %v4168 = vpop.f32.mrb[0].mxu0
    %4169 = vdwg.mxu0
    %v4170 = vmax.f32 %v4165, 0.0
    %v4171 = vpack.c.bf16 %v4170, %v4170
    %v4172 = vld [vmem:[%s6] sm:$0xf]
    %v4173 = vld [vmem:[%s6 + $0x4] sm:$0xf]
    %v4174 = vld [vmem:[%s6 + $0x8] sm:$0xf]
    %v4175 = vld [vmem:[%s6 + $0xc] sm:$0xf]
    %v4176 = vld [vmem:[%s6 + $0x10] sm:$0xf]
    %v4177 = vld [vmem:[%s6 + $0x14] sm:$0xf]
    %v4178 = vld [vmem:[%s6 + $0x18] sm:$0xf]
    %v4179 = vld [vmem:[%s6 + $0x1c] sm:$0xf]
    %v4180 = vld [vmem:[%s6 + $0x20] sm:$0xf]
    %v4181 = vld [vmem:[%s6 + $0x24] sm:$0xf]
    %v4182 = vld [vmem:[%s6 + $0x28] sm:$0xf]
    %v4183 = vld [vmem:[%s6 + $0x2c] sm:$0xf]
    %v4184 = vld [vmem:[%s6 + $0x30] sm:$0xf]
    %v4185 = vld [vmem:[%s6 + $0x34] sm:$0xf]
    %v4186 = vld [vmem:[%s6 + $0x38] sm:$0xf]
    %v4187 = vlaneseq
    %v4188 = vshrl.u32 %v4187, 7
    %v4189 = vsub.s32 3, %v4188
    %v4190 = vrot.slane %v86, %v4189
    %v4206 = vunpack.c.l.b16 %v4172
    %v4207 = vunpack.c.l.b16 %v4173
    %v4208 = vunpack.c.l.b16 %v4174
    %v4209 = vunpack.c.l.b16 %v4175
    %v4210 = vunpack.c.l.b16 %v4176
    %v4211 = vunpack.c.l.b16 %v4177
    %v4212 = vunpack.c.l.b16 %v4178
    %v4213 = vunpack.c.l.b16 %v4179
    %v4214 = vunpack.c.l.b16 %v4180
    %v4215 = vunpack.c.l.b16 %v4181
    %v4216 = vunpack.c.l.b16 %v4182
    %v4217 = vunpack.c.l.b16 %v4183
    %v4218 = vunpack.c.l.b16 %v4184
    %v4219 = vunpack.c.l.b16 %v4185
    %v4220 = vunpack.c.l.b16 %v4186
    %v4221 = vpack.c.b16 %v4207, %v4206
    %v4222 = vpack.c.b16 %v4209, %v4208
    %v4223 = vpack.c.b16 %v4211, %v4210
    %v4224 = vpack.c.b16 %v4213, %v4212
    %v4225 = vpack.c.b16 %v4215, %v4214
    %v4226 = vpack.c.b16 %v4217, %v4216
    %v4227 = vpack.c.b16 %v4219, %v4218
    %v4228 = vpack.c.b16 %v4220, %v4220
    %vm4236 = vcmask 982016
    %v4238 = vsel %vm4236, %v4171, 0
    %vm4240 = vcmask 1043456
    %v4242 = vsel %vm4240, %v4228, 0
    %4244 = vmatprep.subr.bf16.mxu0 0
    %4245 = vmatpush1.bf16.msra.mxu0 %v4221
    %4246 = vmatprep.subr.bf16.mxu0 0
    %4247 = vmatpush1.bf16.msra.mxu0 %v4222
    %4248 = vmatprep.subr.bf16.mxu0 0
    %4249 = vmatpush1.bf16.msra.mxu0 %v4223
    %4250 = vmatprep.subr.bf16.mxu0 0
    %4251 = vmatpush1.bf16.msra.mxu0 %v4224
    %4252 = vmatprep.subr.bf16.mxu0 0
    %4253 = vmatpush1.bf16.msra.mxu0 %v4225
    %4254 = vmatprep.subr.bf16.mxu0 0
    %4255 = vmatpush1.bf16.msra.mxu0 %v4226
    %4256 = vmatprep.subr.bf16.mxu0 0
    %4257 = vmatpush1.bf16.msra.mxu0 %v4227
    %4258 = vmatprep.subr.bf16.mxu0 0
    %4259 = vmatpush1.bf16.msra.mxu0 %v4242
    %4260 = vmatprep.subr.bf16.mxu0 0
    %4261 = vmatpush1.bf16.msra.mxu0 0
    %4262 = vmatprep.subr.bf16.mxu0 0
    %4263 = vmatpush1.bf16.msra.mxu0 0
    %4264 = vmatprep.subr.bf16.mxu0 0
    %4265 = vmatpush1.bf16.msra.mxu0 0
    %4266 = vmatprep.subr.bf16.mxu0 0
    %4267 = vmatpush1.bf16.msra.mxu0 0
    %4268 = vmatprep.subr.bf16.mxu0 0
    %4269 = vmatpush1.bf16.msra.mxu0 0
    %4270 = vmatprep.subr.bf16.mxu0 0
    %4271 = vmatpush1.bf16.msra.mxu0 0
    %4272 = vmatprep.subr.bf16.mxu0 0
    %4273 = vmatpush1.bf16.msra.mxu0 0
    %4274 = vmatprep.subr.bf16.mxu0 0
    %4275 = vmatpush1.bf16.msra.mxu0 0
    %4276 = vmatprep.mubr.bf16.mxu0 0
    %4277 = vmatmul.mubr.bf16.gmra.mrb[0].mxu0 %v4238
    %v4278 = vpop.f32.mrb[0].mxu0
    %v4279 = vadd.f32 %v4190, %v4278
    %v4280 = vpop.f32.mrb[0].mxu0
    %v4281 = vpop.f32.mrb[0].mxu0
    %v4282 = vpop.f32.mrb[0].mxu0
    %4283 = vdwg.mxu0
    %v4284 = vmax.f32 %v4279, 0.0
    %v4285 = vpack.c.bf16 %v4284, %v4284
    %v4286 = vld [vmem:[%s7] sm:$0xf]
    %v4287 = vld [vmem:[%s7 + $0x4] sm:$0xf]
    %v4288 = vld [vmem:[%s7 + $0x8] sm:$0xf]
    %v4289 = vld [vmem:[%s7 + $0xc] sm:$0xf]
    %v4290 = vld [vmem:[%s7 + $0x10] sm:$0xf]
    %v4291 = vld [vmem:[%s7 + $0x14] sm:$0xf]
    %v4292 = vld [vmem:[%s7 + $0x18] sm:$0xf]
    %v4293 = vld [vmem:[%s7 + $0x1c] sm:$0xf]
    %v4294 = vld [vmem:[%s7 + $0x20] sm:$0xf]
    %v4295 = vld [vmem:[%s7 + $0x24] sm:$0xf]
    %v4296 = vld [vmem:[%s7 + $0x28] sm:$0x3]
    %v4297 = vlaneseq
    %v4298 = vshrl.u32 %v4297, 7
    %v4299 = vsub.s32 4, %v4298
    %v4300 = vrot.slane %v86, %v4299
    %v4312 = vunpack.c.l.b16 %v4286
    %v4313 = vunpack.c.l.b16 %v4287
    %v4314 = vunpack.c.l.b16 %v4288
    %v4315 = vunpack.c.l.b16 %v4289
    %v4316 = vunpack.c.l.b16 %v4290
    %v4317 = vunpack.c.l.b16 %v4291
    %v4318 = vunpack.c.l.b16 %v4292
    %v4319 = vunpack.c.l.b16 %v4293
    %v4320 = vunpack.c.l.b16 %v4294
    %v4321 = vunpack.c.l.b16 %v4295
    %v4322 = vunpack.c.l.b16 %v4296
    %v4323 = vpack.c.b16 %v4313, %v4312
    %v4324 = vpack.c.b16 %v4315, %v4314
    %v4325 = vpack.c.b16 %v4317, %v4316
    %v4326 = vpack.c.b16 %v4319, %v4318
    %v4327 = vpack.c.b16 %v4321, %v4320
    %v4328 = vpack.c.b16 %v4322, %v4322
    %vm4334 = vcmask 687104
    %v4336 = vsel %vm4334, %v4285, 0
    %vm4338 = vcmask 1041408
    %v4340 = vsel %vm4338, %v4328, 0
    %4342 = vmatprep.subr.bf16.mxu0 0
    %4343 = vmatpush1.bf16.msra.mxu0 %v4323
    %4344 = vmatprep.subr.bf16.mxu0 0
    %4345 = vmatpush1.bf16.msra.mxu0 %v4324
    %4346 = vmatprep.subr.bf16.mxu0 0
    %4347 = vmatpush1.bf16.msra.mxu0 %v4325
    %4348 = vmatprep.subr.bf16.mxu0 0
    %4349 = vmatpush1.bf16.msra.mxu0 %v4326
    %4350 = vmatprep.subr.bf16.mxu0 0
    %4351 = vmatpush1.bf16.msra.mxu0 %v4327
    %4352 = vmatprep.subr.bf16.mxu0 0
    %4353 = vmatpush1.bf16.msra.mxu0 %v4340
    %4354 = vmatprep.subr.bf16.mxu0 0
    %4355 = vmatpush1.bf16.msra.mxu0 0
    %4356 = vmatprep.subr.bf16.mxu0 0
    %4357 = vmatpush1.bf16.msra.mxu0 0
    %4358 = vmatprep.subr.bf16.mxu0 0
    %4359 = vmatpush1.bf16.msra.mxu0 0
    %4360 = vmatprep.subr.bf16.mxu0 0
    %4361 = vmatpush1.bf16.msra.mxu0 0
    %4362 = vmatprep.subr.bf16.mxu0 0
    %4363 = vmatpush1.bf16.msra.mxu0 0
    %4364 = vmatprep.subr.bf16.mxu0 0
    %4365 = vmatpush1.bf16.msra.mxu0 0
    %4366 = vmatprep.subr.bf16.mxu0 0
    %4367 = vmatpush1.bf16.msra.mxu0 0
    %4368 = vmatprep.subr.bf16.mxu0 0
    %4369 = vmatpush1.bf16.msra.mxu0 0
    %4370 = vmatprep.subr.bf16.mxu0 0
    %4371 = vmatpush1.bf16.msra.mxu0 0
    %4372 = vmatprep.subr.bf16.mxu0 0
    %4373 = vmatpush1.bf16.msra.mxu0 0
    %4374 = vmatprep.mubr.bf16.mxu0 0
    %4375 = vmatmul.mubr.bf16.gmra.mrb[0].mxu0 %v4336
    %v4376 = vpop.f32.mrb[0].mxu0
    %v4377 = vadd.f32 %v4300, %v4376
    %v4378 = vpop.f32.mrb[0].mxu0
    %v4379 = vpop.f32.mrb[0].mxu0
    %v4380 = vpop.f32.mrb[0].mxu0
    %4381 = vdwg.mxu0
    %vm4382 = vcmask 80896
    %v4383 = vsel %vm4382, %v4377, -inf
    %4384 = vmax.xlane.f32.xlu0 %v4383
    %v4385 = vpop.xlane.xlu0 %4384
    %v4386 = vsub.f32 %v4377, %v4385
    %v4387 = vmul.f32 %v4386, 1.442695
    %v4388 = vpow.pop %v4387
    %v4389 = vsel %vm4382, %v4388, 0.0
    %4390 = vadd.xlane.f32.xlu0 %v4389
    %v4391 = vpop.xlane.xlu0 %4390
    %v4392 = vrcp.pop %v4391
    %v4393 = vmul.f32 %v4388, %v4392
    %4394 = vst.msk [vmem:[%s9] sm:$0xff] %vm4382, %v4393
    // Predicated region
    $region50: #{_forward.1} parent=1 // pred_check
      _
    $region51: #{_forward.1} parent=1 // pred_check_branch
      %4396 = sbr.rel (0) target = $region53
    $region52: #{_forward.1} parent=1 // pred_region
      _
    $region53: #{_forward.1} parent=1 // pred_fallthru
      _
    // Predicated region
    $region54: #{_forward.1} parent=1 // pred_check
      _
    $region55: #{_forward.1} parent=1 // pred_check_branch
      %4398 = sbr.rel (0) target = $region57
    $region56: #{_forward.1} parent=1 // pred_region
      _
    $region57: #{_forward.1} parent=1 // pred_fallthru
      _
    %4399 = vsyncpa [#allocation3], 1
    %4400 = vsyncpa [#allocation5], 1

</llo_original>
